<compile_context>
chip_gen: v7x
topology: tpu7x:2x2x1
jax: 0.10.0
libtpu: 0.0.40
codegen_flags: <defaults>
</compile_context>

<pallas_src>
import functools

import numpy as np

import jax
import jax.numpy as jnp
from jax.experimental import pallas as pl
from jax.experimental.pallas import tpu as pltpu


# ----------------------------------------------------------------------------
# Helpers
# ----------------------------------------------------------------------------
def _round_up(v, m):
    return ((v + m - 1) // m) * m


def make_config(enc_in, d_model, e_layers, num_class, ks, seq_len):
    """Static (Python-level) model configuration."""
    dilations = tuple(2 ** i for i in range(e_layers))
    has_ds = tuple(((enc_in if i == 0 else d_model) != d_model) for i in range(e_layers))
    return dict(
        enc_in=enc_in, d_model=d_model, e_layers=e_layers, num_class=num_class,
        ks=ks, seq_len=seq_len,
        Lpad=_round_up(seq_len, 128),            # lane-dense per-element time axis
        cin0_pad=_round_up(enc_in, 8),           # sublane-aligned input channels
        cout_pad=_round_up(num_class, 128),      # lane-dense logits tile
        dilations=dilations, has_ds=has_ds)


def _pack_conv_weight(w_ock, cin_pad):
    """PyTorch Conv1d weight (Cout, Cin, ks) -> kernel layout (Cout, ks*cin_pad).

    Column k*cin_pad + c holds tap k / channel c, matching the in-kernel im2col
    row ordering (tap-major, channel-minor)."""
    cout, cin, ks = w_ock.shape
    w = jnp.transpose(w_ock, (0, 2, 1))                         # (Cout, ks, Cin)
    w = jnp.pad(w, ((0, 0), (0, 0), (0, cin_pad - cin)))        # pad channels
    return w.reshape(cout, ks * cin_pad)


# ----------------------------------------------------------------------------
# Fused kernel (one grid step == Bblk batch elements side-by-side on lanes)
# ----------------------------------------------------------------------------
def _conv_causal_relu(x, w2d, b_col, masks, *, ks, dilation, lpad, compute_dtype):
    """Causal dilated conv + bias + ReLU as one im2col matmul on the lane-batched layout.

    x:     (Cin, Nlanes) f32, Nlanes = Bblk*Lpad; element e owns lanes [e*Lpad,(e+1)*Lpad)
    w2d:   (Cout, ks*Cin) compute_dtype
    b_col: (Cout, 1) f32
    masks: {shift: bool (1, Nlanes)} — lane_pos >= shift (per-element causal zero pad,
           also stops roll from leaking data across element boundaries / array wrap).
    """
    taps = []
    for k in range(ks):
        s = (ks - 1 - k) * dilation
        if s == 0:
            tap = x
        elif s >= lpad:
            # Tap reaches before t=0 for every valid time step of every element.
            tap = jnp.zeros_like(x)
        else:
            tap = jnp.where(masks[s], pltpu.roll(x, shift=s, axis=1), 0.0)
        taps.append(tap)
    xim = jnp.concatenate(taps, axis=0) if ks > 1 else taps[0]          # (ks*Cin, Nlanes)
    y = jnp.dot(w2d, xim.astype(compute_dtype),
                preferred_element_type=jnp.float32) + b_col             # (Cout, Nlanes) f32
    return jnp.maximum(y, 0.0)


def _tcn_fused_kernel(*refs, ks, dilations, has_ds, lpad, compute_dtype):
    """refs = (x, gap, lane_pos, [w1,b1,w2,b2,(wds,bds)?]*nblocks, w_head, b_head, out)."""
    x_ref, gap_ref, pos_ref, o_ref = refs[0], refs[1], refs[2], refs[-1]
    it = iter(refs[3:-1])

    x = x_ref[0]                          # (cin0_pad, Nlanes) f32
    lane_pos = pos_ref[...]               # (1, Nlanes) int32 — position within each element

    # NOTE: lane columns t >= L of each element carry bias-propagated garbage through all
    # layers; they never feed a valid column (causal taps only look left) and are zeroed
    # by the precomputed GAP rows below.  Do not insert lane-reductions before that mask.
    for i, d in enumerate(dilations):
        # Per-dilation causal masks, shared by both convs of the block.
        masks = {}
        for k in range(ks):
            s = (ks - 1 - k) * d
            if 0 < s < lpad and s not in masks:
                masks[s] = lane_pos >= s
        w1, b1, w2, b2 = next(it), next(it), next(it), next(it)
        y = _conv_causal_relu(x, w1[...], b1[...], masks, ks=ks, dilation=d,
                              lpad=lpad, compute_dtype=compute_dtype)
        y = _conv_causal_relu(y, w2[...], b2[...], masks, ks=ks, dilation=d,
                              lpad=lpad, compute_dtype=compute_dtype)
        if has_ds[i]:
            wds, bds = next(it), next(it)
            res = jnp.dot(wds[...], x.astype(compute_dtype),
                          preferred_element_type=jnp.float32) + bds[...]
        else:
            res = x
        x = jnp.maximum(y + res, 0.0)     # (nf, Nlanes) f32

    w_head, b_head = next(it), next(it)   # (nf, cpad) compute_dtype, (1, cpad) f32

    # GAP over the L valid steps of each element (+ 1/L scaling + tail masking) as one
    # matmul against the precomputed per-element 1/L rows (hoisted to the wrapper).
    pooled = jax.lax.dot_general(gap_ref[...], x, (((1,), (1,)), ((), ())),
                                 preferred_element_type=jnp.float32)    # (Bblk, nf)
    logits = jnp.dot(pooled.astype(compute_dtype), w_head[...],
                     preferred_element_type=jnp.float32) + b_head[...]  # (Bblk, cpad)
    o_ref[0] = logits                      # full lane-dense tile store


# ----------------------------------------------------------------------------
# Forward builder (single pallas_call)
# ----------------------------------------------------------------------------
def build_forward(cfg, compute_dtype=jnp.bfloat16, bblk=8):
    L = cfg["seq_len"]; Lpad = cfg["Lpad"]; ks = cfg["ks"]
    cin0 = cfg["cin0_pad"]; c_out = cfg["num_class"]; cpad = cfg["cout_pad"]
    enc_in = cfg["enc_in"]
    assert bblk % 8 == 0, "bblk must be a multiple of 8 (sublane-aligned output tile)"
    nlanes = bblk * Lpad

    # Grid-invariant constants, hoisted out of the kernel body (JAX does not CSE
    # broadcast_in_dim; recomputing iota/masks every grid step is wasted VPU work).
    lane_pos = jnp.asarray(np.tile(np.arange(Lpad, dtype=np.int32), bblk).reshape(1, nlanes))
    gap_np = np.zeros((bblk, nlanes), np.float32)
    for e in range(bblk):
        gap_np[e, e * Lpad: e * Lpad + L] = 1.0 / L
    gap = jnp.asarray(gap_np)

    kernel = functools.partial(
        _tcn_fused_kernel, ks=ks, dilations=cfg["dilations"], has_ds=cfg["has_ds"],
        lpad=Lpad, compute_dtype=compute_dtype)

    @jax.jit
    def forward(packed, x_enc, x_mark_enc=None, x_dec=None, x_mark_dec=None, mask=None):
        B, L_in, c_in = x_enc.shape
        # The GAP rows / causal masks are built from the compile-time config; the runtime
        # input must agree with it (otherwise padding and masks silently disagree).
        assert L_in == L and c_in == enc_in, (
            f"input (L={L_in}, C={c_in}) must match config (seq_len={L}, enc_in={enc_in})")
        b_pad = _round_up(max(B, 1), bblk)
        nsteps = b_pad // bblk

        # (B,L,C) -> (B,C,L); pad channels/time/batch; lay bblk elements side-by-side
        # along the lane axis: step b holds (cin0, bblk*Lpad).
        x = jnp.transpose(x_enc, (0, 2, 1)).astype(jnp.float32)
        x = jnp.pad(x, ((0, b_pad - B), (0, cin0 - c_in), (0, Lpad - L_in)))
        x = (x.reshape(nsteps, bblk, cin0, Lpad)
               .transpose(0, 2, 1, 3)
               .reshape(nsteps, cin0, nlanes))

        flat = []
        in_specs = [pl.BlockSpec((1, cin0, nlanes), lambda b: (b, 0, 0)),
                    pl.BlockSpec(gap.shape, lambda b: (0, 0)),
                    pl.BlockSpec(lane_pos.shape, lambda b: (0, 0))]

        # Grid-invariant whole-array blocks (weights/biases).  Left at the default
        # pipelining depth: the duplicated buffers are ~100 KiB at these sizes.
        def add_full(arr, cast=False):
            arr = arr.astype(compute_dtype) if cast else arr
            flat.append(arr)
            in_specs.append(pl.BlockSpec(arr.shape, lambda b: (0, 0)))

        for blk in packed["blocks"]:
            add_full(blk["w1"], cast=True); add_full(blk["b1"])
            add_full(blk["w2"], cast=True); add_full(blk["b2"])
            if blk["wds"] is not None:
                add_full(blk["wds"], cast=True); add_full(blk["bds"])
        add_full(packed["w_head"], cast=True); add_full(packed["b_head"])

        out = pl.pallas_call(
            kernel,
            out_shape=jax.ShapeDtypeStruct((nsteps, bblk, cpad), jnp.float32),
            grid=(nsteps,),
            in_specs=in_specs,
            out_specs=pl.BlockSpec((1, bblk, cpad), lambda b: (b, 0, 0)),
            compiler_params=pltpu.CompilerParams(dimension_semantics=("parallel",)),
        )(x, gap, lane_pos, *flat)
        return out.reshape(b_pad, cpad)[:B, :c_out]

    return forward


# ----------------------------------------------------------------------------
# Parameters (raw PyTorch-layout for the reference, packed for the kernel)
# ----------------------------------------------------------------------------
def init_params(key, cfg, w_std=0.01):
    ks = cfg["ks"]; nf = cfg["d_model"]; enc_in = cfg["enc_in"]
    c_out = cfg["num_class"]; cin0 = cfg["cin0_pad"]; cpad = cfg["cout_pad"]
    raw_blocks, packed_blocks = [], []
    for i, d in enumerate(cfg["dilations"]):
        ni = enc_in if i == 0 else nf
        cin_pad = cin0 if i == 0 else nf
        key, k1, k2, k3, k4, k5, k6 = jax.random.split(key, 7)
        # Conv weights ~ N(0, w_std) as in init_weights(); biases ~ PyTorch default uniform.
        W1 = w_std * jax.random.normal(k1, (nf, ni, ks), jnp.float32)
        B1 = (1.0 / (ni * ks) ** 0.5) * jax.random.uniform(k2, (nf,), jnp.float32, -1.0, 1.0)
        W2 = w_std * jax.random.normal(k3, (nf, nf, ks), jnp.float32)
        B2 = (1.0 / (nf * ks) ** 0.5) * jax.random.uniform(k4, (nf,), jnp.float32, -1.0, 1.0)
        if cfg["has_ds"][i]:
            Wds = w_std * jax.random.normal(k5, (nf, ni, 1), jnp.float32)
            Bds = (1.0 / ni ** 0.5) * jax.random.uniform(k6, (nf,), jnp.float32, -1.0, 1.0)
        else:
            Wds = Bds = None
        raw_blocks.append(dict(W1=W1, B1=B1, W2=W2, B2=B2, Wds=Wds, Bds=Bds, dilation=d))
        packed_blocks.append(dict(
            w1=_pack_conv_weight(W1, cin_pad), b1=B1.reshape(nf, 1),
            w2=_pack_conv_weight(W2, nf),      b2=B2.reshape(nf, 1),
            wds=None if Wds is None else jnp.pad(Wds[:, :, 0], ((0, 0), (0, cin_pad - ni))),
            bds=None if Bds is None else Bds.reshape(nf, 1)))
    key, k1, k2 = jax.random.split(key, 3)
    Wlin = w_std * jax.random.normal(k1, (c_out, nf), jnp.float32)
    Blin = (1.0 / nf ** 0.5) * jax.random.uniform(k2, (c_out,), jnp.float32, -1.0, 1.0)
    raw = dict(blocks=raw_blocks, Wlin=Wlin, Blin=Blin)
    # Head packed lane-dense: zero-padded columns give exactly-zero padded logits.
    w_head = jnp.pad(Wlin.T, ((0, 0), (0, cpad - c_out)))                 # (nf, cpad)
    b_head = jnp.pad(Blin.reshape(1, c_out), ((0, 0), (0, cpad - c_out)))  # (1, cpad)
    packed = dict(blocks=packed_blocks, w_head=w_head, b_head=b_head)
    return raw, packed


# ----------------------------------------------------------------------------
# Pure-JAX reference (PyTorch semantics) for correctness checking
# ----------------------------------------------------------------------------
def reference_forward(raw, x_enc, ks):
    x = jnp.transpose(x_enc, (0, 2, 1)).astype(jnp.float32)     # (B, C, L)
    L = x.shape[-1]
    for blk in raw["blocks"]:
        d = blk["dilation"]; p = (ks - 1) * d

        def causal_conv(inp, W, b):
            xp = jnp.pad(inp, ((0, 0), (0, 0), (p, 0)))
            out = b[None, :, None]
            for k in range(W.shape[-1]):
                out = out + jnp.einsum("oc,bcl->bol", W[:, :, k],
                                       xp[:, :, k * d: k * d + L], precision="highest")
            return out

        y = jax.nn.relu(causal_conv(x, blk["W1"], blk["B1"]))
        y = jax.nn.relu(causal_conv(y, blk["W2"], blk["B2"]))
        if blk["Wds"] is not None:
            res = jnp.einsum("oc,bcl->bol", blk["Wds"][:, :, 0], x,
                             precision="highest") + blk["Bds"][None, :, None]
        else:
            res = x
        x = jax.nn.relu(y + res)
    pooled = jnp.mean(x, axis=-1)                                # (B, nf)
    return jnp.einsum("bf,of->bo", pooled, raw["Wlin"], precision="highest") + raw["Blin"][None, :]


# ----------------------------------------------------------------------------
if __name__ == "__main__":
    # Small config consistent with the module.
    B, L = 2, 16
    enc_in, d_model, e_layers, num_class, ks = 4, 32, 2, 3, 5

    cfg = make_config(enc_in, d_model, e_layers, num_class, ks, seq_len=L)

    key = jax.random.PRNGKey(0)
    kp, kc, kx, kxl = jax.random.split(key, 4)

    # --- correctness vs pure-JAX reference.  Larger weight scale => sensitive check;
    #     batch=10 exercises a 2-step grid plus the batch-padding (B_pad=16, Bblk=8) path.
    Bchk = 10
    x_chk = jax.random.normal(kxl, (Bchk, L, enc_in), jnp.float32)
    raw_c, packed_c = init_params(kc, cfg, w_std=0.2)
    out_ref = np.asarray(reference_forward(raw_c, x_chk, ks))

    fwd_f32 = build_forward(cfg, compute_dtype=jnp.float32, bblk=8)
    out_f32 = np.asarray(jax.block_until_ready(fwd_f32(packed_c, x_chk)))
    np.testing.assert_allclose(out_f32, out_ref, rtol=5e-2, atol=5e-2)

    fwd_bf16 = build_forward(cfg, compute_dtype=jnp.bfloat16, bblk=8)  # v6e/v7x MXU rate
    out_bf16 = np.asarray(jax.block_until_ready(fwd_bf16(packed_c, x_chk)))
    np.testing.assert_allclose(out_bf16, out_ref, rtol=1e-1, atol=1e-1)

    # --- demo forward with the module's init scale (normal(0, 0.01)), bf16 operand path
    _, packed = init_params(kp, cfg, w_std=0.01)
    x_enc = jax.random.normal(kx, (B, L, enc_in), jnp.float32)
    x_mark_enc = jnp.zeros((B, L, 1), jnp.float32)   # unused by forward
    x_dec = jnp.zeros((B, L, enc_in), jnp.float32)   # unused by forward
    x_mark_dec = jnp.zeros((B, L, 1), jnp.float32)   # unused by forward

    out = jax.block_until_ready(fwd_bf16(packed, x_enc, x_mark_enc, x_dec, x_mark_dec))
    assert out.shape == (B, num_class), out.shape
    assert np.all(np.isfinite(np.asarray(out)))
    print("KERNEL_OK")
</pallas_src>

<mosaic_0001>
module attributes {stable_mosaic.version = 11 : i64} {
  func.func @_tcn_fused_kernel(%arg0: i32, %arg1: memref<1x8x1024xf32, #tpu.memory_space<vmem>>, %arg2: memref<8x1024xf32, #tpu.memory_space<vmem>>, %arg3: memref<1x1024xi32, #tpu.memory_space<vmem>>, %arg4: memref<32x40xf32, #tpu.memory_space<vmem>>, %arg5: memref<32x1xf32, #tpu.memory_space<vmem>>, %arg6: memref<32x160xf32, #tpu.memory_space<vmem>>, %arg7: memref<32x1xf32, #tpu.memory_space<vmem>>, %arg8: memref<32x8xf32, #tpu.memory_space<vmem>>, %arg9: memref<32x1xf32, #tpu.memory_space<vmem>>, %arg10: memref<32x160xf32, #tpu.memory_space<vmem>>, %arg11: memref<32x1xf32, #tpu.memory_space<vmem>>, %arg12: memref<32x160xf32, #tpu.memory_space<vmem>>, %arg13: memref<32x1xf32, #tpu.memory_space<vmem>>, %arg14: memref<32x128xf32, #tpu.memory_space<vmem>>, %arg15: memref<1x128xf32, #tpu.memory_space<vmem>>, %arg16: memref<1x8x128xf32, #tpu.memory_space<vmem>>) attributes {dimension_semantics = [#tpu.dimension_semantics<parallel>], iteration_bounds = array<i64: 2>, scalar_prefetch = 0 : i64, scratch_operands = 0 : i64, tpu.core_type = #tpu.core_type<tc>, window_params = [{transform_indices = @transform_0, window_bounds = array<i64: 1, 8, 1024>}, {pipeline_mode = #tpu.pipeline_mode<synchronous>, transform_indices = @transform_1, window_bounds = array<i64: 8, 1024>}, {pipeline_mode = #tpu.pipeline_mode<synchronous>, transform_indices = @transform_2, window_bounds = array<i64: 1, 1024>}, {pipeline_mode = #tpu.pipeline_mode<synchronous>, transform_indices = @transform_3, window_bounds = array<i64: 32, 40>}, {pipeline_mode = #tpu.pipeline_mode<synchronous>, transform_indices = @transform_4, window_bounds = array<i64: 32, 1>}, {pipeline_mode = #tpu.pipeline_mode<synchronous>, transform_indices = @transform_5, window_bounds = array<i64: 32, 160>}, {pipeline_mode = #tpu.pipeline_mode<synchronous>, transform_indices = @transform_6, window_bounds = array<i64: 32, 1>}, {pipeline_mode = #tpu.pipeline_mode<synchronous>, transform_indices = @transform_7, window_bounds = array<i64: 32, 8>}, {pipeline_mode = #tpu.pipeline_mode<synchronous>, transform_indices = @transform_8, window_bounds = array<i64: 32, 1>}, {pipeline_mode = #tpu.pipeline_mode<synchronous>, transform_indices = @transform_9, window_bounds = array<i64: 32, 160>}, {pipeline_mode = #tpu.pipeline_mode<synchronous>, transform_indices = @transform_10, window_bounds = array<i64: 32, 1>}, {pipeline_mode = #tpu.pipeline_mode<synchronous>, transform_indices = @transform_11, window_bounds = array<i64: 32, 160>}, {pipeline_mode = #tpu.pipeline_mode<synchronous>, transform_indices = @transform_12, window_bounds = array<i64: 32, 1>}, {pipeline_mode = #tpu.pipeline_mode<synchronous>, transform_indices = @transform_13, window_bounds = array<i64: 32, 128>}, {pipeline_mode = #tpu.pipeline_mode<synchronous>, transform_indices = @transform_14, window_bounds = array<i64: 1, 128>}, {transform_indices = @transform_15, window_bounds = array<i64: 1, 8, 128>}]} {
    %c0 = arith.constant 0 : index
    %c0_0 = arith.constant 0 : index
    %c0_1 = arith.constant 0 : index
    %0 = vector.load %arg1[%c0, %c0_0, %c0_1] : memref<1x8x1024xf32, #tpu.memory_space<vmem>>, vector<1x8x1024xf32>
    %1 = vector.shape_cast %0 : vector<1x8x1024xf32> to vector<8x1024xf32>
    %c0_2 = arith.constant 0 : index
    %c0_3 = arith.constant 0 : index
    %2 = vector.load %arg3[%c0_2, %c0_3] : memref<1x1024xi32, #tpu.memory_space<vmem>>, vector<1x1024xi32>
    %c4_i32 = arith.constant 4 : i32
    %3 = vector.broadcast %c4_i32 : i32 to vector<1x1024xi32>
    %4 = arith.cmpi sge, %2, %3 : vector<1x1024xi32>
    %c3_i32 = arith.constant 3 : i32
    %5 = vector.broadcast %c3_i32 : i32 to vector<1x1024xi32>
    %6 = arith.cmpi sge, %2, %5 : vector<1x1024xi32>
    %c2_i32 = arith.constant 2 : i32
    %7 = vector.broadcast %c2_i32 : i32 to vector<1x1024xi32>
    %8 = arith.cmpi sge, %2, %7 : vector<1x1024xi32>
    %c1_i32 = arith.constant 1 : i32
    %9 = vector.broadcast %c1_i32 : i32 to vector<1x1024xi32>
    %10 = arith.cmpi sge, %2, %9 : vector<1x1024xi32>
    %c0_4 = arith.constant 0 : index
    %c0_5 = arith.constant 0 : index
    %11 = vector.load %arg4[%c0_4, %c0_5] : memref<32x40xf32, #tpu.memory_space<vmem>>, vector<32x40xf32>
    %c0_6 = arith.constant 0 : index
    %c0_7 = arith.constant 0 : index
    %12 = vector.load %arg5[%c0_6, %c0_7] : memref<32x1xf32, #tpu.memory_space<vmem>>, vector<32x1xf32>
    %c4_i32_8 = arith.constant 4 : i32
    %13 = tpu.dynamic_rotate %1 by %c4_i32_8 dim 1 : vector<8x1024xf32>, i32 -> vector<8x1024xf32>
    %cst = arith.constant 0.000000e+00 : f32
    %14 = vector.shape_cast %4 : vector<1x1024xi1> to vector<1x1024xi1>
    %15 = vector.broadcast %14 : vector<1x1024xi1> to vector<8x1024xi1>
    %16 = vector.broadcast %cst : f32 to vector<8x1024xf32>
    %17 = arith.select %15, %13, %16 : vector<8x1024xi1>, vector<8x1024xf32>
    %c3_i32_9 = arith.constant 3 : i32
    %18 = tpu.dynamic_rotate %1 by %c3_i32_9 dim 1 : vector<8x1024xf32>, i32 -> vector<8x1024xf32>
    %cst_10 = arith.constant 0.000000e+00 : f32
    %19 = vector.shape_cast %6 : vector<1x1024xi1> to vector<1x1024xi1>
    %20 = vector.broadcast %19 : vector<1x1024xi1> to vector<8x1024xi1>
    %21 = vector.broadcast %cst_10 : f32 to vector<8x1024xf32>
    %22 = arith.select %20, %18, %21 : vector<8x1024xi1>, vector<8x1024xf32>
    %c2_i32_11 = arith.constant 2 : i32
    %23 = tpu.dynamic_rotate %1 by %c2_i32_11 dim 1 : vector<8x1024xf32>, i32 -> vector<8x1024xf32>
    %cst_12 = arith.constant 0.000000e+00 : f32
    %24 = vector.shape_cast %8 : vector<1x1024xi1> to vector<1x1024xi1>
    %25 = vector.broadcast %24 : vector<1x1024xi1> to vector<8x1024xi1>
    %26 = vector.broadcast %cst_12 : f32 to vector<8x1024xf32>
    %27 = arith.select %25, %23, %26 : vector<8x1024xi1>, vector<8x1024xf32>
    %c1_i32_13 = arith.constant 1 : i32
    %28 = tpu.dynamic_rotate %1 by %c1_i32_13 dim 1 : vector<8x1024xf32>, i32 -> vector<8x1024xf32>
    %cst_14 = arith.constant 0.000000e+00 : f32
    %29 = vector.shape_cast %10 : vector<1x1024xi1> to vector<1x1024xi1>
    %30 = vector.broadcast %29 : vector<1x1024xi1> to vector<8x1024xi1>
    %31 = vector.broadcast %cst_14 : f32 to vector<8x1024xf32>
    %32 = arith.select %30, %28, %31 : vector<8x1024xi1>, vector<8x1024xf32>
    %33 = tpu.concatenate %17, %22, %27, %32, %1 in 0 : vector<8x1024xf32>, vector<8x1024xf32>, vector<8x1024xf32>, vector<8x1024xf32>, vector<8x1024xf32> -> vector<40x1024xf32>
    %cst_15 = arith.constant dense<0.000000e+00> : vector<32x1024xf32>
    %34 = tpu.matmul %11, %33, %cst_15 {dimension_numbers = #tpu.dot_dimension_numbers<[1], [0], [0], [1], [0, 0, 1, 1], [], []>} : vector<32x40xf32>, vector<40x1024xf32>, vector<32x1024xf32> -> vector<32x1024xf32>
    %35 = vector.broadcast %12 : vector<32x1xf32> to vector<32x1024xf32>
    %36 = arith.addf %34, %35 : vector<32x1024xf32>
    %cst_16 = arith.constant 0.000000e+00 : f32
    %37 = vector.broadcast %cst_16 : f32 to vector<32x1024xf32>
    %38 = arith.maximumf %36, %37 : vector<32x1024xf32>
    %c0_17 = arith.constant 0 : index
    %c0_18 = arith.constant 0 : index
    %39 = vector.load %arg6[%c0_17, %c0_18] : memref<32x160xf32, #tpu.memory_space<vmem>>, vector<32x160xf32>
    %c0_19 = arith.constant 0 : index
    %c0_20 = arith.constant 0 : index
    %40 = vector.load %arg7[%c0_19, %c0_20] : memref<32x1xf32, #tpu.memory_space<vmem>>, vector<32x1xf32>
    %c4_i32_21 = arith.constant 4 : i32
    %41 = tpu.dynamic_rotate %38 by %c4_i32_21 dim 1 : vector<32x1024xf32>, i32 -> vector<32x1024xf32>
    %cst_22 = arith.constant 0.000000e+00 : f32
    %42 = vector.shape_cast %4 : vector<1x1024xi1> to vector<1x1024xi1>
    %43 = vector.broadcast %42 : vector<1x1024xi1> to vector<32x1024xi1>
    %44 = vector.broadcast %cst_22 : f32 to vector<32x1024xf32>
    %45 = arith.select %43, %41, %44 : vector<32x1024xi1>, vector<32x1024xf32>
    %c3_i32_23 = arith.constant 3 : i32
    %46 = tpu.dynamic_rotate %38 by %c3_i32_23 dim 1 : vector<32x1024xf32>, i32 -> vector<32x1024xf32>
    %cst_24 = arith.constant 0.000000e+00 : f32
    %47 = vector.shape_cast %6 : vector<1x1024xi1> to vector<1x1024xi1>
    %48 = vector.broadcast %47 : vector<1x1024xi1> to vector<32x1024xi1>
    %49 = vector.broadcast %cst_24 : f32 to vector<32x1024xf32>
    %50 = arith.select %48, %46, %49 : vector<32x1024xi1>, vector<32x1024xf32>
    %c2_i32_25 = arith.constant 2 : i32
    %51 = tpu.dynamic_rotate %38 by %c2_i32_25 dim 1 : vector<32x1024xf32>, i32 -> vector<32x1024xf32>
    %cst_26 = arith.constant 0.000000e+00 : f32
    %52 = vector.shape_cast %8 : vector<1x1024xi1> to vector<1x1024xi1>
    %53 = vector.broadcast %52 : vector<1x1024xi1> to vector<32x1024xi1>
    %54 = vector.broadcast %cst_26 : f32 to vector<32x1024xf32>
    %55 = arith.select %53, %51, %54 : vector<32x1024xi1>, vector<32x1024xf32>
    %c1_i32_27 = arith.constant 1 : i32
    %56 = tpu.dynamic_rotate %38 by %c1_i32_27 dim 1 : vector<32x1024xf32>, i32 -> vector<32x1024xf32>
    %cst_28 = arith.constant 0.000000e+00 : f32
    %57 = vector.shape_cast %10 : vector<1x1024xi1> to vector<1x1024xi1>
    %58 = vector.broadcast %57 : vector<1x1024xi1> to vector<32x1024xi1>
    %59 = vector.broadcast %cst_28 : f32 to vector<32x1024xf32>
    %60 = arith.select %58, %56, %59 : vector<32x1024xi1>, vector<32x1024xf32>
    %61 = tpu.concatenate %45, %50, %55, %60, %38 in 0 : vector<32x1024xf32>, vector<32x1024xf32>, vector<32x1024xf32>, vector<32x1024xf32>, vector<32x1024xf32> -> vector<160x1024xf32>
    %cst_29 = arith.constant dense<0.000000e+00> : vector<32x1024xf32>
    %62 = tpu.matmul %39, %61, %cst_29 {dimension_numbers = #tpu.dot_dimension_numbers<[1], [0], [0], [1], [0, 0, 1, 1], [], []>} : vector<32x160xf32>, vector<160x1024xf32>, vector<32x1024xf32> -> vector<32x1024xf32>
    %63 = vector.broadcast %40 : vector<32x1xf32> to vector<32x1024xf32>
    %64 = arith.addf %62, %63 : vector<32x1024xf32>
    %cst_30 = arith.constant 0.000000e+00 : f32
    %65 = vector.broadcast %cst_30 : f32 to vector<32x1024xf32>
    %66 = arith.maximumf %64, %65 : vector<32x1024xf32>
    %c0_31 = arith.constant 0 : index
    %c0_32 = arith.constant 0 : index
    %67 = vector.load %arg8[%c0_31, %c0_32] : memref<32x8xf32, #tpu.memory_space<vmem>>, vector<32x8xf32>
    %cst_33 = arith.constant dense<0.000000e+00> : vector<32x1024xf32>
    %68 = tpu.matmul %67, %1, %cst_33 {dimension_numbers = #tpu.dot_dimension_numbers<[1], [0], [0], [1], [0, 0, 1, 1], [], []>} : vector<32x8xf32>, vector<8x1024xf32>, vector<32x1024xf32> -> vector<32x1024xf32>
    %c0_34 = arith.constant 0 : index
    %c0_35 = arith.constant 0 : index
    %69 = vector.load %arg9[%c0_34, %c0_35] : memref<32x1xf32, #tpu.memory_space<vmem>>, vector<32x1xf32>
    %70 = vector.broadcast %69 : vector<32x1xf32> to vector<32x1024xf32>
    %71 = arith.addf %68, %70 : vector<32x1024xf32>
    %72 = arith.addf %66, %71 : vector<32x1024xf32>
    %cst_36 = arith.constant 0.000000e+00 : f32
    %73 = vector.broadcast %cst_36 : f32 to vector<32x1024xf32>
    %74 = arith.maximumf %72, %73 : vector<32x1024xf32>
    %c8_i32 = arith.constant 8 : i32
    %75 = vector.broadcast %c8_i32 : i32 to vector<1x1024xi32>
    %76 = arith.cmpi sge, %2, %75 : vector<1x1024xi32>
    %c6_i32 = arith.constant 6 : i32
    %77 = vector.broadcast %c6_i32 : i32 to vector<1x1024xi32>
    %78 = arith.cmpi sge, %2, %77 : vector<1x1024xi32>
    %c4_i32_37 = arith.constant 4 : i32
    %79 = vector.broadcast %c4_i32_37 : i32 to vector<1x1024xi32>
    %80 = arith.cmpi sge, %2, %79 : vector<1x1024xi32>
    %c2_i32_38 = arith.constant 2 : i32
    %81 = vector.broadcast %c2_i32_38 : i32 to vector<1x1024xi32>
    %82 = arith.cmpi sge, %2, %81 : vector<1x1024xi32>
    %c0_39 = arith.constant 0 : index
    %c0_40 = arith.constant 0 : index
    %83 = vector.load %arg10[%c0_39, %c0_40] : memref<32x160xf32, #tpu.memory_space<vmem>>, vector<32x160xf32>
    %c0_41 = arith.constant 0 : index
    %c0_42 = arith.constant 0 : index
    %84 = vector.load %arg11[%c0_41, %c0_42] : memref<32x1xf32, #tpu.memory_space<vmem>>, vector<32x1xf32>
    %c8_i32_43 = arith.constant 8 : i32
    %85 = tpu.dynamic_rotate %74 by %c8_i32_43 dim 1 : vector<32x1024xf32>, i32 -> vector<32x1024xf32>
    %cst_44 = arith.constant 0.000000e+00 : f32
    %86 = vector.shape_cast %76 : vector<1x1024xi1> to vector<1x1024xi1>
    %87 = vector.broadcast %86 : vector<1x1024xi1> to vector<32x1024xi1>
    %88 = vector.broadcast %cst_44 : f32 to vector<32x1024xf32>
    %89 = arith.select %87, %85, %88 : vector<32x1024xi1>, vector<32x1024xf32>
    %c6_i32_45 = arith.constant 6 : i32
    %90 = tpu.dynamic_rotate %74 by %c6_i32_45 dim 1 : vector<32x1024xf32>, i32 -> vector<32x1024xf32>
    %cst_46 = arith.constant 0.000000e+00 : f32
    %91 = vector.shape_cast %78 : vector<1x1024xi1> to vector<1x1024xi1>
    %92 = vector.broadcast %91 : vector<1x1024xi1> to vector<32x1024xi1>
    %93 = vector.broadcast %cst_46 : f32 to vector<32x1024xf32>
    %94 = arith.select %92, %90, %93 : vector<32x1024xi1>, vector<32x1024xf32>
    %c4_i32_47 = arith.constant 4 : i32
    %95 = tpu.dynamic_rotate %74 by %c4_i32_47 dim 1 : vector<32x1024xf32>, i32 -> vector<32x1024xf32>
    %cst_48 = arith.constant 0.000000e+00 : f32
    %96 = vector.shape_cast %80 : vector<1x1024xi1> to vector<1x1024xi1>
    %97 = vector.broadcast %96 : vector<1x1024xi1> to vector<32x1024xi1>
    %98 = vector.broadcast %cst_48 : f32 to vector<32x1024xf32>
    %99 = arith.select %97, %95, %98 : vector<32x1024xi1>, vector<32x1024xf32>
    %c2_i32_49 = arith.constant 2 : i32
    %100 = tpu.dynamic_rotate %74 by %c2_i32_49 dim 1 : vector<32x1024xf32>, i32 -> vector<32x1024xf32>
    %cst_50 = arith.constant 0.000000e+00 : f32
    %101 = vector.shape_cast %82 : vector<1x1024xi1> to vector<1x1024xi1>
    %102 = vector.broadcast %101 : vector<1x1024xi1> to vector<32x1024xi1>
    %103 = vector.broadcast %cst_50 : f32 to vector<32x1024xf32>
    %104 = arith.select %102, %100, %103 : vector<32x1024xi1>, vector<32x1024xf32>
    %105 = tpu.concatenate %89, %94, %99, %104, %74 in 0 : vector<32x1024xf32>, vector<32x1024xf32>, vector<32x1024xf32>, vector<32x1024xf32>, vector<32x1024xf32> -> vector<160x1024xf32>
    %cst_51 = arith.constant dense<0.000000e+00> : vector<32x1024xf32>
    %106 = tpu.matmul %83, %105, %cst_51 {dimension_numbers = #tpu.dot_dimension_numbers<[1], [0], [0], [1], [0, 0, 1, 1], [], []>} : vector<32x160xf32>, vector<160x1024xf32>, vector<32x1024xf32> -> vector<32x1024xf32>
    %107 = vector.broadcast %84 : vector<32x1xf32> to vector<32x1024xf32>
    %108 = arith.addf %106, %107 : vector<32x1024xf32>
    %cst_52 = arith.constant 0.000000e+00 : f32
    %109 = vector.broadcast %cst_52 : f32 to vector<32x1024xf32>
    %110 = arith.maximumf %108, %109 : vector<32x1024xf32>
    %c0_53 = arith.constant 0 : index
    %c0_54 = arith.constant 0 : index
    %111 = vector.load %arg12[%c0_53, %c0_54] : memref<32x160xf32, #tpu.memory_space<vmem>>, vector<32x160xf32>
    %c0_55 = arith.constant 0 : index
    %c0_56 = arith.constant 0 : index
    %112 = vector.load %arg13[%c0_55, %c0_56] : memref<32x1xf32, #tpu.memory_space<vmem>>, vector<32x1xf32>
    %c8_i32_57 = arith.constant 8 : i32
    %113 = tpu.dynamic_rotate %110 by %c8_i32_57 dim 1 : vector<32x1024xf32>, i32 -> vector<32x1024xf32>
    %cst_58 = arith.constant 0.000000e+00 : f32
    %114 = vector.shape_cast %76 : vector<1x1024xi1> to vector<1x1024xi1>
    %115 = vector.broadcast %114 : vector<1x1024xi1> to vector<32x1024xi1>
    %116 = vector.broadcast %cst_58 : f32 to vector<32x1024xf32>
    %117 = arith.select %115, %113, %116 : vector<32x1024xi1>, vector<32x1024xf32>
    %c6_i32_59 = arith.constant 6 : i32
    %118 = tpu.dynamic_rotate %110 by %c6_i32_59 dim 1 : vector<32x1024xf32>, i32 -> vector<32x1024xf32>
    %cst_60 = arith.constant 0.000000e+00 : f32
    %119 = vector.shape_cast %78 : vector<1x1024xi1> to vector<1x1024xi1>
    %120 = vector.broadcast %119 : vector<1x1024xi1> to vector<32x1024xi1>
    %121 = vector.broadcast %cst_60 : f32 to vector<32x1024xf32>
    %122 = arith.select %120, %118, %121 : vector<32x1024xi1>, vector<32x1024xf32>
    %c4_i32_61 = arith.constant 4 : i32
    %123 = tpu.dynamic_rotate %110 by %c4_i32_61 dim 1 : vector<32x1024xf32>, i32 -> vector<32x1024xf32>
    %cst_62 = arith.constant 0.000000e+00 : f32
    %124 = vector.shape_cast %80 : vector<1x1024xi1> to vector<1x1024xi1>
    %125 = vector.broadcast %124 : vector<1x1024xi1> to vector<32x1024xi1>
    %126 = vector.broadcast %cst_62 : f32 to vector<32x1024xf32>
    %127 = arith.select %125, %123, %126 : vector<32x1024xi1>, vector<32x1024xf32>
    %c2_i32_63 = arith.constant 2 : i32
    %128 = tpu.dynamic_rotate %110 by %c2_i32_63 dim 1 : vector<32x1024xf32>, i32 -> vector<32x1024xf32>
    %cst_64 = arith.constant 0.000000e+00 : f32
    %129 = vector.shape_cast %82 : vector<1x1024xi1> to vector<1x1024xi1>
    %130 = vector.broadcast %129 : vector<1x1024xi1> to vector<32x1024xi1>
    %131 = vector.broadcast %cst_64 : f32 to vector<32x1024xf32>
    %132 = arith.select %130, %128, %131 : vector<32x1024xi1>, vector<32x1024xf32>
    %133 = tpu.concatenate %117, %122, %127, %132, %110 in 0 : vector<32x1024xf32>, vector<32x1024xf32>, vector<32x1024xf32>, vector<32x1024xf32>, vector<32x1024xf32> -> vector<160x1024xf32>
    %cst_65 = arith.constant dense<0.000000e+00> : vector<32x1024xf32>
    %134 = tpu.matmul %111, %133, %cst_65 {dimension_numbers = #tpu.dot_dimension_numbers<[1], [0], [0], [1], [0, 0, 1, 1], [], []>} : vector<32x160xf32>, vector<160x1024xf32>, vector<32x1024xf32> -> vector<32x1024xf32>
    %135 = vector.broadcast %112 : vector<32x1xf32> to vector<32x1024xf32>
    %136 = arith.addf %134, %135 : vector<32x1024xf32>
    %cst_66 = arith.constant 0.000000e+00 : f32
    %137 = vector.broadcast %cst_66 : f32 to vector<32x1024xf32>
    %138 = arith.maximumf %136, %137 : vector<32x1024xf32>
    %139 = arith.addf %138, %74 : vector<32x1024xf32>
    %cst_67 = arith.constant 0.000000e+00 : f32
    %140 = vector.broadcast %cst_67 : f32 to vector<32x1024xf32>
    %141 = arith.maximumf %139, %140 : vector<32x1024xf32>
    %c0_68 = arith.constant 0 : index
    %c0_69 = arith.constant 0 : index
    %142 = vector.load %arg2[%c0_68, %c0_69] : memref<8x1024xf32, #tpu.memory_space<vmem>>, vector<8x1024xf32>
    %cst_70 = arith.constant dense<0.000000e+00> : vector<8x32xf32>
    %143 = tpu.matmul %142, %141, %cst_70 {dimension_numbers = #tpu.dot_dimension_numbers<[1], [1], [0], [0], [0, 0, 1, 0], [], []>} : vector<8x1024xf32>, vector<32x1024xf32>, vector<8x32xf32> -> vector<8x32xf32>
    %c0_71 = arith.constant 0 : index
    %c0_72 = arith.constant 0 : index
    %144 = vector.load %arg14[%c0_71, %c0_72] : memref<32x128xf32, #tpu.memory_space<vmem>>, vector<32x128xf32>
    %cst_73 = arith.constant dense<0.000000e+00> : vector<8x128xf32>
    %145 = tpu.matmul %143, %144, %cst_73 {dimension_numbers = #tpu.dot_dimension_numbers<[1], [0], [0], [1], [0, 0, 1, 1], [], []>} : vector<8x32xf32>, vector<32x128xf32>, vector<8x128xf32> -> vector<8x128xf32>
    %c0_74 = arith.constant 0 : index
    %c0_75 = arith.constant 0 : index
    %146 = vector.load %arg15[%c0_74, %c0_75] : memref<1x128xf32, #tpu.memory_space<vmem>>, vector<1x128xf32>
    %147 = vector.broadcast %146 : vector<1x128xf32> to vector<8x128xf32>
    %148 = arith.addf %145, %147 : vector<8x128xf32>
    %c0_76 = arith.constant 0 : index
    %c0_77 = arith.constant 0 : index
    %c0_78 = arith.constant 0 : index
    %149 = vector.load %arg16[%c0_76, %c0_77, %c0_78] : memref<1x8x128xf32, #tpu.memory_space<vmem>>, vector<1x8x128xf32>
    %150 = vector.shape_cast %149 : vector<1x8x128xf32> to vector<8x128xf32>
    %151 = vector.shape_cast %148 : vector<8x128xf32> to vector<1x8x128xf32>
    tpu.vector_store %arg16[%c0_76, %c0_77, %c0_78], %151 {strides = array<i32>} : memref<1x8x128xf32, #tpu.memory_space<vmem>>, vector<1x8x128xf32>,
    return
  }
  func.func @transform_0(%arg0: i32) -> (i32, i32, i32) {
    %c0_i32 = arith.constant 0 : i32
    %c0_i32_0 = arith.constant 0 : i32
    %c0_i32_1 = arith.constant 0 : i32
    return %arg0, %c0_i32, %c0_i32_0 : i32, i32, i32
  }
  func.func @transform_1(%arg0: i32) -> (i32, i32) {
    %c0_i32 = arith.constant 0 : i32
    %c0_i32_0 = arith.constant 0 : i32
    %c0_i32_1 = arith.constant 0 : i32
    return %c0_i32, %c0_i32_0 : i32, i32
  }
  func.func @transform_2(%arg0: i32) -> (i32, i32) {
    %c0_i32 = arith.constant 0 : i32
    %c0_i32_0 = arith.constant 0 : i32
    %c0_i32_1 = arith.constant 0 : i32
    return %c0_i32, %c0_i32_0 : i32, i32
  }
  func.func @transform_3(%arg0: i32) -> (i32, i32) {
    %c0_i32 = arith.constant 0 : i32
    %c0_i32_0 = arith.constant 0 : i32
    %c0_i32_1 = arith.constant 0 : i32
    return %c0_i32, %c0_i32_0 : i32, i32
  }
  func.func @transform_4(%arg0: i32) -> (i32, i32) {
    %c0_i32 = arith.constant 0 : i32
    %c0_i32_0 = arith.constant 0 : i32
    %c0_i32_1 = arith.constant 0 : i32
    return %c0_i32, %c0_i32_0 : i32, i32
  }
  func.func @transform_5(%arg0: i32) -> (i32, i32) {
    %c0_i32 = arith.constant 0 : i32
    %c0_i32_0 = arith.constant 0 : i32
    %c0_i32_1 = arith.constant 0 : i32
    return %c0_i32, %c0_i32_0 : i32, i32
  }
  func.func @transform_6(%arg0: i32) -> (i32, i32) {
    %c0_i32 = arith.constant 0 : i32
    %c0_i32_0 = arith.constant 0 : i32
    %c0_i32_1 = arith.constant 0 : i32
    return %c0_i32, %c0_i32_0 : i32, i32
  }
  func.func @transform_7(%arg0: i32) -> (i32, i32) {
    %c0_i32 = arith.constant 0 : i32
    %c0_i32_0 = arith.constant 0 : i32
    %c0_i32_1 = arith.constant 0 : i32
    return %c0_i32, %c0_i32_0 : i32, i32
  }
  func.func @transform_8(%arg0: i32) -> (i32, i32) {
    %c0_i32 = arith.constant 0 : i32
    %c0_i32_0 = arith.constant 0 : i32
    %c0_i32_1 = arith.constant 0 : i32
    return %c0_i32, %c0_i32_0 : i32, i32
  }
  func.func @transform_9(%arg0: i32) -> (i32, i32) {
    %c0_i32 = arith.constant 0 : i32
    %c0_i32_0 = arith.constant 0 : i32
    %c0_i32_1 = arith.constant 0 : i32
    return %c0_i32, %c0_i32_0 : i32, i32
  }
  func.func @transform_10(%arg0: i32) -> (i32, i32) {
    %c0_i32 = arith.constant 0 : i32
    %c0_i32_0 = arith.constant 0 : i32
    %c0_i32_1 = arith.constant 0 : i32
    return %c0_i32, %c0_i32_0 : i32, i32
  }
  func.func @transform_11(%arg0: i32) -> (i32, i32) {
    %c0_i32 = arith.constant 0 : i32
    %c0_i32_0 = arith.constant 0 : i32
    %c0_i32_1 = arith.constant 0 : i32
    return %c0_i32, %c0_i32_0 : i32, i32
  }
  func.func @transform_12(%arg0: i32) -> (i32, i32) {
    %c0_i32 = arith.constant 0 : i32
    %c0_i32_0 = arith.constant 0 : i32
    %c0_i32_1 = arith.constant 0 : i32
    return %c0_i32, %c0_i32_0 : i32, i32
  }
  func.func @transform_13(%arg0: i32) -> (i32, i32) {
    %c0_i32 = arith.constant 0 : i32
    %c0_i32_0 = arith.constant 0 : i32
    %c0_i32_1 = arith.constant 0 : i32
    return %c0_i32, %c0_i32_0 : i32, i32
  }
  func.func @transform_14(%arg0: i32) -> (i32, i32) {
    %c0_i32 = arith.constant 0 : i32
    %c0_i32_0 = arith.constant 0 : i32
    %c0_i32_1 = arith.constant 0 : i32
    return %c0_i32, %c0_i32_0 : i32, i32
  }
  func.func @transform_15(%arg0: i32) -> (i32, i32, i32) {
    %c0_i32 = arith.constant 0 : i32
    %c0_i32_0 = arith.constant 0 : i32
    %c0_i32_1 = arith.constant 0 : i32
    return %arg0, %c0_i32, %c0_i32_0 : i32, i32, i32
  }
}

</mosaic_0001>

<llo_original>
// kernel: forward.1
$region0: #{forward.1}
  #allocation0 [shape = 'u32[]', space=smem, size = 0x4, offset = 0x4, fixed_abs, tag = 'smem constant byte address 0x4 - core index']
  #allocation1 [shape = 'u32[144,128]{1,0:T(1,128)}', space=vmem, size = 0x12000, scoped, tag = 'internal scratch']
  %s0 = inlined_call_operand.vmem [shape: f32[2,8,1024], index: 0, kind: input, shape index: {}]
  %s1 = inlined_call_operand.vmem [shape: f32[8,1024], index: 1, kind: input, shape index: {}]
  %s2 = inlined_call_operand.vmem [shape: s32[1,1024], index: 2, kind: input, shape index: {}]
  %s3 = inlined_call_operand.vmem [shape: f32[32,40], index: 3, kind: input, shape index: {}]
  %s4 = inlined_call_operand.vmem [shape: f32[32,1], index: 4, kind: input, shape index: {}]
  %s5 = inlined_call_operand.vmem [shape: f32[32,160], index: 5, kind: input, shape index: {}]
  %s6 = inlined_call_operand.vmem [shape: f32[32,1], index: 6, kind: input, shape index: {}]
  %s7 = inlined_call_operand.vmem [shape: f32[32,8], index: 7, kind: input, shape index: {}]
  %s8 = inlined_call_operand.vmem [shape: f32[32,1], index: 8, kind: input, shape index: {}]
  %s9 = inlined_call_operand.vmem [shape: f32[32,160], index: 9, kind: input, shape index: {}]
  %s10 = inlined_call_operand.vmem [shape: f32[32,1], index: 10, kind: input, shape index: {}]
  %s11 = inlined_call_operand.vmem [shape: f32[32,160], index: 11, kind: input, shape index: {}]
  %s12 = inlined_call_operand.vmem [shape: f32[32,1], index: 12, kind: input, shape index: {}]
  %s13 = inlined_call_operand.vmem [shape: f32[32,128], index: 13, kind: input, shape index: {}]
  %s14 = inlined_call_operand.vmem [shape: f32[1,128], index: 14, kind: input, shape index: {}]
  %s15 = inlined_call_operand.vmem [shape: f32[2,8,128], index: 15, kind: output, shape index: {}]
  %s16 = sld [smem:[#allocation0]]
  $region93: #{forward.1} parent=0
    _
  %s18 = ssub.s32 1, %s16
  %s19 = scalar_select 0, %s18, %s16
  loop: start=0, step=1, limit=4
  $region2: #{forward.1} parent=0 // loop_pre_header
    _
  $region3: #{forward.1} parent=0 // loop_header
    %s21 = sphi 0, %s25
    %p22 = scmp.ge.s32.totalorder %s21, 4
    %s31 = sphi 0, %s33
    %s34 = sphi 0, %s31
    %s35 = sphi 0, %s34
    %s51 = sphi 0, %s35
    %s55 = sphi 0, %s55
    %s57 = sphi 0, %s55
    %s58 = sphi 0, %s57
    %s72 = sphi 0, %s58
    %s76 = sphi 0, %s76
    %s78 = sphi 0, %s76
    %s79 = sphi 0, %s78
    %s93 = sphi 0, %s79
    %s97 = sphi 0, %s97
    %s99 = sphi 0, %s97
    %s100 = sphi 0, %s99
    %s114 = sphi 0, %s100
    %s118 = sphi 0, %s118
    %s120 = sphi 0, %s118
    %s121 = sphi 0, %s120
    %s135 = sphi 0, %s121
    %s139 = sphi 0, %s139
    %s141 = sphi 0, %s139
    %s142 = sphi 0, %s141
    %s156 = sphi 0, %s142
    %s160 = sphi 0, %s160
    %s162 = sphi 0, %s160
    %s163 = sphi 0, %s162
    %s177 = sphi 0, %s163
    %s181 = sphi 0, %s181
    %s183 = sphi 0, %s181
    %s184 = sphi 0, %s183
    %s198 = sphi 0, %s184
    %s202 = sphi 0, %s202
    %s204 = sphi 0, %s202
    %s205 = sphi 0, %s204
    %s219 = sphi 0, %s205
    %s223 = sphi 0, %s223
    %s225 = sphi 0, %s223
    %s226 = sphi 0, %s225
    %s240 = sphi 0, %s226
    %s244 = sphi 0, %s244
    %s246 = sphi 0, %s244
    %s247 = sphi 0, %s246
    %s261 = sphi 0, %s247
    %s265 = sphi 0, %s265
    %s267 = sphi 0, %s265
    %s268 = sphi 0, %s267
    %s282 = sphi 0, %s268
    %s286 = sphi 0, %s286
    %s288 = sphi 0, %s286
    %s289 = sphi 0, %s288
    %s303 = sphi 0, %s289
    %s307 = sphi 0, %s307
    %s309 = sphi 0, %s307
    %s310 = sphi 0, %s309
    %s324 = sphi 0, %s310
    %s328 = sphi 0, %s328
    %s330 = sphi 0, %s328
    %s331 = sphi 0, %s330
    %s345 = sphi 0, %s331
    %s351 = sphi 0, %s353
    %s354 = sphi 0, %s351
    %s355 = sphi 0, %s354
    %s371 = sphi 0, %s355
  $region4: #{forward.1} parent=0 // loop_header_branch
    %24 = sbr.rel (%p22) target = $region8
  $region5: #{forward.1} parent=0 // loop_body
    %s26 = ssub.s32 %s21, 1
    %s27 = ssub.s32 %s21, 2
    %s28 = sadd.s32 %s21, 1
    %s29 = ssub.s32 %s21, %s28
    %p30 = scmp.eq.s32.totalorder %s29, 0
    %s32 = sadd.s32 %s31, 1
    %s33 = scalar_select %p30, %s31, %s32
    %p36 = pneg %p30
    %p37 = scmp.eq.s32.totalorder %s21, 1
    %p38 = por %p36, %p37
    %p39 = scmp.ne.s32.totalorder %s31, %s34
    %p40 = scmp.eq.s32.totalorder %s21, 0
    %p41 = por %p39, %p40
    %p42 = scmp.ne.s32.totalorder %s31, %s34
    %p43 = scmp.eq.s32.totalorder %s26, 1
    %p44 = por %p42, %p43
    %p45 = scmp.ne.s32.totalorder %s34, %s35
    %p46 = scmp.eq.s32.totalorder %s26, 0
    %p47 = por %p45, %p46
    %p48 = scmp.ne.s32.totalorder %s34, %s35
    %p49 = scmp.eq.s32.totalorder %s27, 1
    %p50 = por %p48, %p49
    %p52 = scmp.ne.s32.totalorder %s35, %s51
    %p53 = scmp.eq.s32.totalorder %s27, 0
    %p54 = por %p52, %p53
    %s56 = sadd.s32 %s55, 1
    %p59 = scmp.eq.s32.totalorder %s21, 1
    %p60 = scmp.ne.s32.totalorder %s55, %s57
    %p61 = scmp.eq.s32.totalorder %s21, 0
    %p62 = por %p60, %p61
    %p63 = scmp.ne.s32.totalorder %s55, %s57
    %p64 = scmp.eq.s32.totalorder %s26, 1
    %p65 = por %p63, %p64
    %p66 = scmp.ne.s32.totalorder %s57, %s58
    %p67 = scmp.eq.s32.totalorder %s26, 0
    %p68 = por %p66, %p67
    %p69 = scmp.ne.s32.totalorder %s57, %s58
    %p70 = scmp.eq.s32.totalorder %s27, 1
    %p71 = por %p69, %p70
    %p73 = scmp.ne.s32.totalorder %s58, %s72
    %p74 = scmp.eq.s32.totalorder %s27, 0
    %p75 = por %p73, %p74
    %s77 = sadd.s32 %s76, 1
    %p80 = scmp.eq.s32.totalorder %s21, 1
    %p81 = scmp.ne.s32.totalorder %s76, %s78
    %p82 = scmp.eq.s32.totalorder %s21, 0
    %p83 = por %p81, %p82
    %p84 = scmp.ne.s32.totalorder %s76, %s78
    %p85 = scmp.eq.s32.totalorder %s26, 1
    %p86 = por %p84, %p85
    %p87 = scmp.ne.s32.totalorder %s78, %s79
    %p88 = scmp.eq.s32.totalorder %s26, 0
    %p89 = por %p87, %p88
    %p90 = scmp.ne.s32.totalorder %s78, %s79
    %p91 = scmp.eq.s32.totalorder %s27, 1
    %p92 = por %p90, %p91
    %p94 = scmp.ne.s32.totalorder %s79, %s93
    %p95 = scmp.eq.s32.totalorder %s27, 0
    %p96 = por %p94, %p95
    %s98 = sadd.s32 %s97, 1
    %p101 = scmp.eq.s32.totalorder %s21, 1
    %p102 = scmp.ne.s32.totalorder %s97, %s99
    %p103 = scmp.eq.s32.totalorder %s21, 0
    %p104 = por %p102, %p103
    %p105 = scmp.ne.s32.totalorder %s97, %s99
    %p106 = scmp.eq.s32.totalorder %s26, 1
    %p107 = por %p105, %p106
    %p108 = scmp.ne.s32.totalorder %s99, %s100
    %p109 = scmp.eq.s32.totalorder %s26, 0
    %p110 = por %p108, %p109
    %p111 = scmp.ne.s32.totalorder %s99, %s100
    %p112 = scmp.eq.s32.totalorder %s27, 1
    %p113 = por %p111, %p112
    %p115 = scmp.ne.s32.totalorder %s100, %s114
    %p116 = scmp.eq.s32.totalorder %s27, 0
    %p117 = por %p115, %p116
    %s119 = sadd.s32 %s118, 1
    %p122 = scmp.eq.s32.totalorder %s21, 1
    %p123 = scmp.ne.s32.totalorder %s118, %s120
    %p124 = scmp.eq.s32.totalorder %s21, 0
    %p125 = por %p123, %p124
    %p126 = scmp.ne.s32.totalorder %s118, %s120
    %p127 = scmp.eq.s32.totalorder %s26, 1
    %p128 = por %p126, %p127
    %p129 = scmp.ne.s32.totalorder %s120, %s121
    %p130 = scmp.eq.s32.totalorder %s26, 0
    %p131 = por %p129, %p130
    %p132 = scmp.ne.s32.totalorder %s120, %s121
    %p133 = scmp.eq.s32.totalorder %s27, 1
    %p134 = por %p132, %p133
    %p136 = scmp.ne.s32.totalorder %s121, %s135
    %p137 = scmp.eq.s32.totalorder %s27, 0
    %p138 = por %p136, %p137
    %s140 = sadd.s32 %s139, 1
    %p143 = scmp.eq.s32.totalorder %s21, 1
    %p144 = scmp.ne.s32.totalorder %s139, %s141
    %p145 = scmp.eq.s32.totalorder %s21, 0
    %p146 = por %p144, %p145
    %p147 = scmp.ne.s32.totalorder %s139, %s141
    %p148 = scmp.eq.s32.totalorder %s26, 1
    %p149 = por %p147, %p148
    %p150 = scmp.ne.s32.totalorder %s141, %s142
    %p151 = scmp.eq.s32.totalorder %s26, 0
    %p152 = por %p150, %p151
    %p153 = scmp.ne.s32.totalorder %s141, %s142
    %p154 = scmp.eq.s32.totalorder %s27, 1
    %p155 = por %p153, %p154
    %p157 = scmp.ne.s32.totalorder %s142, %s156
    %p158 = scmp.eq.s32.totalorder %s27, 0
    %p159 = por %p157, %p158
    %s161 = sadd.s32 %s160, 1
    %p164 = scmp.eq.s32.totalorder %s21, 1
    %p165 = scmp.ne.s32.totalorder %s160, %s162
    %p166 = scmp.eq.s32.totalorder %s21, 0
    %p167 = por %p165, %p166
    %p168 = scmp.ne.s32.totalorder %s160, %s162
    %p169 = scmp.eq.s32.totalorder %s26, 1
    %p170 = por %p168, %p169
    %p171 = scmp.ne.s32.totalorder %s162, %s163
    %p172 = scmp.eq.s32.totalorder %s26, 0
    %p173 = por %p171, %p172
    %p174 = scmp.ne.s32.totalorder %s162, %s163
    %p175 = scmp.eq.s32.totalorder %s27, 1
    %p176 = por %p174, %p175
    %p178 = scmp.ne.s32.totalorder %s163, %s177
    %p179 = scmp.eq.s32.totalorder %s27, 0
    %p180 = por %p178, %p179
    %s182 = sadd.s32 %s181, 1
    %p185 = scmp.eq.s32.totalorder %s21, 1
    %p186 = scmp.ne.s32.totalorder %s181, %s183
    %p187 = scmp.eq.s32.totalorder %s21, 0
    %p188 = por %p186, %p187
    %p189 = scmp.ne.s32.totalorder %s181, %s183
    %p190 = scmp.eq.s32.totalorder %s26, 1
    %p191 = por %p189, %p190
    %p192 = scmp.ne.s32.totalorder %s183, %s184
    %p193 = scmp.eq.s32.totalorder %s26, 0
    %p194 = por %p192, %p193
    %p195 = scmp.ne.s32.totalorder %s183, %s184
    %p196 = scmp.eq.s32.totalorder %s27, 1
    %p197 = por %p195, %p196
    %p199 = scmp.ne.s32.totalorder %s184, %s198
    %p200 = scmp.eq.s32.totalorder %s27, 0
    %p201 = por %p199, %p200
    %s203 = sadd.s32 %s202, 1
    %p206 = scmp.eq.s32.totalorder %s21, 1
    %p207 = scmp.ne.s32.totalorder %s202, %s204
    %p208 = scmp.eq.s32.totalorder %s21, 0
    %p209 = por %p207, %p208
    %p210 = scmp.ne.s32.totalorder %s202, %s204
    %p211 = scmp.eq.s32.totalorder %s26, 1
    %p212 = por %p210, %p211
    %p213 = scmp.ne.s32.totalorder %s204, %s205
    %p214 = scmp.eq.s32.totalorder %s26, 0
    %p215 = por %p213, %p214
    %p216 = scmp.ne.s32.totalorder %s204, %s205
    %p217 = scmp.eq.s32.totalorder %s27, 1
    %p218 = por %p216, %p217
    %p220 = scmp.ne.s32.totalorder %s205, %s219
    %p221 = scmp.eq.s32.totalorder %s27, 0
    %p222 = por %p220, %p221
    %s224 = sadd.s32 %s223, 1
    %p227 = scmp.eq.s32.totalorder %s21, 1
    %p228 = scmp.ne.s32.totalorder %s223, %s225
    %p229 = scmp.eq.s32.totalorder %s21, 0
    %p230 = por %p228, %p229
    %p231 = scmp.ne.s32.totalorder %s223, %s225
    %p232 = scmp.eq.s32.totalorder %s26, 1
    %p233 = por %p231, %p232
    %p234 = scmp.ne.s32.totalorder %s225, %s226
    %p235 = scmp.eq.s32.totalorder %s26, 0
    %p236 = por %p234, %p235
    %p237 = scmp.ne.s32.totalorder %s225, %s226
    %p238 = scmp.eq.s32.totalorder %s27, 1
    %p239 = por %p237, %p238
    %p241 = scmp.ne.s32.totalorder %s226, %s240
    %p242 = scmp.eq.s32.totalorder %s27, 0
    %p243 = por %p241, %p242
    %s245 = sadd.s32 %s244, 1
    %p248 = scmp.eq.s32.totalorder %s21, 1
    %p249 = scmp.ne.s32.totalorder %s244, %s246
    %p250 = scmp.eq.s32.totalorder %s21, 0
    %p251 = por %p249, %p250
    %p252 = scmp.ne.s32.totalorder %s244, %s246
    %p253 = scmp.eq.s32.totalorder %s26, 1
    %p254 = por %p252, %p253
    %p255 = scmp.ne.s32.totalorder %s246, %s247
    %p256 = scmp.eq.s32.totalorder %s26, 0
    %p257 = por %p255, %p256
    %p258 = scmp.ne.s32.totalorder %s246, %s247
    %p259 = scmp.eq.s32.totalorder %s27, 1
    %p260 = por %p258, %p259
    %p262 = scmp.ne.s32.totalorder %s247, %s261
    %p263 = scmp.eq.s32.totalorder %s27, 0
    %p264 = por %p262, %p263
    %s266 = sadd.s32 %s265, 1
    %p269 = scmp.eq.s32.totalorder %s21, 1
    %p270 = scmp.ne.s32.totalorder %s265, %s267
    %p271 = scmp.eq.s32.totalorder %s21, 0
    %p272 = por %p270, %p271
    %p273 = scmp.ne.s32.totalorder %s265, %s267
    %p274 = scmp.eq.s32.totalorder %s26, 1
    %p275 = por %p273, %p274
    %p276 = scmp.ne.s32.totalorder %s267, %s268
    %p277 = scmp.eq.s32.totalorder %s26, 0
    %p278 = por %p276, %p277
    %p279 = scmp.ne.s32.totalorder %s267, %s268
    %p280 = scmp.eq.s32.totalorder %s27, 1
    %p281 = por %p279, %p280
    %p283 = scmp.ne.s32.totalorder %s268, %s282
    %p284 = scmp.eq.s32.totalorder %s27, 0
    %p285 = por %p283, %p284
    %s287 = sadd.s32 %s286, 1
    %p290 = scmp.eq.s32.totalorder %s21, 1
    %p291 = scmp.ne.s32.totalorder %s286, %s288
    %p292 = scmp.eq.s32.totalorder %s21, 0
    %p293 = por %p291, %p292
    %p294 = scmp.ne.s32.totalorder %s286, %s288
    %p295 = scmp.eq.s32.totalorder %s26, 1
    %p296 = por %p294, %p295
    %p297 = scmp.ne.s32.totalorder %s288, %s289
    %p298 = scmp.eq.s32.totalorder %s26, 0
    %p299 = por %p297, %p298
    %p300 = scmp.ne.s32.totalorder %s288, %s289
    %p301 = scmp.eq.s32.totalorder %s27, 1
    %p302 = por %p300, %p301
    %p304 = scmp.ne.s32.totalorder %s289, %s303
    %p305 = scmp.eq.s32.totalorder %s27, 0
    %p306 = por %p304, %p305
    %s308 = sadd.s32 %s307, 1
    %p311 = scmp.eq.s32.totalorder %s21, 1
    %p312 = scmp.ne.s32.totalorder %s307, %s309
    %p313 = scmp.eq.s32.totalorder %s21, 0
    %p314 = por %p312, %p313
    %p315 = scmp.ne.s32.totalorder %s307, %s309
    %p316 = scmp.eq.s32.totalorder %s26, 1
    %p317 = por %p315, %p316
    %p318 = scmp.ne.s32.totalorder %s309, %s310
    %p319 = scmp.eq.s32.totalorder %s26, 0
    %p320 = por %p318, %p319
    %p321 = scmp.ne.s32.totalorder %s309, %s310
    %p322 = scmp.eq.s32.totalorder %s27, 1
    %p323 = por %p321, %p322
    %p325 = scmp.ne.s32.totalorder %s310, %s324
    %p326 = scmp.eq.s32.totalorder %s27, 0
    %p327 = por %p325, %p326
    %s329 = sadd.s32 %s328, 1
    %p332 = scmp.eq.s32.totalorder %s21, 1
    %p333 = scmp.ne.s32.totalorder %s328, %s330
    %p334 = scmp.eq.s32.totalorder %s21, 0
    %p335 = por %p333, %p334
    %p336 = scmp.ne.s32.totalorder %s328, %s330
    %p337 = scmp.eq.s32.totalorder %s26, 1
    %p338 = por %p336, %p337
    %p339 = scmp.ne.s32.totalorder %s330, %s331
    %p340 = scmp.eq.s32.totalorder %s26, 0
    %p341 = por %p339, %p340
    %p342 = scmp.ne.s32.totalorder %s330, %s331
    %p343 = scmp.eq.s32.totalorder %s27, 1
    %p344 = por %p342, %p343
    %p346 = scmp.ne.s32.totalorder %s331, %s345
    %p347 = scmp.eq.s32.totalorder %s27, 0
    %p348 = por %p346, %p347
    %s349 = ssub.s32 %s21, %s28
    %p350 = scmp.eq.s32.totalorder %s349, 0
    %s352 = sadd.s32 %s351, 1
    %s353 = scalar_select %p350, %s351, %s352
    %p356 = pneg %p350
    %p357 = scmp.eq.s32.totalorder %s21, 1
    %p358 = por %p356, %p357
    %p359 = scmp.ne.s32.totalorder %s351, %s354
    %p360 = scmp.eq.s32.totalorder %s21, 0
    %p361 = por %p359, %p360
    %p362 = scmp.ne.s32.totalorder %s351, %s354
    %p363 = scmp.eq.s32.totalorder %s26, 1
    %p364 = por %p362, %p363
    %p365 = scmp.ne.s32.totalorder %s354, %s355
    %p366 = scmp.eq.s32.totalorder %s26, 0
    %p367 = por %p365, %p366
    %p368 = scmp.ne.s32.totalorder %s354, %s355
    %p369 = scmp.eq.s32.totalorder %s27, 1
    %p370 = por %p368, %p369
    %p372 = scmp.ne.s32.totalorder %s355, %s371
    %p373 = scmp.eq.s32.totalorder %s27, 0
    %p374 = por %p372, %p373
    %p375 = scmp.le.s32.totalorder 1, %s21
    %p376 = scmp.lt.s32.totalorder %s21, 3
    %p377 = pnand %p375, %p376
    %p378 = pneg %p377
    // Predicated region
    $region9: #{forward.1} parent=5 // pred_check
      _
    $region10: #{forward.1} parent=5 // pred_check_branch
      %380 = sbr.rel (%p377) target = $region12
    $region11: #{forward.1} parent=5 // pred_region
      %s381 = ssub.s32 %s21, 1
      // Predicated region
      $region13: #{forward.1} parent=11 // pred_check
        %p382 = pneg %p68
      $region14: #{forward.1} parent=11 // pred_check_branch
        %384 = sbr.rel (%p382) target = $region16
      $region15: #{forward.1} parent=11 // pred_region
        _
      $region16: #{forward.1} parent=11 // pred_fallthru
        _
      // Predicated region
      $region17: #{forward.1} parent=11 // pred_check
        %p385 = pneg %p89
      $region18: #{forward.1} parent=11 // pred_check_branch
        %387 = sbr.rel (%p385) target = $region20
      $region19: #{forward.1} parent=11 // pred_region
        _
      $region20: #{forward.1} parent=11 // pred_fallthru
        _
      // Predicated region
      $region21: #{forward.1} parent=11 // pred_check
        %p388 = pneg %p110
      $region22: #{forward.1} parent=11 // pred_check_branch
        %390 = sbr.rel (%p388) target = $region24
      $region23: #{forward.1} parent=11 // pred_region
        _
      $region24: #{forward.1} parent=11 // pred_fallthru
        _
      // Predicated region
      $region25: #{forward.1} parent=11 // pred_check
        %p391 = pneg %p131
      $region26: #{forward.1} parent=11 // pred_check_branch
        %393 = sbr.rel (%p391) target = $region28
      $region27: #{forward.1} parent=11 // pred_region
        _
      $region28: #{forward.1} parent=11 // pred_fallthru
        _
      // Predicated region
      $region29: #{forward.1} parent=11 // pred_check
        %p394 = pneg %p152
      $region30: #{forward.1} parent=11 // pred_check_branch
        %396 = sbr.rel (%p394) target = $region32
      $region31: #{forward.1} parent=11 // pred_region
        _
      $region32: #{forward.1} parent=11 // pred_fallthru
        _
      // Predicated region
      $region33: #{forward.1} parent=11 // pred_check
        %p397 = pneg %p173
      $region34: #{forward.1} parent=11 // pred_check_branch
        %399 = sbr.rel (%p397) target = $region36
      $region35: #{forward.1} parent=11 // pred_region
        _
      $region36: #{forward.1} parent=11 // pred_fallthru
        _
      // Predicated region
      $region37: #{forward.1} parent=11 // pred_check
        %p400 = pneg %p194
      $region38: #{forward.1} parent=11 // pred_check_branch
        %402 = sbr.rel (%p400) target = $region40
      $region39: #{forward.1} parent=11 // pred_region
        _
      $region40: #{forward.1} parent=11 // pred_fallthru
        _
      // Predicated region
      $region41: #{forward.1} parent=11 // pred_check
        %p403 = pneg %p215
      $region42: #{forward.1} parent=11 // pred_check_branch
        %405 = sbr.rel (%p403) target = $region44
      $region43: #{forward.1} parent=11 // pred_region
        _
      $region44: #{forward.1} parent=11 // pred_fallthru
        _
      // Predicated region
      $region45: #{forward.1} parent=11 // pred_check
        %p406 = pneg %p236
      $region46: #{forward.1} parent=11 // pred_check_branch
        %408 = sbr.rel (%p406) target = $region48
      $region47: #{forward.1} parent=11 // pred_region
        _
      $region48: #{forward.1} parent=11 // pred_fallthru
        _
      // Predicated region
      $region49: #{forward.1} parent=11 // pred_check
        %p409 = pneg %p257
      $region50: #{forward.1} parent=11 // pred_check_branch
        %411 = sbr.rel (%p409) target = $region52
      $region51: #{forward.1} parent=11 // pred_region
        _
      $region52: #{forward.1} parent=11 // pred_fallthru
        _
      // Predicated region
      $region53: #{forward.1} parent=11 // pred_check
        %p412 = pneg %p278
      $region54: #{forward.1} parent=11 // pred_check_branch
        %414 = sbr.rel (%p412) target = $region56
      $region55: #{forward.1} parent=11 // pred_region
        _
      $region56: #{forward.1} parent=11 // pred_fallthru
        _
      // Predicated region
      $region57: #{forward.1} parent=11 // pred_check
        %p415 = pneg %p299
      $region58: #{forward.1} parent=11 // pred_check_branch
        %417 = sbr.rel (%p415) target = $region60
      $region59: #{forward.1} parent=11 // pred_region
        _
      $region60: #{forward.1} parent=11 // pred_fallthru
        _
      // Predicated region
      $region61: #{forward.1} parent=11 // pred_check
        %p418 = pneg %p320
      $region62: #{forward.1} parent=11 // pred_check_branch
        %420 = sbr.rel (%p418) target = $region64
      $region63: #{forward.1} parent=11 // pred_region
        _
      $region64: #{forward.1} parent=11 // pred_fallthru
        _
      // Predicated region
      $region65: #{forward.1} parent=11 // pred_check
        %p421 = pneg %p341
      $region66: #{forward.1} parent=11 // pred_check_branch
        %423 = sbr.rel (%p421) target = $region68
      $region67: #{forward.1} parent=11 // pred_region
        _
      $region68: #{forward.1} parent=11 // pred_fallthru
        _
    $region12: #{forward.1} parent=5 // pred_fallthru
      _
    %p424 = scmp.lt.s32.totalorder %s21, 2
    // Predicated region
    $region69: #{forward.1} parent=5 // pred_check
      %p425 = pneg %p424
    $region70: #{forward.1} parent=5 // pred_check_branch
      %427 = sbr.rel (%p425) target = $region72
    $region71: #{forward.1} parent=5 // pred_region
      // Predicated region
      $region73: #{forward.1} parent=71 // pred_check
        %p428 = pneg %p41
      $region74: #{forward.1} parent=71 // pred_check_branch
        %430 = sbr.rel (%p428) target = $region76
      $region75: #{forward.1} parent=71 // pred_region
        %p431 = scmp.lt.s32.totalorder %s21, 1
        %s432 = scalar_select %p431, %s21, 1
        %s433 = smul.addr %s432, 8
        %s434 = smul.addr %s433, 8
        %s435 = scalar_lea.vmem %s0, %s434
      $region76: #{forward.1} parent=71 // pred_fallthru
        _
    $region72: #{forward.1} parent=5 // pred_fallthru
      _
    %p436 = scmp.le.s32.totalorder 1, %s21
    %p437 = scmp.lt.s32.totalorder %s21, 3
    %p438 = pnand %p436, %p437
    %p439 = pneg %p438
    // Predicated region
    $region77: #{forward.1} parent=5 // pred_check
      _
    $region78: #{forward.1} parent=5 // pred_check_branch
      %441 = sbr.rel (%p438) target = $region80
    $region79: #{forward.1} parent=5 // pred_region
      %s442 = ssub.s32 %s21, 1
      %p443 = scmp.lt.s32.totalorder %s26, 1
      %s444 = scalar_select %p443, %s26, 1
      %s445 = smul.addr %s444, 8
      %s446 = smul.addr %s445, 8
      %s447 = scalar_lea.vmem %s0, %s446
      %p448 = pneg %p47
      %p449 = pneg %p44
      %p450 = pneg %p68
      %p451 = pneg %p65
      %p452 = pneg %p89
      %p453 = pneg %p86
      %p454 = pneg %p110
      %p455 = pneg %p107
      %p456 = pneg %p131
      %p457 = pneg %p128
      %p458 = pneg %p152
      %p459 = pneg %p149
      %p460 = pneg %p173
      %p461 = pneg %p170
      %p462 = pneg %p194
      %p463 = pneg %p191
      %p464 = pneg %p215
      %p465 = pneg %p212
      %p466 = pneg %p236
      %p467 = pneg %p233
      %p468 = pneg %p257
      %p469 = pneg %p254
      %p470 = pneg %p278
      %p471 = pneg %p275
      %p472 = pneg %p299
      %p473 = pneg %p296
      %p474 = pneg %p320
      %p475 = pneg %p317
      %p476 = pneg %p341
      %p477 = pneg %p338
      %p478 = pneg %p367
      %p479 = pneg %p364
      %p480 = scmp.lt.s32.totalorder %s26, 1
      %s481 = scalar_select %p480, %s26, 1
      %s482 = smul.addr %s481, 8
      %s483 = scalar_lea.vmem %s15, %s482
      %p484 = scmp.lt.s32.totalorder %s26, 1
      %s485 = scalar_select %p484, %s26, 1
      %s486 = smul.addr %s485, 8
      %s487 = smul.addr %s486, 8
      %s488 = scalar_lea.vmem %s0, %s487
      %p489 = scmp.lt.s32.totalorder %s26, 1
      %s490 = scalar_select %p489, %s26, 1
      %s491 = smul.addr %s490, 8
      %s492 = scalar_lea.vmem %s15, %s491
      %v493 = vld [vmem:[%s488] sm:$0xff]
      %v494 = vld [vmem:[%s488 + $0x8] sm:$0xff]
      %v495 = vld [vmem:[%s488 + $0x10] sm:$0xff]
      %v496 = vld [vmem:[%s488 + $0x18] sm:$0xff]
      %v497 = vld [vmem:[%s488 + $0x20] sm:$0xff]
      %v498 = vld [vmem:[%s488 + $0x28] sm:$0xff]
      %v499 = vld [vmem:[%s488 + $0x30] sm:$0xff]
      %v500 = vld [vmem:[%s488 + $0x38] sm:$0xff]
      %v501 = vld [vmem:[%s2] sm:$0xff]
      %vm502 = vcmp.ge.s32.totalorder %v501, 4
      %vm503 = vcmp.ge.s32.totalorder %v501, 3
      %vm504 = vcmp.ge.s32.totalorder %v501, 2
      %vm505 = vcmp.ge.s32.totalorder %v501, 1
      %v506 = vld [vmem:[%s3] sm:$0xff]
      %v507 = vld [vmem:[%s3 + $0x8] sm:$0xff]
      %v508 = vld [vmem:[%s3 + $0x10] sm:$0xff]
      %v509 = vld [vmem:[%s3 + $0x18] sm:$0xff]
      %v510 = vld [vmem:[%s4] sm:$0xff]
      %v511 = vld [vmem:[%s4 + $0x8] sm:$0xff]
      %v512 = vld [vmem:[%s4 + $0x10] sm:$0xff]
      %v513 = vld [vmem:[%s4 + $0x18] sm:$0xff]
      %514 = vrot.lane.b32.xlu0 %v493, 4
      %v515 = vpop.permute.xlu0 %514
      %516 = vrot.lane.b32.xlu0 %v494, 4
      %v517 = vpop.permute.xlu0 %516
      %518 = vrot.lane.b32.xlu0 %v495, 4
      %v519 = vpop.permute.xlu0 %518
      %520 = vrot.lane.b32.xlu0 %v496, 4
      %v521 = vpop.permute.xlu0 %520
      %522 = vrot.lane.b32.xlu0 %v497, 4
      %v523 = vpop.permute.xlu0 %522
      %524 = vrot.lane.b32.xlu0 %v498, 4
      %v525 = vpop.permute.xlu0 %524
      %526 = vrot.lane.b32.xlu0 %v499, 4
      %v527 = vpop.permute.xlu0 %526
      %528 = vrot.lane.b32.xlu0 %v500, 4
      %v529 = vpop.permute.xlu0 %528
      %v530 = vlaneseq
      %v531 = vand.u32 %v530, 127
      %vm532 = vcmp.lt.s32.totalorder %v531, 4
      %v533 = vsel %vm532, %v527, %v529
      %v534 = vsel %vm532, %v525, %v527
      %v535 = vsel %vm532, %v523, %v525
      %v536 = vsel %vm532, %v521, %v523
      %v537 = vsel %vm532, %v519, %v521
      %v538 = vsel %vm532, %v517, %v519
      %v539 = vsel %vm532, %v515, %v517
      %v540 = vsel %vm532, %v529, %v515
      %v541 = vsel %vm502, 1, 0
      %v542 = vlaneseq
      %v543 = vshrl.u32 %v542, 7
      %v544 = vsub.s32 0, %v543
      %v545 = vrot.slane %v541, %v544
      %v546 = vlaneseq
      %v547 = vshrl.u32 %v546, 7
      %v548 = vsub.s32 1, %v547
      %v549 = vrot.slane %v541, %v548
      %v550 = vlaneseq
      %v551 = vshrl.u32 %v550, 7
      %v552 = vsub.s32 2, %v551
      %v553 = vrot.slane %v541, %v552
      %v554 = vlaneseq
      %v555 = vshrl.u32 %v554, 7
      %v556 = vsub.s32 3, %v555
      %v557 = vrot.slane %v541, %v556
      %v558 = vlaneseq
      %v559 = vshrl.u32 %v558, 7
      %v560 = vsub.s32 4, %v559
      %v561 = vrot.slane %v541, %v560
      %v562 = vlaneseq
      %v563 = vshrl.u32 %v562, 7
      %v564 = vsub.s32 5, %v563
      %v565 = vrot.slane %v541, %v564
      %v566 = vlaneseq
      %v567 = vshrl.u32 %v566, 7
      %v568 = vsub.s32 6, %v567
      %v569 = vrot.slane %v541, %v568
      %v570 = vlaneseq
      %v571 = vshrl.u32 %v570, 7
      %v572 = vsub.s32 7, %v571
      %v573 = vrot.slane %v541, %v572
      %vm574 = vcmp.eq.s32.totalorder %v545, 1
      %vm575 = vcmp.eq.s32.totalorder %v549, 1
      %vm576 = vcmp.eq.s32.totalorder %v553, 1
      %vm577 = vcmp.eq.s32.totalorder %v557, 1
      %vm578 = vcmp.eq.s32.totalorder %v561, 1
      %vm579 = vcmp.eq.s32.totalorder %v565, 1
      %vm580 = vcmp.eq.s32.totalorder %v569, 1
      %vm581 = vcmp.eq.s32.totalorder %v573, 1
      %v582 = vsel %vm574, %v540, 0.0
      %v583 = vsel %vm575, %v539, 0.0
      %v584 = vsel %vm576, %v538, 0.0
      %v585 = vsel %vm577, %v537, 0.0
      %v586 = vsel %vm578, %v536, 0.0
      %v587 = vsel %vm579, %v535, 0.0
      %v588 = vsel %vm580, %v534, 0.0
      %v589 = vsel %vm581, %v533, 0.0
      %590 = vrot.lane.b32.xlu0 %v493, 3
      %v591 = vpop.permute.xlu0 %590
      %592 = vrot.lane.b32.xlu0 %v494, 3
      %v593 = vpop.permute.xlu0 %592
      %594 = vrot.lane.b32.xlu0 %v495, 3
      %v595 = vpop.permute.xlu0 %594
      %596 = vrot.lane.b32.xlu0 %v496, 3
      %v597 = vpop.permute.xlu0 %596
      %598 = vrot.lane.b32.xlu0 %v497, 3
      %v599 = vpop.permute.xlu0 %598
      %600 = vrot.lane.b32.xlu0 %v498, 3
      %v601 = vpop.permute.xlu0 %600
      %602 = vrot.lane.b32.xlu0 %v499, 3
      %v603 = vpop.permute.xlu0 %602
      %604 = vrot.lane.b32.xlu0 %v500, 3
      %v605 = vpop.permute.xlu0 %604
      %vm606 = vcmp.lt.s32.totalorder %v531, 3
      %v607 = vsel %vm606, %v603, %v605
      %v608 = vsel %vm606, %v601, %v603
      %v609 = vsel %vm606, %v599, %v601
      %v610 = vsel %vm606, %v597, %v599
      %v611 = vsel %vm606, %v595, %v597
      %v612 = vsel %vm606, %v593, %v595
      %v613 = vsel %vm606, %v591, %v593
      %v614 = vsel %vm606, %v605, %v591
      %v615 = vsel %vm503, 1, 0
      %v616 = vlaneseq
      %v617 = vshrl.u32 %v616, 7
      %v618 = vsub.s32 0, %v617
      %v619 = vrot.slane %v615, %v618
      %v620 = vlaneseq
      %v621 = vshrl.u32 %v620, 7
      %v622 = vsub.s32 1, %v621
      %v623 = vrot.slane %v615, %v622
      %v624 = vlaneseq
      %v625 = vshrl.u32 %v624, 7
      %v626 = vsub.s32 2, %v625
      %v627 = vrot.slane %v615, %v626
      %v628 = vlaneseq
      %v629 = vshrl.u32 %v628, 7
      %v630 = vsub.s32 3, %v629
      %v631 = vrot.slane %v615, %v630
      %v632 = vlaneseq
      %v633 = vshrl.u32 %v632, 7
      %v634 = vsub.s32 4, %v633
      %v635 = vrot.slane %v615, %v634
      %v636 = vlaneseq
      %v637 = vshrl.u32 %v636, 7
      %v638 = vsub.s32 5, %v637
      %v639 = vrot.slane %v615, %v638
      %v640 = vlaneseq
      %v641 = vshrl.u32 %v640, 7
      %v642 = vsub.s32 6, %v641
      %v643 = vrot.slane %v615, %v642
      %v644 = vlaneseq
      %v645 = vshrl.u32 %v644, 7
      %v646 = vsub.s32 7, %v645
      %v647 = vrot.slane %v615, %v646
      %vm648 = vcmp.eq.s32.totalorder %v619, 1
      %vm649 = vcmp.eq.s32.totalorder %v623, 1
      %vm650 = vcmp.eq.s32.totalorder %v627, 1
      %vm651 = vcmp.eq.s32.totalorder %v631, 1
      %vm652 = vcmp.eq.s32.totalorder %v635, 1
      %vm653 = vcmp.eq.s32.totalorder %v639, 1
      %vm654 = vcmp.eq.s32.totalorder %v643, 1
      %vm655 = vcmp.eq.s32.totalorder %v647, 1
      %v656 = vsel %vm648, %v614, 0.0
      %v657 = vsel %vm649, %v613, 0.0
      %v658 = vsel %vm650, %v612, 0.0
      %v659 = vsel %vm651, %v611, 0.0
      %v660 = vsel %vm652, %v610, 0.0
      %v661 = vsel %vm653, %v609, 0.0
      %v662 = vsel %vm654, %v608, 0.0
      %v663 = vsel %vm655, %v607, 0.0
      %664 = vrot.lane.b32.xlu0 %v493, 2
      %v665 = vpop.permute.xlu0 %664
      %666 = vrot.lane.b32.xlu0 %v494, 2
      %v667 = vpop.permute.xlu0 %666
      %668 = vrot.lane.b32.xlu0 %v495, 2
      %v669 = vpop.permute.xlu0 %668
      %670 = vrot.lane.b32.xlu0 %v496, 2
      %v671 = vpop.permute.xlu0 %670
      %672 = vrot.lane.b32.xlu0 %v497, 2
      %v673 = vpop.permute.xlu0 %672
      %674 = vrot.lane.b32.xlu0 %v498, 2
      %v675 = vpop.permute.xlu0 %674
      %676 = vrot.lane.b32.xlu0 %v499, 2
      %v677 = vpop.permute.xlu0 %676
      %678 = vrot.lane.b32.xlu0 %v500, 2
      %v679 = vpop.permute.xlu0 %678
      %vm680 = vcmp.lt.s32.totalorder %v531, 2
      %v681 = vsel %vm680, %v677, %v679
      %v682 = vsel %vm680, %v675, %v677
      %v683 = vsel %vm680, %v673, %v675
      %v684 = vsel %vm680, %v671, %v673
      %v685 = vsel %vm680, %v669, %v671
      %v686 = vsel %vm680, %v667, %v669
      %v687 = vsel %vm680, %v665, %v667
      %v688 = vsel %vm680, %v679, %v665
      %v689 = vsel %vm504, 1, 0
      %v690 = vlaneseq
      %v691 = vshrl.u32 %v690, 7
      %v692 = vsub.s32 0, %v691
      %v693 = vrot.slane %v689, %v692
      %v694 = vlaneseq
      %v695 = vshrl.u32 %v694, 7
      %v696 = vsub.s32 1, %v695
      %v697 = vrot.slane %v689, %v696
      %v698 = vlaneseq
      %v699 = vshrl.u32 %v698, 7
      %v700 = vsub.s32 2, %v699
      %v701 = vrot.slane %v689, %v700
      %v702 = vlaneseq
      %v703 = vshrl.u32 %v702, 7
      %v704 = vsub.s32 3, %v703
      %v705 = vrot.slane %v689, %v704
      %v706 = vlaneseq
      %v707 = vshrl.u32 %v706, 7
      %v708 = vsub.s32 4, %v707
      %v709 = vrot.slane %v689, %v708
      %v710 = vlaneseq
      %v711 = vshrl.u32 %v710, 7
      %v712 = vsub.s32 5, %v711
      %v713 = vrot.slane %v689, %v712
      %v714 = vlaneseq
      %v715 = vshrl.u32 %v714, 7
      %v716 = vsub.s32 6, %v715
      %v717 = vrot.slane %v689, %v716
      %v718 = vlaneseq
      %v719 = vshrl.u32 %v718, 7
      %v720 = vsub.s32 7, %v719
      %v721 = vrot.slane %v689, %v720
      %vm722 = vcmp.eq.s32.totalorder %v693, 1
      %vm723 = vcmp.eq.s32.totalorder %v697, 1
      %vm724 = vcmp.eq.s32.totalorder %v701, 1
      %vm725 = vcmp.eq.s32.totalorder %v705, 1
      %vm726 = vcmp.eq.s32.totalorder %v709, 1
      %vm727 = vcmp.eq.s32.totalorder %v713, 1
      %vm728 = vcmp.eq.s32.totalorder %v717, 1
      %vm729 = vcmp.eq.s32.totalorder %v721, 1
      %v730 = vsel %vm722, %v688, 0.0
      %v731 = vsel %vm723, %v687, 0.0
      %v732 = vsel %vm724, %v686, 0.0
      %v733 = vsel %vm725, %v685, 0.0
      %v734 = vsel %vm726, %v684, 0.0
      %v735 = vsel %vm727, %v683, 0.0
      %v736 = vsel %vm728, %v682, 0.0
      %v737 = vsel %vm729, %v681, 0.0
      %738 = vrot.lane.b32.xlu0 %v493, 1
      %v739 = vpop.permute.xlu0 %738
      %740 = vrot.lane.b32.xlu0 %v494, 1
      %v741 = vpop.permute.xlu0 %740
      %742 = vrot.lane.b32.xlu0 %v495, 1
      %v743 = vpop.permute.xlu0 %742
      %744 = vrot.lane.b32.xlu0 %v496, 1
      %v745 = vpop.permute.xlu0 %744
      %746 = vrot.lane.b32.xlu0 %v497, 1
      %v747 = vpop.permute.xlu0 %746
      %748 = vrot.lane.b32.xlu0 %v498, 1
      %v749 = vpop.permute.xlu0 %748
      %750 = vrot.lane.b32.xlu0 %v499, 1
      %v751 = vpop.permute.xlu0 %750
      %752 = vrot.lane.b32.xlu0 %v500, 1
      %v753 = vpop.permute.xlu0 %752
      %vm754 = vcmp.lt.s32.totalorder %v531, 1
      %v755 = vsel %vm754, %v751, %v753
      %v756 = vsel %vm754, %v749, %v751
      %v757 = vsel %vm754, %v747, %v749
      %v758 = vsel %vm754, %v745, %v747
      %v759 = vsel %vm754, %v743, %v745
      %v760 = vsel %vm754, %v741, %v743
      %v761 = vsel %vm754, %v739, %v741
      %v762 = vsel %vm754, %v753, %v739
      %v763 = vsel %vm505, 1, 0
      %v764 = vlaneseq
      %v765 = vshrl.u32 %v764, 7
      %v766 = vsub.s32 0, %v765
      %v767 = vrot.slane %v763, %v766
      %v768 = vlaneseq
      %v769 = vshrl.u32 %v768, 7
      %v770 = vsub.s32 1, %v769
      %v771 = vrot.slane %v763, %v770
      %v772 = vlaneseq
      %v773 = vshrl.u32 %v772, 7
      %v774 = vsub.s32 2, %v773
      %v775 = vrot.slane %v763, %v774
      %v776 = vlaneseq
      %v777 = vshrl.u32 %v776, 7
      %v778 = vsub.s32 3, %v777
      %v779 = vrot.slane %v763, %v778
      %v780 = vlaneseq
      %v781 = vshrl.u32 %v780, 7
      %v782 = vsub.s32 4, %v781
      %v783 = vrot.slane %v763, %v782
      %v784 = vlaneseq
      %v785 = vshrl.u32 %v784, 7
      %v786 = vsub.s32 5, %v785
      %v787 = vrot.slane %v763, %v786
      %v788 = vlaneseq
      %v789 = vshrl.u32 %v788, 7
      %v790 = vsub.s32 6, %v789
      %v791 = vrot.slane %v763, %v790
      %v792 = vlaneseq
      %v793 = vshrl.u32 %v792, 7
      %v794 = vsub.s32 7, %v793
      %v795 = vrot.slane %v763, %v794
      %vm796 = vcmp.eq.s32.totalorder %v767, 1
      %vm797 = vcmp.eq.s32.totalorder %v771, 1
      %vm798 = vcmp.eq.s32.totalorder %v775, 1
      %vm799 = vcmp.eq.s32.totalorder %v779, 1
      %vm800 = vcmp.eq.s32.totalorder %v783, 1
      %vm801 = vcmp.eq.s32.totalorder %v787, 1
      %vm802 = vcmp.eq.s32.totalorder %v791, 1
      %vm803 = vcmp.eq.s32.totalorder %v795, 1
      %v804 = vsel %vm796, %v762, 0.0
      %v805 = vsel %vm797, %v761, 0.0
      %v806 = vsel %vm798, %v760, 0.0
      %v807 = vsel %vm799, %v759, 0.0
      %v808 = vsel %vm800, %v758, 0.0
      %v809 = vsel %vm801, %v757, 0.0
      %v810 = vsel %vm802, %v756, 0.0
      %v811 = vsel %vm803, %v755, 0.0
      %813 = vset.pattern.permute.xlu0 0
      %814 = vperm.xlu0 %813, %v510
      %v815 = vpop.permute.xlu0 %814
      %818 = vset.pattern.permute.xlu0 0
      %819 = vperm.xlu0 %818, %v511
      %v820 = vpop.permute.xlu0 %819
      %823 = vset.pattern.permute.xlu0 0
      %824 = vperm.xlu0 %823, %v512
      %v825 = vpop.permute.xlu0 %824
      %828 = vset.pattern.permute.xlu0 0
      %829 = vperm.xlu0 %828, %v513
      %v830 = vpop.permute.xlu0 %829
      %vm832 = vcmask 326656
      %v834 = vsel %vm832, %v506, 0
      %v837 = vsel %vm832, %v507, 0
      %v840 = vsel %vm832, %v508, 0
      %v843 = vsel %vm832, %v509, 0
      %845 = vmatprep.subr.mxu0 %v583
      %846 = vmatpush1.msra.mxu0 %v582
      %847 = vmatprep.subr.mxu0 %v657
      %848 = vmatpush1.msra.mxu0 %v656
      %849 = vmatprep.subr.mxu0 %v731
      %850 = vmatpush1.msra.mxu0 %v730
      %851 = vmatprep.subr.mxu0 %v805
      %852 = vmatpush1.msra.mxu0 %v804
      %853 = vmatprep.subr.mxu0 %v494
      %854 = vmatpush1.msra.mxu0 %v493
      %855 = vmatprep.subr.mxu0 0.0
      %856 = vmatpush1.msra.mxu0 0.0
      %857 = vmatprep.subr.mxu0 0.0
      %858 = vmatpush1.msra.mxu0 0.0
      %859 = vmatprep.subr.mxu0 0.0
      %860 = vmatpush1.msra.mxu0 0.0
      %861 = vmatprep.subr.mxu0 0.0
      %862 = vmatpush1.msra.mxu0 0.0
      %863 = vmatprep.subr.mxu0 0.0
      %864 = vmatpush1.msra.mxu0 0.0
      %865 = vmatprep.subr.mxu0 0.0
      %866 = vmatpush1.msra.mxu0 0.0
      %867 = vmatprep.subr.mxu0 0.0
      %868 = vmatpush1.msra.mxu0 0.0
      %869 = vmatprep.subr.mxu0 0.0
      %870 = vmatpush1.msra.mxu0 0.0
      %871 = vmatprep.subr.mxu0 0.0
      %872 = vmatpush1.msra.mxu0 0.0
      %873 = vmatprep.subr.mxu0 0.0
      %874 = vmatpush1.msra.mxu0 0.0
      %875 = vmatprep.subr.mxu0 0.0
      %876 = vmatpush1.msra.mxu0 0.0
      %877 = vmatprep.subr.mxu0 0.0
      %878 = vmatpush1.msra.mxu0 0.0
      %879 = vmatprep.subr.mxu0 0.0
      %880 = vmatpush1.msra.mxu0 0.0
      %881 = vmatprep.subr.mxu0 0.0
      %882 = vmatpush1.msra.mxu0 0.0
      %883 = vmatprep.subr.mxu0 0.0
      %884 = vmatpush1.msra.mxu0 0.0
      %885 = vmatprep.subr.mxu0 0.0
      %886 = vmatpush1.msra.mxu0 0.0
      %887 = vmatprep.subr.mxu0 0.0
      %888 = vmatpush1.msra.mxu0 0.0
      %889 = vmatprep.subr.mxu0 0.0
      %890 = vmatpush1.msra.mxu0 0.0
      %891 = vmatprep.subr.mxu0 0.0
      %892 = vmatpush1.msra.mxu0 0.0
      %893 = vmatprep.subr.mxu0 0.0
      %894 = vmatpush1.msra.mxu0 0.0
      %895 = vmatprep.subr.mxu0 0.0
      %896 = vmatpush1.msra.mxu0 0.0
      %897 = vmatprep.subr.mxu0 0.0
      %898 = vmatpush1.msra.mxu0 0.0
      %899 = vmatprep.subr.mxu0 0.0
      %900 = vmatpush1.msra.mxu0 0.0
      %901 = vmatprep.subr.mxu0 0.0
      %902 = vmatpush1.msra.mxu0 0.0
      %903 = vmatprep.subr.mxu0 0.0
      %904 = vmatpush1.msra.mxu0 0.0
      %905 = vmatprep.subr.mxu0 0.0
      %906 = vmatpush1.msra.mxu0 0.0
      %907 = vmatprep.subr.mxu0 0.0
      %908 = vmatpush1.msra.mxu0 0.0
      %909 = vmatprep.mubr.f32.mxu0 0.0
      %910 = vmatmul.mubr.f32.gmra.mrb[0].mxu0 %v834
      %v911 = vpop.f32.mrb[0].mxu0
      %v912 = vadd.f32 %v815, %v911
      %v913 = vpop.f32.mrb[0].mxu0
      %v914 = vadd.f32 %v815, %v913
      %915 = vmatprep.mubr.f32.mxu0 0.0
      %916 = vmatmul.mubr.f32.gmra.mrb[0].mxu0 %v837
      %v917 = vpop.f32.mrb[0].mxu0
      %v918 = vadd.f32 %v820, %v917
      %v919 = vpop.f32.mrb[0].mxu0
      %v920 = vadd.f32 %v820, %v919
      %921 = vmatprep.mubr.f32.mxu0 0.0
      %922 = vmatmul.mubr.f32.gmra.mrb[0].mxu0 %v840
      %v923 = vpop.f32.mrb[0].mxu0
      %v924 = vadd.f32 %v825, %v923
      %v925 = vpop.f32.mrb[0].mxu0
      %v926 = vadd.f32 %v825, %v925
      %927 = vmatprep.mubr.f32.mxu0 0.0
      %928 = vmatmul.mubr.f32.gmra.mrb[0].mxu0 %v843
      %v929 = vpop.f32.mrb[0].mxu0
      %v930 = vadd.f32 %v830, %v929
      %v931 = vpop.f32.mrb[0].mxu0
      %v932 = vadd.f32 %v830, %v931
      %933 = vdwg.mxu0
      %934 = vmatprep.subr.mxu0 %v585
      %935 = vmatpush1.msra.mxu0 %v584
      %936 = vmatprep.subr.mxu0 %v659
      %937 = vmatpush1.msra.mxu0 %v658
      %938 = vmatprep.subr.mxu0 %v733
      %939 = vmatpush1.msra.mxu0 %v732
      %940 = vmatprep.subr.mxu0 %v807
      %941 = vmatpush1.msra.mxu0 %v806
      %942 = vmatprep.subr.mxu0 %v496
      %943 = vmatpush1.msra.mxu0 %v495
      %944 = vmatprep.subr.mxu0 0.0
      %945 = vmatpush1.msra.mxu0 0.0
      %946 = vmatprep.subr.mxu0 0.0
      %947 = vmatpush1.msra.mxu0 0.0
      %948 = vmatprep.subr.mxu0 0.0
      %949 = vmatpush1.msra.mxu0 0.0
      %950 = vmatprep.subr.mxu0 0.0
      %951 = vmatpush1.msra.mxu0 0.0
      %952 = vmatprep.subr.mxu0 0.0
      %953 = vmatpush1.msra.mxu0 0.0
      %954 = vmatprep.subr.mxu0 0.0
      %955 = vmatpush1.msra.mxu0 0.0
      %956 = vmatprep.subr.mxu0 0.0
      %957 = vmatpush1.msra.mxu0 0.0
      %958 = vmatprep.subr.mxu0 0.0
      %959 = vmatpush1.msra.mxu0 0.0
      %960 = vmatprep.subr.mxu0 0.0
      %961 = vmatpush1.msra.mxu0 0.0
      %962 = vmatprep.subr.mxu0 0.0
      %963 = vmatpush1.msra.mxu0 0.0
      %964 = vmatprep.subr.mxu0 0.0
      %965 = vmatpush1.msra.mxu0 0.0
      %966 = vmatprep.subr.mxu0 0.0
      %967 = vmatpush1.msra.mxu0 0.0
      %968 = vmatprep.subr.mxu0 0.0
      %969 = vmatpush1.msra.mxu0 0.0
      %970 = vmatprep.subr.mxu0 0.0
      %971 = vmatpush1.msra.mxu0 0.0
      %972 = vmatprep.subr.mxu0 0.0
      %973 = vmatpush1.msra.mxu0 0.0
      %974 = vmatprep.subr.mxu0 0.0
      %975 = vmatpush1.msra.mxu0 0.0
      %976 = vmatprep.subr.mxu0 0.0
      %977 = vmatpush1.msra.mxu0 0.0
      %978 = vmatprep.subr.mxu0 0.0
      %979 = vmatpush1.msra.mxu0 0.0
      %980 = vmatprep.subr.mxu0 0.0
      %981 = vmatpush1.msra.mxu0 0.0
      %982 = vmatprep.subr.mxu0 0.0
      %983 = vmatpush1.msra.mxu0 0.0
      %984 = vmatprep.subr.mxu0 0.0
      %985 = vmatpush1.msra.mxu0 0.0
      %986 = vmatprep.subr.mxu0 0.0
      %987 = vmatpush1.msra.mxu0 0.0
      %988 = vmatprep.subr.mxu0 0.0
      %989 = vmatpush1.msra.mxu0 0.0
      %990 = vmatprep.subr.mxu0 0.0
      %991 = vmatpush1.msra.mxu0 0.0
      %992 = vmatprep.subr.mxu0 0.0
      %993 = vmatpush1.msra.mxu0 0.0
      %994 = vmatprep.subr.mxu0 0.0
      %995 = vmatpush1.msra.mxu0 0.0
      %996 = vmatprep.subr.mxu0 0.0
      %997 = vmatpush1.msra.mxu0 0.0
      %998 = vmatprep.mubr.f32.mxu0 0.0
      %999 = vmatmul.mubr.f32.gmra.mrb[0].mxu0 %v834
      %v1000 = vpop.f32.mrb[0].mxu0
      %v1001 = vadd.f32 %v815, %v1000
      %v1002 = vpop.f32.mrb[0].mxu0
      %v1003 = vadd.f32 %v815, %v1002
      %1004 = vmatprep.mubr.f32.mxu0 0.0
      %1005 = vmatmul.mubr.f32.gmra.mrb[0].mxu0 %v837
      %v1006 = vpop.f32.mrb[0].mxu0
      %v1007 = vadd.f32 %v820, %v1006
      %v1008 = vpop.f32.mrb[0].mxu0
      %v1009 = vadd.f32 %v820, %v1008
      %1010 = vmatprep.mubr.f32.mxu0 0.0
      %1011 = vmatmul.mubr.f32.gmra.mrb[0].mxu0 %v840
      %v1012 = vpop.f32.mrb[0].mxu0
      %v1013 = vadd.f32 %v825, %v1012
      %v1014 = vpop.f32.mrb[0].mxu0
      %v1015 = vadd.f32 %v825, %v1014
      %1016 = vmatprep.mubr.f32.mxu0 0.0
      %1017 = vmatmul.mubr.f32.gmra.mrb[0].mxu0 %v843
      %v1018 = vpop.f32.mrb[0].mxu0
      %v1019 = vadd.f32 %v830, %v1018
      %v1020 = vpop.f32.mrb[0].mxu0
      %v1021 = vadd.f32 %v830, %v1020
      %1022 = vdwg.mxu0
      %1023 = vmatprep.subr.mxu0 %v587
      %1024 = vmatpush1.msra.mxu0 %v586
      %1025 = vmatprep.subr.mxu0 %v661
      %1026 = vmatpush1.msra.mxu0 %v660
      %1027 = vmatprep.subr.mxu0 %v735
      %1028 = vmatpush1.msra.mxu0 %v734
      %1029 = vmatprep.subr.mxu0 %v809
      %1030 = vmatpush1.msra.mxu0 %v808
      %1031 = vmatprep.subr.mxu0 %v498
      %1032 = vmatpush1.msra.mxu0 %v497
      %1033 = vmatprep.subr.mxu0 0.0
      %1034 = vmatpush1.msra.mxu0 0.0
      %1035 = vmatprep.subr.mxu0 0.0
      %1036 = vmatpush1.msra.mxu0 0.0
      %1037 = vmatprep.subr.mxu0 0.0
      %1038 = vmatpush1.msra.mxu0 0.0
      %1039 = vmatprep.subr.mxu0 0.0
      %1040 = vmatpush1.msra.mxu0 0.0
      %1041 = vmatprep.subr.mxu0 0.0
      %1042 = vmatpush1.msra.mxu0 0.0
      %1043 = vmatprep.subr.mxu0 0.0
      %1044 = vmatpush1.msra.mxu0 0.0
      %1045 = vmatprep.subr.mxu0 0.0
      %1046 = vmatpush1.msra.mxu0 0.0
      %1047 = vmatprep.subr.mxu0 0.0
      %1048 = vmatpush1.msra.mxu0 0.0
      %1049 = vmatprep.subr.mxu0 0.0
      %1050 = vmatpush1.msra.mxu0 0.0
      %1051 = vmatprep.subr.mxu0 0.0
      %1052 = vmatpush1.msra.mxu0 0.0
      %1053 = vmatprep.subr.mxu0 0.0
      %1054 = vmatpush1.msra.mxu0 0.0
      %1055 = vmatprep.subr.mxu0 0.0
      %1056 = vmatpush1.msra.mxu0 0.0
      %1057 = vmatprep.subr.mxu0 0.0
      %1058 = vmatpush1.msra.mxu0 0.0
      %1059 = vmatprep.subr.mxu0 0.0
      %1060 = vmatpush1.msra.mxu0 0.0
      %1061 = vmatprep.subr.mxu0 0.0
      %1062 = vmatpush1.msra.mxu0 0.0
      %1063 = vmatprep.subr.mxu0 0.0
      %1064 = vmatpush1.msra.mxu0 0.0
      %1065 = vmatprep.subr.mxu0 0.0
      %1066 = vmatpush1.msra.mxu0 0.0
      %1067 = vmatprep.subr.mxu0 0.0
      %1068 = vmatpush1.msra.mxu0 0.0
      %1069 = vmatprep.subr.mxu0 0.0
      %1070 = vmatpush1.msra.mxu0 0.0
      %1071 = vmatprep.subr.mxu0 0.0
      %1072 = vmatpush1.msra.mxu0 0.0
      %1073 = vmatprep.subr.mxu0 0.0
      %1074 = vmatpush1.msra.mxu0 0.0
      %1075 = vmatprep.subr.mxu0 0.0
      %1076 = vmatpush1.msra.mxu0 0.0
      %1077 = vmatprep.subr.mxu0 0.0
      %1078 = vmatpush1.msra.mxu0 0.0
      %1079 = vmatprep.subr.mxu0 0.0
      %1080 = vmatpush1.msra.mxu0 0.0
      %1081 = vmatprep.subr.mxu0 0.0
      %1082 = vmatpush1.msra.mxu0 0.0
      %1083 = vmatprep.subr.mxu0 0.0
      %1084 = vmatpush1.msra.mxu0 0.0
      %1085 = vmatprep.subr.mxu0 0.0
      %1086 = vmatpush1.msra.mxu0 0.0
      %1087 = vmatprep.mubr.f32.mxu0 0.0
      %1088 = vmatmul.mubr.f32.gmra.mrb[0].mxu0 %v834
      %v1089 = vpop.f32.mrb[0].mxu0
      %v1090 = vadd.f32 %v815, %v1089
      %v1091 = vpop.f32.mrb[0].mxu0
      %v1092 = vadd.f32 %v815, %v1091
      %1093 = vmatprep.mubr.f32.mxu0 0.0
      %1094 = vmatmul.mubr.f32.gmra.mrb[0].mxu0 %v837
      %v1095 = vpop.f32.mrb[0].mxu0
      %v1096 = vadd.f32 %v820, %v1095
      %v1097 = vpop.f32.mrb[0].mxu0
      %v1098 = vadd.f32 %v820, %v1097
      %1099 = vmatprep.mubr.f32.mxu0 0.0
      %1100 = vmatmul.mubr.f32.gmra.mrb[0].mxu0 %v840
      %v1101 = vpop.f32.mrb[0].mxu0
      %v1102 = vadd.f32 %v825, %v1101
      %v1103 = vpop.f32.mrb[0].mxu0
      %v1104 = vadd.f32 %v825, %v1103
      %1105 = vmatprep.mubr.f32.mxu0 0.0
      %1106 = vmatmul.mubr.f32.gmra.mrb[0].mxu0 %v843
      %v1107 = vpop.f32.mrb[0].mxu0
      %v1108 = vadd.f32 %v830, %v1107
      %v1109 = vpop.f32.mrb[0].mxu0
      %v1110 = vadd.f32 %v830, %v1109
      %1111 = vdwg.mxu0
      %1112 = vmatprep.subr.mxu0 %v589
      %1113 = vmatpush1.msra.mxu0 %v588
      %1114 = vmatprep.subr.mxu0 %v663
      %1115 = vmatpush1.msra.mxu0 %v662
      %1116 = vmatprep.subr.mxu0 %v737
      %1117 = vmatpush1.msra.mxu0 %v736
      %1118 = vmatprep.subr.mxu0 %v811
      %1119 = vmatpush1.msra.mxu0 %v810
      %1120 = vmatprep.subr.mxu0 %v500
      %1121 = vmatpush1.msra.mxu0 %v499
      %1122 = vmatprep.subr.mxu0 0.0
      %1123 = vmatpush1.msra.mxu0 0.0
      %1124 = vmatprep.subr.mxu0 0.0
      %1125 = vmatpush1.msra.mxu0 0.0
      %1126 = vmatprep.subr.mxu0 0.0
      %1127 = vmatpush1.msra.mxu0 0.0
      %1128 = vmatprep.subr.mxu0 0.0
      %1129 = vmatpush1.msra.mxu0 0.0
      %1130 = vmatprep.subr.mxu0 0.0
      %1131 = vmatpush1.msra.mxu0 0.0
      %1132 = vmatprep.subr.mxu0 0.0
      %1133 = vmatpush1.msra.mxu0 0.0
      %1134 = vmatprep.subr.mxu0 0.0
      %1135 = vmatpush1.msra.mxu0 0.0
      %1136 = vmatprep.subr.mxu0 0.0
      %1137 = vmatpush1.msra.mxu0 0.0
      %1138 = vmatprep.subr.mxu0 0.0
      %1139 = vmatpush1.msra.mxu0 0.0
      %1140 = vmatprep.subr.mxu0 0.0
      %1141 = vmatpush1.msra.mxu0 0.0
      %1142 = vmatprep.subr.mxu0 0.0
      %1143 = vmatpush1.msra.mxu0 0.0
      %1144 = vmatprep.subr.mxu0 0.0
      %1145 = vmatpush1.msra.mxu0 0.0
      %1146 = vmatprep.subr.mxu0 0.0
      %1147 = vmatpush1.msra.mxu0 0.0
      %1148 = vmatprep.subr.mxu0 0.0
      %1149 = vmatpush1.msra.mxu0 0.0
      %1150 = vmatprep.subr.mxu0 0.0
      %1151 = vmatpush1.msra.mxu0 0.0
      %1152 = vmatprep.subr.mxu0 0.0
      %1153 = vmatpush1.msra.mxu0 0.0
      %1154 = vmatprep.subr.mxu0 0.0
      %1155 = vmatpush1.msra.mxu0 0.0
      %1156 = vmatprep.subr.mxu0 0.0
      %1157 = vmatpush1.msra.mxu0 0.0
      %1158 = vmatprep.subr.mxu0 0.0
      %1159 = vmatpush1.msra.mxu0 0.0
      %1160 = vmatprep.subr.mxu0 0.0
      %1161 = vmatpush1.msra.mxu0 0.0
      %1162 = vmatprep.subr.mxu0 0.0
      %1163 = vmatpush1.msra.mxu0 0.0
      %1164 = vmatprep.subr.mxu0 0.0
      %1165 = vmatpush1.msra.mxu0 0.0
      %1166 = vmatprep.subr.mxu0 0.0
      %1167 = vmatpush1.msra.mxu0 0.0
      %1168 = vmatprep.subr.mxu0 0.0
      %1169 = vmatpush1.msra.mxu0 0.0
      %1170 = vmatprep.subr.mxu0 0.0
      %1171 = vmatpush1.msra.mxu0 0.0
      %1172 = vmatprep.subr.mxu0 0.0
      %1173 = vmatpush1.msra.mxu0 0.0
      %1174 = vmatprep.subr.mxu0 0.0
      %1175 = vmatpush1.msra.mxu0 0.0
      %1176 = vmatprep.mubr.f32.mxu0 0.0
      %1177 = vmatmul.mubr.f32.gmra.mrb[0].mxu0 %v834
      %v1178 = vpop.f32.mrb[0].mxu0
      %v1179 = vadd.f32 %v815, %v1178
      %v1180 = vpop.f32.mrb[0].mxu0
      %v1181 = vadd.f32 %v815, %v1180
      %1182 = vmatprep.mubr.f32.mxu0 0.0
      %1183 = vmatmul.mubr.f32.gmra.mrb[0].mxu0 %v837
      %v1184 = vpop.f32.mrb[0].mxu0
      %v1185 = vadd.f32 %v820, %v1184
      %v1186 = vpop.f32.mrb[0].mxu0
      %v1187 = vadd.f32 %v820, %v1186
      %1188 = vmatprep.mubr.f32.mxu0 0.0
      %1189 = vmatmul.mubr.f32.gmra.mrb[0].mxu0 %v840
      %v1190 = vpop.f32.mrb[0].mxu0
      %v1191 = vadd.f32 %v825, %v1190
      %v1192 = vpop.f32.mrb[0].mxu0
      %v1193 = vadd.f32 %v825, %v1192
      %1194 = vmatprep.mubr.f32.mxu0 0.0
      %1195 = vmatmul.mubr.f32.gmra.mrb[0].mxu0 %v843
      %v1196 = vpop.f32.mrb[0].mxu0
      %v1197 = vadd.f32 %v830, %v1196
      %v1198 = vpop.f32.mrb[0].mxu0
      %v1199 = vadd.f32 %v830, %v1198
      %1200 = vdwg.mxu0
      %v1201 = vmax.f32 %v912, 0.0
      %v1202 = vmax.f32 %v914, 0.0
      %v1203 = vmax.f32 %v1001, 0.0
      %v1204 = vmax.f32 %v1003, 0.0
      %v1205 = vmax.f32 %v1090, 0.0
      %v1206 = vmax.f32 %v1092, 0.0
      %v1207 = vmax.f32 %v1179, 0.0
      %v1208 = vmax.f32 %v1181, 0.0
      %v1209 = vmax.f32 %v918, 0.0
      %v1210 = vmax.f32 %v920, 0.0
      %v1211 = vmax.f32 %v1007, 0.0
      %v1212 = vmax.f32 %v1009, 0.0
      %v1213 = vmax.f32 %v1096, 0.0
      %v1214 = vmax.f32 %v1098, 0.0
      %v1215 = vmax.f32 %v1185, 0.0
      %v1216 = vmax.f32 %v1187, 0.0
      %v1217 = vmax.f32 %v924, 0.0
      %v1218 = vmax.f32 %v926, 0.0
      %v1219 = vmax.f32 %v1013, 0.0
      %v1220 = vmax.f32 %v1015, 0.0
      %v1221 = vmax.f32 %v1102, 0.0
      %v1222 = vmax.f32 %v1104, 0.0
      %v1223 = vmax.f32 %v1191, 0.0
      %v1224 = vmax.f32 %v1193, 0.0
      %v1225 = vmax.f32 %v930, 0.0
      %v1226 = vmax.f32 %v932, 0.0
      %v1227 = vmax.f32 %v1019, 0.0
      %v1228 = vmax.f32 %v1021, 0.0
      %v1229 = vmax.f32 %v1108, 0.0
      %v1230 = vmax.f32 %v1110, 0.0
      %v1231 = vmax.f32 %v1197, 0.0
      %v1232 = vmax.f32 %v1199, 0.0
      %v1233 = vld [vmem:[%s5] sm:$0xff]
      %v1234 = vld [vmem:[%s5 + $0x8] sm:$0xff]
      %v1235 = vld [vmem:[%s5 + $0x10] sm:$0xff]
      %v1236 = vld [vmem:[%s5 + $0x18] sm:$0xff]
      %v1237 = vld [vmem:[%s5 + $0x20] sm:$0xff]
      %v1238 = vld [vmem:[%s5 + $0x28] sm:$0xff]
      %v1239 = vld [vmem:[%s5 + $0x30] sm:$0xff]
      %v1240 = vld [vmem:[%s5 + $0x38] sm:$0xff]
      %v1241 = vld [vmem:[%s6] sm:$0xff]
      %v1242 = vld [vmem:[%s6 + $0x8] sm:$0xff]
      %v1243 = vld [vmem:[%s6 + $0x10] sm:$0xff]
      %v1244 = vld [vmem:[%s6 + $0x18] sm:$0xff]
      %1245 = vrot.lane.b32.xlu0 %v1201, 4
      %v1246 = vpop.permute.xlu0 %1245
      %1247 = vrot.lane.b32.xlu0 %v1209, 4
      %v1248 = vpop.permute.xlu0 %1247
      %1249 = vrot.lane.b32.xlu0 %v1217, 4
      %v1250 = vpop.permute.xlu0 %1249
      %1251 = vrot.lane.b32.xlu0 %v1225, 4
      %v1252 = vpop.permute.xlu0 %1251
      %1253 = vrot.lane.b32.xlu0 %v1202, 4
      %v1254 = vpop.permute.xlu0 %1253
      %1255 = vrot.lane.b32.xlu0 %v1210, 4
      %v1256 = vpop.permute.xlu0 %1255
      %1257 = vrot.lane.b32.xlu0 %v1218, 4
      %v1258 = vpop.permute.xlu0 %1257
      %1259 = vrot.lane.b32.xlu0 %v1226, 4
      %v1260 = vpop.permute.xlu0 %1259
      %1261 = vrot.lane.b32.xlu0 %v1203, 4
      %v1262 = vpop.permute.xlu0 %1261
      %1263 = vrot.lane.b32.xlu0 %v1211, 4
      %v1264 = vpop.permute.xlu0 %1263
      %1265 = vrot.lane.b32.xlu0 %v1219, 4
      %v1266 = vpop.permute.xlu0 %1265
      %1267 = vrot.lane.b32.xlu0 %v1227, 4
      %v1268 = vpop.permute.xlu0 %1267
      %1269 = vrot.lane.b32.xlu0 %v1204, 4
      %v1270 = vpop.permute.xlu0 %1269
      %1271 = vrot.lane.b32.xlu0 %v1212, 4
      %v1272 = vpop.permute.xlu0 %1271
      %1273 = vrot.lane.b32.xlu0 %v1220, 4
      %v1274 = vpop.permute.xlu0 %1273
      %1275 = vrot.lane.b32.xlu0 %v1228, 4
      %v1276 = vpop.permute.xlu0 %1275
      %1277 = vrot.lane.b32.xlu0 %v1205, 4
      %v1278 = vpop.permute.xlu0 %1277
      %1279 = vrot.lane.b32.xlu0 %v1213, 4
      %v1280 = vpop.permute.xlu0 %1279
      %1281 = vrot.lane.b32.xlu0 %v1221, 4
      %v1282 = vpop.permute.xlu0 %1281
      %1283 = vrot.lane.b32.xlu0 %v1229, 4
      %v1284 = vpop.permute.xlu0 %1283
      %1285 = vrot.lane.b32.xlu0 %v1206, 4
      %v1286 = vpop.permute.xlu0 %1285
      %1287 = vrot.lane.b32.xlu0 %v1214, 4
      %v1288 = vpop.permute.xlu0 %1287
      %1289 = vrot.lane.b32.xlu0 %v1222, 4
      %v1290 = vpop.permute.xlu0 %1289
      %1291 = vrot.lane.b32.xlu0 %v1230, 4
      %v1292 = vpop.permute.xlu0 %1291
      %1293 = vrot.lane.b32.xlu0 %v1207, 4
      %v1294 = vpop.permute.xlu0 %1293
      %1295 = vrot.lane.b32.xlu0 %v1215, 4
      %v1296 = vpop.permute.xlu0 %1295
      %1297 = vrot.lane.b32.xlu0 %v1223, 4
      %v1298 = vpop.permute.xlu0 %1297
      %1299 = vrot.lane.b32.xlu0 %v1231, 4
      %v1300 = vpop.permute.xlu0 %1299
      %1301 = vrot.lane.b32.xlu0 %v1208, 4
      %v1302 = vpop.permute.xlu0 %1301
      %1303 = vrot.lane.b32.xlu0 %v1216, 4
      %v1304 = vpop.permute.xlu0 %1303
      %1305 = vrot.lane.b32.xlu0 %v1224, 4
      %v1306 = vpop.permute.xlu0 %1305
      %1307 = vrot.lane.b32.xlu0 %v1232, 4
      %v1308 = vpop.permute.xlu0 %1307
      %v1309 = vsel %vm532, %v1294, %v1302
      %v1310 = vsel %vm532, %v1296, %v1304
      %v1311 = vsel %vm532, %v1298, %v1306
      %v1312 = vsel %vm532, %v1300, %v1308
      %v1313 = vsel %vm532, %v1286, %v1294
      %v1314 = vsel %vm532, %v1288, %v1296
      %v1315 = vsel %vm532, %v1290, %v1298
      %v1316 = vsel %vm532, %v1292, %v1300
      %v1317 = vsel %vm532, %v1278, %v1286
      %v1318 = vsel %vm532, %v1280, %v1288
      %v1319 = vsel %vm532, %v1282, %v1290
      %v1320 = vsel %vm532, %v1284, %v1292
      %v1321 = vsel %vm532, %v1270, %v1278
      %v1322 = vsel %vm532, %v1272, %v1280
      %v1323 = vsel %vm532, %v1274, %v1282
      %v1324 = vsel %vm532, %v1276, %v1284
      %v1325 = vsel %vm532, %v1262, %v1270
      %v1326 = vsel %vm532, %v1264, %v1272
      %v1327 = vsel %vm532, %v1266, %v1274
      %v1328 = vsel %vm532, %v1268, %v1276
      %v1329 = vsel %vm532, %v1254, %v1262
      %v1330 = vsel %vm532, %v1256, %v1264
      %v1331 = vsel %vm532, %v1258, %v1266
      %v1332 = vsel %vm532, %v1260, %v1268
      %v1333 = vsel %vm532, %v1246, %v1254
      %v1334 = vsel %vm532, %v1248, %v1256
      %v1335 = vsel %vm532, %v1250, %v1258
      %v1336 = vsel %vm532, %v1252, %v1260
      %v1337 = vsel %vm532, %v1302, %v1246
      %v1338 = vsel %vm532, %v1304, %v1248
      %v1339 = vsel %vm532, %v1306, %v1250
      %v1340 = vsel %vm532, %v1308, %v1252
      %v1341 = vsel %vm574, %v1337, 0.0
      %v1342 = vsel %vm575, %v1333, 0.0
      %v1343 = vsel %vm576, %v1329, 0.0
      %v1344 = vsel %vm577, %v1325, 0.0
      %v1345 = vsel %vm578, %v1321, 0.0
      %v1346 = vsel %vm579, %v1317, 0.0
      %v1347 = vsel %vm580, %v1313, 0.0
      %v1348 = vsel %vm581, %v1309, 0.0
      %v1349 = vsel %vm574, %v1338, 0.0
      %v1350 = vsel %vm575, %v1334, 0.0
      %v1351 = vsel %vm576, %v1330, 0.0
      %v1352 = vsel %vm577, %v1326, 0.0
      %v1353 = vsel %vm578, %v1322, 0.0
      %v1354 = vsel %vm579, %v1318, 0.0
      %v1355 = vsel %vm580, %v1314, 0.0
      %v1356 = vsel %vm581, %v1310, 0.0
      %v1357 = vsel %vm574, %v1339, 0.0
      %v1358 = vsel %vm575, %v1335, 0.0
      %v1359 = vsel %vm576, %v1331, 0.0
      %v1360 = vsel %vm577, %v1327, 0.0
      %v1361 = vsel %vm578, %v1323, 0.0
      %v1362 = vsel %vm579, %v1319, 0.0
      %v1363 = vsel %vm580, %v1315, 0.0
      %v1364 = vsel %vm581, %v1311, 0.0
      %v1365 = vsel %vm574, %v1340, 0.0
      %v1366 = vsel %vm575, %v1336, 0.0
      %v1367 = vsel %vm576, %v1332, 0.0
      %v1368 = vsel %vm577, %v1328, 0.0
      %v1369 = vsel %vm578, %v1324, 0.0
      %v1370 = vsel %vm579, %v1320, 0.0
      %v1371 = vsel %vm580, %v1316, 0.0
      %v1372 = vsel %vm581, %v1312, 0.0
      %1373 = vrot.lane.b32.xlu0 %v1201, 3
      %v1374 = vpop.permute.xlu0 %1373
      %1375 = vrot.lane.b32.xlu0 %v1209, 3
      %v1376 = vpop.permute.xlu0 %1375
      %1377 = vrot.lane.b32.xlu0 %v1217, 3
      %v1378 = vpop.permute.xlu0 %1377
      %1379 = vrot.lane.b32.xlu0 %v1225, 3
      %v1380 = vpop.permute.xlu0 %1379
      %1381 = vrot.lane.b32.xlu0 %v1202, 3
      %v1382 = vpop.permute.xlu0 %1381
      %1383 = vrot.lane.b32.xlu0 %v1210, 3
      %v1384 = vpop.permute.xlu0 %1383
      %1385 = vrot.lane.b32.xlu0 %v1218, 3
      %v1386 = vpop.permute.xlu0 %1385
      %1387 = vrot.lane.b32.xlu0 %v1226, 3
      %v1388 = vpop.permute.xlu0 %1387
      %1389 = vrot.lane.b32.xlu0 %v1203, 3
      %v1390 = vpop.permute.xlu0 %1389
      %1391 = vrot.lane.b32.xlu0 %v1211, 3
      %v1392 = vpop.permute.xlu0 %1391
      %1393 = vrot.lane.b32.xlu0 %v1219, 3
      %v1394 = vpop.permute.xlu0 %1393
      %1395 = vrot.lane.b32.xlu0 %v1227, 3
      %v1396 = vpop.permute.xlu0 %1395
      %1397 = vrot.lane.b32.xlu0 %v1204, 3
      %v1398 = vpop.permute.xlu0 %1397
      %1399 = vrot.lane.b32.xlu0 %v1212, 3
      %v1400 = vpop.permute.xlu0 %1399
      %1401 = vrot.lane.b32.xlu0 %v1220, 3
      %v1402 = vpop.permute.xlu0 %1401
      %1403 = vrot.lane.b32.xlu0 %v1228, 3
      %v1404 = vpop.permute.xlu0 %1403
      %1405 = vrot.lane.b32.xlu0 %v1205, 3
      %v1406 = vpop.permute.xlu0 %1405
      %1407 = vrot.lane.b32.xlu0 %v1213, 3
      %v1408 = vpop.permute.xlu0 %1407
      %1409 = vrot.lane.b32.xlu0 %v1221, 3
      %v1410 = vpop.permute.xlu0 %1409
      %1411 = vrot.lane.b32.xlu0 %v1229, 3
      %v1412 = vpop.permute.xlu0 %1411
      %1413 = vrot.lane.b32.xlu0 %v1206, 3
      %v1414 = vpop.permute.xlu0 %1413
      %1415 = vrot.lane.b32.xlu0 %v1214, 3
      %v1416 = vpop.permute.xlu0 %1415
      %1417 = vrot.lane.b32.xlu0 %v1222, 3
      %v1418 = vpop.permute.xlu0 %1417
      %1419 = vrot.lane.b32.xlu0 %v1230, 3
      %v1420 = vpop.permute.xlu0 %1419
      %1421 = vrot.lane.b32.xlu0 %v1207, 3
      %v1422 = vpop.permute.xlu0 %1421
      %1423 = vrot.lane.b32.xlu0 %v1215, 3
      %v1424 = vpop.permute.xlu0 %1423
      %1425 = vrot.lane.b32.xlu0 %v1223, 3
      %v1426 = vpop.permute.xlu0 %1425
      %1427 = vrot.lane.b32.xlu0 %v1231, 3
      %v1428 = vpop.permute.xlu0 %1427
      %1429 = vrot.lane.b32.xlu0 %v1208, 3
      %v1430 = vpop.permute.xlu0 %1429
      %1431 = vrot.lane.b32.xlu0 %v1216, 3
      %v1432 = vpop.permute.xlu0 %1431
      %1433 = vrot.lane.b32.xlu0 %v1224, 3
      %v1434 = vpop.permute.xlu0 %1433
      %1435 = vrot.lane.b32.xlu0 %v1232, 3
      %v1436 = vpop.permute.xlu0 %1435
      %v1437 = vsel %vm606, %v1422, %v1430
      %v1438 = vsel %vm606, %v1424, %v1432
      %v1439 = vsel %vm606, %v1426, %v1434
      %v1440 = vsel %vm606, %v1428, %v1436
      %v1441 = vsel %vm606, %v1414, %v1422
      %v1442 = vsel %vm606, %v1416, %v1424
      %v1443 = vsel %vm606, %v1418, %v1426
      %v1444 = vsel %vm606, %v1420, %v1428
      %v1445 = vsel %vm606, %v1406, %v1414
      %v1446 = vsel %vm606, %v1408, %v1416
      %v1447 = vsel %vm606, %v1410, %v1418
      %v1448 = vsel %vm606, %v1412, %v1420
      %v1449 = vsel %vm606, %v1398, %v1406
      %v1450 = vsel %vm606, %v1400, %v1408
      %v1451 = vsel %vm606, %v1402, %v1410
      %v1452 = vsel %vm606, %v1404, %v1412
      %v1453 = vsel %vm606, %v1390, %v1398
      %v1454 = vsel %vm606, %v1392, %v1400
      %v1455 = vsel %vm606, %v1394, %v1402
      %v1456 = vsel %vm606, %v1396, %v1404
      %v1457 = vsel %vm606, %v1382, %v1390
      %v1458 = vsel %vm606, %v1384, %v1392
      %v1459 = vsel %vm606, %v1386, %v1394
      %v1460 = vsel %vm606, %v1388, %v1396
      %v1461 = vsel %vm606, %v1374, %v1382
      %v1462 = vsel %vm606, %v1376, %v1384
      %v1463 = vsel %vm606, %v1378, %v1386
      %v1464 = vsel %vm606, %v1380, %v1388
      %v1465 = vsel %vm606, %v1430, %v1374
      %v1466 = vsel %vm606, %v1432, %v1376
      %v1467 = vsel %vm606, %v1434, %v1378
      %v1468 = vsel %vm606, %v1436, %v1380
      %v1469 = vsel %vm648, %v1465, 0.0
      %v1470 = vsel %vm649, %v1461, 0.0
      %v1471 = vsel %vm650, %v1457, 0.0
      %v1472 = vsel %vm651, %v1453, 0.0
      %v1473 = vsel %vm652, %v1449, 0.0
      %v1474 = vsel %vm653, %v1445, 0.0
      %v1475 = vsel %vm654, %v1441, 0.0
      %v1476 = vsel %vm655, %v1437, 0.0
      %v1477 = vsel %vm648, %v1466, 0.0
      %v1478 = vsel %vm649, %v1462, 0.0
      %v1479 = vsel %vm650, %v1458, 0.0
      %v1480 = vsel %vm651, %v1454, 0.0
      %v1481 = vsel %vm652, %v1450, 0.0
      %v1482 = vsel %vm653, %v1446, 0.0
      %v1483 = vsel %vm654, %v1442, 0.0
      %v1484 = vsel %vm655, %v1438, 0.0
      %v1485 = vsel %vm648, %v1467, 0.0
      %v1486 = vsel %vm649, %v1463, 0.0
      %v1487 = vsel %vm650, %v1459, 0.0
      %v1488 = vsel %vm651, %v1455, 0.0
      %v1489 = vsel %vm652, %v1451, 0.0
      %v1490 = vsel %vm653, %v1447, 0.0
      %v1491 = vsel %vm654, %v1443, 0.0
      %v1492 = vsel %vm655, %v1439, 0.0
      %v1493 = vsel %vm648, %v1468, 0.0
      %v1494 = vsel %vm649, %v1464, 0.0
      %v1495 = vsel %vm650, %v1460, 0.0
      %v1496 = vsel %vm651, %v1456, 0.0
      %v1497 = vsel %vm652, %v1452, 0.0
      %v1498 = vsel %vm653, %v1448, 0.0
      %v1499 = vsel %vm654, %v1444, 0.0
      %v1500 = vsel %vm655, %v1440, 0.0
      %1501 = vrot.lane.b32.xlu0 %v1201, 2
      %v1502 = vpop.permute.xlu0 %1501
      %1503 = vrot.lane.b32.xlu0 %v1209, 2
      %v1504 = vpop.permute.xlu0 %1503
      %1505 = vrot.lane.b32.xlu0 %v1217, 2
      %v1506 = vpop.permute.xlu0 %1505
      %1507 = vrot.lane.b32.xlu0 %v1225, 2
      %v1508 = vpop.permute.xlu0 %1507
      %1509 = vrot.lane.b32.xlu0 %v1202, 2
      %v1510 = vpop.permute.xlu0 %1509
      %1511 = vrot.lane.b32.xlu0 %v1210, 2
      %v1512 = vpop.permute.xlu0 %1511
      %1513 = vrot.lane.b32.xlu0 %v1218, 2
      %v1514 = vpop.permute.xlu0 %1513
      %1515 = vrot.lane.b32.xlu0 %v1226, 2
      %v1516 = vpop.permute.xlu0 %1515
      %1517 = vrot.lane.b32.xlu0 %v1203, 2
      %v1518 = vpop.permute.xlu0 %1517
      %1519 = vrot.lane.b32.xlu0 %v1211, 2
      %v1520 = vpop.permute.xlu0 %1519
      %1521 = vrot.lane.b32.xlu0 %v1219, 2
      %v1522 = vpop.permute.xlu0 %1521
      %1523 = vrot.lane.b32.xlu0 %v1227, 2
      %v1524 = vpop.permute.xlu0 %1523
      %1525 = vrot.lane.b32.xlu0 %v1204, 2
      %v1526 = vpop.permute.xlu0 %1525
      %1527 = vrot.lane.b32.xlu0 %v1212, 2
      %v1528 = vpop.permute.xlu0 %1527
      %1529 = vrot.lane.b32.xlu0 %v1220, 2
      %v1530 = vpop.permute.xlu0 %1529
      %1531 = vrot.lane.b32.xlu0 %v1228, 2
      %v1532 = vpop.permute.xlu0 %1531
      %1533 = vrot.lane.b32.xlu0 %v1205, 2
      %v1534 = vpop.permute.xlu0 %1533
      %1535 = vrot.lane.b32.xlu0 %v1213, 2
      %v1536 = vpop.permute.xlu0 %1535
      %1537 = vrot.lane.b32.xlu0 %v1221, 2
      %v1538 = vpop.permute.xlu0 %1537
      %1539 = vrot.lane.b32.xlu0 %v1229, 2
      %v1540 = vpop.permute.xlu0 %1539
      %1541 = vrot.lane.b32.xlu0 %v1206, 2
      %v1542 = vpop.permute.xlu0 %1541
      %1543 = vrot.lane.b32.xlu0 %v1214, 2
      %v1544 = vpop.permute.xlu0 %1543
      %1545 = vrot.lane.b32.xlu0 %v1222, 2
      %v1546 = vpop.permute.xlu0 %1545
      %1547 = vrot.lane.b32.xlu0 %v1230, 2
      %v1548 = vpop.permute.xlu0 %1547
      %1549 = vrot.lane.b32.xlu0 %v1207, 2
      %v1550 = vpop.permute.xlu0 %1549
      %1551 = vrot.lane.b32.xlu0 %v1215, 2
      %v1552 = vpop.permute.xlu0 %1551
      %1553 = vrot.lane.b32.xlu0 %v1223, 2
      %v1554 = vpop.permute.xlu0 %1553
      %1555 = vrot.lane.b32.xlu0 %v1231, 2
      %v1556 = vpop.permute.xlu0 %1555
      %1557 = vrot.lane.b32.xlu0 %v1208, 2
      %v1558 = vpop.permute.xlu0 %1557
      %1559 = vrot.lane.b32.xlu0 %v1216, 2
      %v1560 = vpop.permute.xlu0 %1559
      %1561 = vrot.lane.b32.xlu0 %v1224, 2
      %v1562 = vpop.permute.xlu0 %1561
      %1563 = vrot.lane.b32.xlu0 %v1232, 2
      %v1564 = vpop.permute.xlu0 %1563
      %v1565 = vsel %vm680, %v1550, %v1558
      %v1566 = vsel %vm680, %v1552, %v1560
      %v1567 = vsel %vm680, %v1554, %v1562
      %v1568 = vsel %vm680, %v1556, %v1564
      %v1569 = vsel %vm680, %v1542, %v1550
      %v1570 = vsel %vm680, %v1544, %v1552
      %v1571 = vsel %vm680, %v1546, %v1554
      %v1572 = vsel %vm680, %v1548, %v1556
      %v1573 = vsel %vm680, %v1534, %v1542
      %v1574 = vsel %vm680, %v1536, %v1544
      %v1575 = vsel %vm680, %v1538, %v1546
      %v1576 = vsel %vm680, %v1540, %v1548
      %v1577 = vsel %vm680, %v1526, %v1534
      %v1578 = vsel %vm680, %v1528, %v1536
      %v1579 = vsel %vm680, %v1530, %v1538
      %v1580 = vsel %vm680, %v1532, %v1540
      %v1581 = vsel %vm680, %v1518, %v1526
      %v1582 = vsel %vm680, %v1520, %v1528
      %v1583 = vsel %vm680, %v1522, %v1530
      %v1584 = vsel %vm680, %v1524, %v1532
      %v1585 = vsel %vm680, %v1510, %v1518
      %v1586 = vsel %vm680, %v1512, %v1520
      %v1587 = vsel %vm680, %v1514, %v1522
      %v1588 = vsel %vm680, %v1516, %v1524
      %v1589 = vsel %vm680, %v1502, %v1510
      %v1590 = vsel %vm680, %v1504, %v1512
      %v1591 = vsel %vm680, %v1506, %v1514
      %v1592 = vsel %vm680, %v1508, %v1516
      %v1593 = vsel %vm680, %v1558, %v1502
      %v1594 = vsel %vm680, %v1560, %v1504
      %v1595 = vsel %vm680, %v1562, %v1506
      %v1596 = vsel %vm680, %v1564, %v1508
      %v1597 = vsel %vm722, %v1593, 0.0
      %v1598 = vsel %vm723, %v1589, 0.0
      %v1599 = vsel %vm724, %v1585, 0.0
      %v1600 = vsel %vm725, %v1581, 0.0
      %v1601 = vsel %vm726, %v1577, 0.0
      %v1602 = vsel %vm727, %v1573, 0.0
      %v1603 = vsel %vm728, %v1569, 0.0
      %v1604 = vsel %vm729, %v1565, 0.0
      %v1605 = vsel %vm722, %v1594, 0.0
      %v1606 = vsel %vm723, %v1590, 0.0
      %v1607 = vsel %vm724, %v1586, 0.0
      %v1608 = vsel %vm725, %v1582, 0.0
      %v1609 = vsel %vm726, %v1578, 0.0
      %v1610 = vsel %vm727, %v1574, 0.0
      %v1611 = vsel %vm728, %v1570, 0.0
      %v1612 = vsel %vm729, %v1566, 0.0
      %v1613 = vsel %vm722, %v1595, 0.0
      %v1614 = vsel %vm723, %v1591, 0.0
      %v1615 = vsel %vm724, %v1587, 0.0
      %v1616 = vsel %vm725, %v1583, 0.0
      %v1617 = vsel %vm726, %v1579, 0.0
      %v1618 = vsel %vm727, %v1575, 0.0
      %v1619 = vsel %vm728, %v1571, 0.0
      %v1620 = vsel %vm729, %v1567, 0.0
      %v1621 = vsel %vm722, %v1596, 0.0
      %v1622 = vsel %vm723, %v1592, 0.0
      %v1623 = vsel %vm724, %v1588, 0.0
      %v1624 = vsel %vm725, %v1584, 0.0
      %v1625 = vsel %vm726, %v1580, 0.0
      %v1626 = vsel %vm727, %v1576, 0.0
      %v1627 = vsel %vm728, %v1572, 0.0
      %v1628 = vsel %vm729, %v1568, 0.0
      %1629 = vrot.lane.b32.xlu0 %v1201, 1
      %v1630 = vpop.permute.xlu0 %1629
      %1631 = vrot.lane.b32.xlu0 %v1209, 1
      %v1632 = vpop.permute.xlu0 %1631
      %1633 = vrot.lane.b32.xlu0 %v1217, 1
      %v1634 = vpop.permute.xlu0 %1633
      %1635 = vrot.lane.b32.xlu0 %v1225, 1
      %v1636 = vpop.permute.xlu0 %1635
      %1637 = vrot.lane.b32.xlu0 %v1202, 1
      %v1638 = vpop.permute.xlu0 %1637
      %1639 = vrot.lane.b32.xlu0 %v1210, 1
      %v1640 = vpop.permute.xlu0 %1639
      %1641 = vrot.lane.b32.xlu0 %v1218, 1
      %v1642 = vpop.permute.xlu0 %1641
      %1643 = vrot.lane.b32.xlu0 %v1226, 1
      %v1644 = vpop.permute.xlu0 %1643
      %1645 = vrot.lane.b32.xlu0 %v1203, 1
      %v1646 = vpop.permute.xlu0 %1645
      %1647 = vrot.lane.b32.xlu0 %v1211, 1
      %v1648 = vpop.permute.xlu0 %1647
      %1649 = vrot.lane.b32.xlu0 %v1219, 1
      %v1650 = vpop.permute.xlu0 %1649
      %1651 = vrot.lane.b32.xlu0 %v1227, 1
      %v1652 = vpop.permute.xlu0 %1651
      %1653 = vrot.lane.b32.xlu0 %v1204, 1
      %v1654 = vpop.permute.xlu0 %1653
      %1655 = vrot.lane.b32.xlu0 %v1212, 1
      %v1656 = vpop.permute.xlu0 %1655
      %1657 = vrot.lane.b32.xlu0 %v1220, 1
      %v1658 = vpop.permute.xlu0 %1657
      %1659 = vrot.lane.b32.xlu0 %v1228, 1
      %v1660 = vpop.permute.xlu0 %1659
      %1661 = vrot.lane.b32.xlu0 %v1205, 1
      %v1662 = vpop.permute.xlu0 %1661
      %1663 = vrot.lane.b32.xlu0 %v1213, 1
      %v1664 = vpop.permute.xlu0 %1663
      %1665 = vrot.lane.b32.xlu0 %v1221, 1
      %v1666 = vpop.permute.xlu0 %1665
      %1667 = vrot.lane.b32.xlu0 %v1229, 1
      %v1668 = vpop.permute.xlu0 %1667
      %1669 = vrot.lane.b32.xlu0 %v1206, 1
      %v1670 = vpop.permute.xlu0 %1669
      %1671 = vrot.lane.b32.xlu0 %v1214, 1
      %v1672 = vpop.permute.xlu0 %1671
      %1673 = vrot.lane.b32.xlu0 %v1222, 1
      %v1674 = vpop.permute.xlu0 %1673
      %1675 = vrot.lane.b32.xlu0 %v1230, 1
      %v1676 = vpop.permute.xlu0 %1675
      %1677 = vrot.lane.b32.xlu0 %v1207, 1
      %v1678 = vpop.permute.xlu0 %1677
      %1679 = vrot.lane.b32.xlu0 %v1215, 1
      %v1680 = vpop.permute.xlu0 %1679
      %1681 = vrot.lane.b32.xlu0 %v1223, 1
      %v1682 = vpop.permute.xlu0 %1681
      %1683 = vrot.lane.b32.xlu0 %v1231, 1
      %v1684 = vpop.permute.xlu0 %1683
      %1685 = vrot.lane.b32.xlu0 %v1208, 1
      %v1686 = vpop.permute.xlu0 %1685
      %1687 = vrot.lane.b32.xlu0 %v1216, 1
      %v1688 = vpop.permute.xlu0 %1687
      %1689 = vrot.lane.b32.xlu0 %v1224, 1
      %v1690 = vpop.permute.xlu0 %1689
      %1691 = vrot.lane.b32.xlu0 %v1232, 1
      %v1692 = vpop.permute.xlu0 %1691
      %v1693 = vsel %vm754, %v1678, %v1686
      %v1694 = vsel %vm754, %v1680, %v1688
      %v1695 = vsel %vm754, %v1682, %v1690
      %v1696 = vsel %vm754, %v1684, %v1692
      %v1697 = vsel %vm754, %v1670, %v1678
      %v1698 = vsel %vm754, %v1672, %v1680
      %v1699 = vsel %vm754, %v1674, %v1682
      %v1700 = vsel %vm754, %v1676, %v1684
      %v1701 = vsel %vm754, %v1662, %v1670
      %v1702 = vsel %vm754, %v1664, %v1672
      %v1703 = vsel %vm754, %v1666, %v1674
      %v1704 = vsel %vm754, %v1668, %v1676
      %v1705 = vsel %vm754, %v1654, %v1662
      %v1706 = vsel %vm754, %v1656, %v1664
      %v1707 = vsel %vm754, %v1658, %v1666
      %v1708 = vsel %vm754, %v1660, %v1668
      %v1709 = vsel %vm754, %v1646, %v1654
      %v1710 = vsel %vm754, %v1648, %v1656
      %v1711 = vsel %vm754, %v1650, %v1658
      %v1712 = vsel %vm754, %v1652, %v1660
      %v1713 = vsel %vm754, %v1638, %v1646
      %v1714 = vsel %vm754, %v1640, %v1648
      %v1715 = vsel %vm754, %v1642, %v1650
      %v1716 = vsel %vm754, %v1644, %v1652
      %v1717 = vsel %vm754, %v1630, %v1638
      %v1718 = vsel %vm754, %v1632, %v1640
      %v1719 = vsel %vm754, %v1634, %v1642
      %v1720 = vsel %vm754, %v1636, %v1644
      %v1721 = vsel %vm754, %v1686, %v1630
      %v1722 = vsel %vm754, %v1688, %v1632
      %v1723 = vsel %vm754, %v1690, %v1634
      %v1724 = vsel %vm754, %v1692, %v1636
      %v1725 = vsel %vm796, %v1721, 0.0
      %v1726 = vsel %vm797, %v1717, 0.0
      %v1727 = vsel %vm798, %v1713, 0.0
      %v1728 = vsel %vm799, %v1709, 0.0
      %v1729 = vsel %vm800, %v1705, 0.0
      %v1730 = vsel %vm801, %v1701, 0.0
      %v1731 = vsel %vm802, %v1697, 0.0
      %v1732 = vsel %vm803, %v1693, 0.0
      %v1733 = vsel %vm796, %v1722, 0.0
      %v1734 = vsel %vm797, %v1718, 0.0
      %v1735 = vsel %vm798, %v1714, 0.0
      %v1736 = vsel %vm799, %v1710, 0.0
      %v1737 = vsel %vm800, %v1706, 0.0
      %v1738 = vsel %vm801, %v1702, 0.0
      %v1739 = vsel %vm802, %v1698, 0.0
      %v1740 = vsel %vm803, %v1694, 0.0
      %v1741 = vsel %vm796, %v1723, 0.0
      %v1742 = vsel %vm797, %v1719, 0.0
      %v1743 = vsel %vm798, %v1715, 0.0
      %v1744 = vsel %vm799, %v1711, 0.0
      %v1745 = vsel %vm800, %v1707, 0.0
      %v1746 = vsel %vm801, %v1703, 0.0
      %v1747 = vsel %vm802, %v1699, 0.0
      %v1748 = vsel %vm803, %v1695, 0.0
      %v1749 = vsel %vm796, %v1724, 0.0
      %v1750 = vsel %vm797, %v1720, 0.0
      %v1751 = vsel %vm798, %v1716, 0.0
      %v1752 = vsel %vm799, %v1712, 0.0
      %v1753 = vsel %vm800, %v1708, 0.0
      %v1754 = vsel %vm801, %v1704, 0.0
      %v1755 = vsel %vm802, %v1700, 0.0
      %v1756 = vsel %vm803, %v1696, 0.0
      %1758 = vset.pattern.permute.xlu0 0
      %1759 = vperm.xlu0 %1758, %v1241
      %v1760 = vpop.permute.xlu0 %1759
      %1763 = vset.pattern.permute.xlu0 0
      %1764 = vperm.xlu0 %1763, %v1242
      %v1765 = vpop.permute.xlu0 %1764
      %1768 = vset.pattern.permute.xlu0 0
      %1769 = vperm.xlu0 %1768, %v1243
      %v1770 = vpop.permute.xlu0 %1769
      %1773 = vset.pattern.permute.xlu0 0
      %1774 = vperm.xlu0 %1773, %v1244
      %v1775 = vpop.permute.xlu0 %1774
      %vm1777 = vcmask 261120
      %v1779 = vsel %vm1777, %v1234, 0
      %v1782 = vsel %vm1777, %v1236, 0
      %v1785 = vsel %vm1777, %v1238, 0
      %v1788 = vsel %vm1777, %v1240, 0
      %1790 = vmatprep.subr.mxu0 %v1342
      %1791 = vmatpush1.msra.mxu0 %v1341
      %1792 = vmatprep.subr.mxu0 %v1350
      %1793 = vmatpush1.msra.mxu0 %v1349
      %1794 = vmatprep.subr.mxu0 %v1358
      %1795 = vmatpush1.msra.mxu0 %v1357
      %1796 = vmatprep.subr.mxu0 %v1366
      %1797 = vmatpush1.msra.mxu0 %v1365
      %1798 = vmatprep.subr.mxu0 %v1470
      %1799 = vmatpush1.msra.mxu0 %v1469
      %1800 = vmatprep.subr.mxu0 %v1478
      %1801 = vmatpush1.msra.mxu0 %v1477
      %1802 = vmatprep.subr.mxu0 %v1486
      %1803 = vmatpush1.msra.mxu0 %v1485
      %1804 = vmatprep.subr.mxu0 %v1494
      %1805 = vmatpush1.msra.mxu0 %v1493
      %1806 = vmatprep.subr.mxu0 %v1598
      %1807 = vmatpush1.msra.mxu0 %v1597
      %1808 = vmatprep.subr.mxu0 %v1606
      %1809 = vmatpush1.msra.mxu0 %v1605
      %1810 = vmatprep.subr.mxu0 %v1614
      %1811 = vmatpush1.msra.mxu0 %v1613
      %1812 = vmatprep.subr.mxu0 %v1622
      %1813 = vmatpush1.msra.mxu0 %v1621
      %1814 = vmatprep.subr.mxu0 %v1726
      %1815 = vmatpush1.msra.mxu0 %v1725
      %1816 = vmatprep.subr.mxu0 %v1734
      %1817 = vmatpush1.msra.mxu0 %v1733
      %1818 = vmatprep.subr.mxu0 %v1742
      %1819 = vmatpush1.msra.mxu0 %v1741
      %1820 = vmatprep.subr.mxu0 %v1750
      %1821 = vmatpush1.msra.mxu0 %v1749
      %1822 = vmatprep.subr.mxu0 %v1202
      %1823 = vmatpush1.msra.mxu0 %v1201
      %1824 = vmatprep.subr.mxu0 %v1210
      %1825 = vmatpush1.msra.mxu0 %v1209
      %1826 = vmatprep.subr.mxu0 %v1218
      %1827 = vmatpush1.msra.mxu0 %v1217
      %1828 = vmatprep.subr.mxu0 %v1226
      %1829 = vmatpush1.msra.mxu0 %v1225
      %1830 = vmatprep.subr.mxu0 0.0
      %1831 = vmatpush1.msra.mxu0 0.0
      %1832 = vmatprep.subr.mxu0 0.0
      %1833 = vmatpush1.msra.mxu0 0.0
      %1834 = vmatprep.subr.mxu0 0.0
      %1835 = vmatpush1.msra.mxu0 0.0
      %1836 = vmatprep.subr.mxu0 0.0
      %1837 = vmatpush1.msra.mxu0 0.0
      %1838 = vmatprep.subr.mxu0 0.0
      %1839 = vmatpush1.msra.mxu0 0.0
      %1840 = vmatprep.subr.mxu0 0.0
      %1841 = vmatpush1.msra.mxu0 0.0
      %1842 = vmatprep.subr.mxu0 0.0
      %1843 = vmatpush1.msra.mxu0 0.0
      %1844 = vmatprep.subr.mxu0 0.0
      %1845 = vmatpush1.msra.mxu0 0.0
      %1846 = vmatprep.subr.mxu0 0.0
      %1847 = vmatpush1.msra.mxu0 0.0
      %1848 = vmatprep.subr.mxu0 0.0
      %1849 = vmatpush1.msra.mxu0 0.0
      %1850 = vmatprep.subr.mxu0 0.0
      %1851 = vmatpush1.msra.mxu0 0.0
      %1852 = vmatprep.subr.mxu0 0.0
      %1853 = vmatpush1.msra.mxu0 0.0
      %1854 = vmatprep.mubr.f32.mxu0 %v1779
      %1855 = vmatmul.mubr.f32.gmra.mrb[0].mxu0 %v1233
      %v1856 = vpop.f32.mrb[0].mxu0
      %v1857 = vadd.f32 %v1760, %v1856
      %v1858 = vpop.f32.mrb[0].mxu0
      %v1859 = vadd.f32 %v1760, %v1858
      %1860 = vmatprep.mubr.f32.mxu0 %v1782
      %1861 = vmatmul.mubr.f32.gmra.mrb[0].mxu0 %v1235
      %v1862 = vpop.f32.mrb[0].mxu0
      %v1863 = vadd.f32 %v1765, %v1862
      %v1864 = vpop.f32.mrb[0].mxu0
      %v1865 = vadd.f32 %v1765, %v1864
      %1866 = vmatprep.mubr.f32.mxu0 %v1785
      %1867 = vmatmul.mubr.f32.gmra.mrb[0].mxu0 %v1237
      %v1868 = vpop.f32.mrb[0].mxu0
      %v1869 = vadd.f32 %v1770, %v1868
      %v1870 = vpop.f32.mrb[0].mxu0
      %v1871 = vadd.f32 %v1770, %v1870
      %1872 = vmatprep.mubr.f32.mxu0 %v1788
      %1873 = vmatmul.mubr.f32.gmra.mrb[0].mxu0 %v1239
      %v1874 = vpop.f32.mrb[0].mxu0
      %v1875 = vadd.f32 %v1775, %v1874
      %v1876 = vpop.f32.mrb[0].mxu0
      %v1877 = vadd.f32 %v1775, %v1876
      %1878 = vdwg.mxu0
      %1879 = vmatprep.subr.mxu0 %v1344
      %1880 = vmatpush1.msra.mxu0 %v1343
      %1881 = vmatprep.subr.mxu0 %v1352
      %1882 = vmatpush1.msra.mxu0 %v1351
      %1883 = vmatprep.subr.mxu0 %v1360
      %1884 = vmatpush1.msra.mxu0 %v1359
      %1885 = vmatprep.subr.mxu0 %v1368
      %1886 = vmatpush1.msra.mxu0 %v1367
      %1887 = vmatprep.subr.mxu0 %v1472
      %1888 = vmatpush1.msra.mxu0 %v1471
      %1889 = vmatprep.subr.mxu0 %v1480
      %1890 = vmatpush1.msra.mxu0 %v1479
      %1891 = vmatprep.subr.mxu0 %v1488
      %1892 = vmatpush1.msra.mxu0 %v1487
      %1893 = vmatprep.subr.mxu0 %v1496
      %1894 = vmatpush1.msra.mxu0 %v1495
      %1895 = vmatprep.subr.mxu0 %v1600
      %1896 = vmatpush1.msra.mxu0 %v1599
      %1897 = vmatprep.subr.mxu0 %v1608
      %1898 = vmatpush1.msra.mxu0 %v1607
      %1899 = vmatprep.subr.mxu0 %v1616
      %1900 = vmatpush1.msra.mxu0 %v1615
      %1901 = vmatprep.subr.mxu0 %v1624
      %1902 = vmatpush1.msra.mxu0 %v1623
      %1903 = vmatprep.subr.mxu0 %v1728
      %1904 = vmatpush1.msra.mxu0 %v1727
      %1905 = vmatprep.subr.mxu0 %v1736
      %1906 = vmatpush1.msra.mxu0 %v1735
      %1907 = vmatprep.subr.mxu0 %v1744
      %1908 = vmatpush1.msra.mxu0 %v1743
      %1909 = vmatprep.subr.mxu0 %v1752
      %1910 = vmatpush1.msra.mxu0 %v1751
      %1911 = vmatprep.subr.mxu0 %v1204
      %1912 = vmatpush1.msra.mxu0 %v1203
      %1913 = vmatprep.subr.mxu0 %v1212
      %1914 = vmatpush1.msra.mxu0 %v1211
      %1915 = vmatprep.subr.mxu0 %v1220
      %1916 = vmatpush1.msra.mxu0 %v1219
      %1917 = vmatprep.subr.mxu0 %v1228
      %1918 = vmatpush1.msra.mxu0 %v1227
      %1919 = vmatprep.subr.mxu0 0.0
      %1920 = vmatpush1.msra.mxu0 0.0
      %1921 = vmatprep.subr.mxu0 0.0
      %1922 = vmatpush1.msra.mxu0 0.0
      %1923 = vmatprep.subr.mxu0 0.0
      %1924 = vmatpush1.msra.mxu0 0.0
      %1925 = vmatprep.subr.mxu0 0.0
      %1926 = vmatpush1.msra.mxu0 0.0
      %1927 = vmatprep.subr.mxu0 0.0
      %1928 = vmatpush1.msra.mxu0 0.0
      %1929 = vmatprep.subr.mxu0 0.0
      %1930 = vmatpush1.msra.mxu0 0.0
      %1931 = vmatprep.subr.mxu0 0.0
      %1932 = vmatpush1.msra.mxu0 0.0
      %1933 = vmatprep.subr.mxu0 0.0
      %1934 = vmatpush1.msra.mxu0 0.0
      %1935 = vmatprep.subr.mxu0 0.0
      %1936 = vmatpush1.msra.mxu0 0.0
      %1937 = vmatprep.subr.mxu0 0.0
      %1938 = vmatpush1.msra.mxu0 0.0
      %1939 = vmatprep.subr.mxu0 0.0
      %1940 = vmatpush1.msra.mxu0 0.0
      %1941 = vmatprep.subr.mxu0 0.0
      %1942 = vmatpush1.msra.mxu0 0.0
      %1943 = vmatprep.mubr.f32.mxu0 %v1779
      %1944 = vmatmul.mubr.f32.gmra.mrb[0].mxu0 %v1233
      %v1945 = vpop.f32.mrb[0].mxu0
      %v1946 = vadd.f32 %v1760, %v1945
      %v1947 = vpop.f32.mrb[0].mxu0
      %v1948 = vadd.f32 %v1760, %v1947
      %1949 = vmatprep.mubr.f32.mxu0 %v1782
      %1950 = vmatmul.mubr.f32.gmra.mrb[0].mxu0 %v1235
      %v1951 = vpop.f32.mrb[0].mxu0
      %v1952 = vadd.f32 %v1765, %v1951
      %v1953 = vpop.f32.mrb[0].mxu0
      %v1954 = vadd.f32 %v1765, %v1953
      %1955 = vmatprep.mubr.f32.mxu0 %v1785
      %1956 = vmatmul.mubr.f32.gmra.mrb[0].mxu0 %v1237
      %v1957 = vpop.f32.mrb[0].mxu0
      %v1958 = vadd.f32 %v1770, %v1957
      %v1959 = vpop.f32.mrb[0].mxu0
      %v1960 = vadd.f32 %v1770, %v1959
      %1961 = vmatprep.mubr.f32.mxu0 %v1788
      %1962 = vmatmul.mubr.f32.gmra.mrb[0].mxu0 %v1239
      %v1963 = vpop.f32.mrb[0].mxu0
      %v1964 = vadd.f32 %v1775, %v1963
      %v1965 = vpop.f32.mrb[0].mxu0
      %v1966 = vadd.f32 %v1775, %v1965
      %1967 = vdwg.mxu0
      %1968 = vmatprep.subr.mxu0 %v1346
      %1969 = vmatpush1.msra.mxu0 %v1345
      %1970 = vmatprep.subr.mxu0 %v1354
      %1971 = vmatpush1.msra.mxu0 %v1353
      %1972 = vmatprep.subr.mxu0 %v1362
      %1973 = vmatpush1.msra.mxu0 %v1361
      %1974 = vmatprep.subr.mxu0 %v1370
      %1975 = vmatpush1.msra.mxu0 %v1369
      %1976 = vmatprep.subr.mxu0 %v1474
      %1977 = vmatpush1.msra.mxu0 %v1473
      %1978 = vmatprep.subr.mxu0 %v1482
      %1979 = vmatpush1.msra.mxu0 %v1481
      %1980 = vmatprep.subr.mxu0 %v1490
      %1981 = vmatpush1.msra.mxu0 %v1489
      %1982 = vmatprep.subr.mxu0 %v1498
      %1983 = vmatpush1.msra.mxu0 %v1497
      %1984 = vmatprep.subr.mxu0 %v1602
      %1985 = vmatpush1.msra.mxu0 %v1601
      %1986 = vmatprep.subr.mxu0 %v1610
      %1987 = vmatpush1.msra.mxu0 %v1609
      %1988 = vmatprep.subr.mxu0 %v1618
      %1989 = vmatpush1.msra.mxu0 %v1617
      %1990 = vmatprep.subr.mxu0 %v1626
      %1991 = vmatpush1.msra.mxu0 %v1625
      %1992 = vmatprep.subr.mxu0 %v1730
      %1993 = vmatpush1.msra.mxu0 %v1729
      %1994 = vmatprep.subr.mxu0 %v1738
      %1995 = vmatpush1.msra.mxu0 %v1737
      %1996 = vmatprep.subr.mxu0 %v1746
      %1997 = vmatpush1.msra.mxu0 %v1745
      %1998 = vmatprep.subr.mxu0 %v1754
      %1999 = vmatpush1.msra.mxu0 %v1753
      %2000 = vmatprep.subr.mxu0 %v1206
      %2001 = vmatpush1.msra.mxu0 %v1205
      %2002 = vmatprep.subr.mxu0 %v1214
      %2003 = vmatpush1.msra.mxu0 %v1213
      %2004 = vmatprep.subr.mxu0 %v1222
      %2005 = vmatpush1.msra.mxu0 %v1221
      %2006 = vmatprep.subr.mxu0 %v1230
      %2007 = vmatpush1.msra.mxu0 %v1229
      %2008 = vmatprep.subr.mxu0 0.0
      %2009 = vmatpush1.msra.mxu0 0.0
      %2010 = vmatprep.subr.mxu0 0.0
      %2011 = vmatpush1.msra.mxu0 0.0
      %2012 = vmatprep.subr.mxu0 0.0
      %2013 = vmatpush1.msra.mxu0 0.0
      %2014 = vmatprep.subr.mxu0 0.0
      %2015 = vmatpush1.msra.mxu0 0.0
      %2016 = vmatprep.subr.mxu0 0.0
      %2017 = vmatpush1.msra.mxu0 0.0
      %2018 = vmatprep.subr.mxu0 0.0
      %2019 = vmatpush1.msra.mxu0 0.0
      %2020 = vmatprep.subr.mxu0 0.0
      %2021 = vmatpush1.msra.mxu0 0.0
      %2022 = vmatprep.subr.mxu0 0.0
      %2023 = vmatpush1.msra.mxu0 0.0
      %2024 = vmatprep.subr.mxu0 0.0
      %2025 = vmatpush1.msra.mxu0 0.0
      %2026 = vmatprep.subr.mxu0 0.0
      %2027 = vmatpush1.msra.mxu0 0.0
      %2028 = vmatprep.subr.mxu0 0.0
      %2029 = vmatpush1.msra.mxu0 0.0
      %2030 = vmatprep.subr.mxu0 0.0
      %2031 = vmatpush1.msra.mxu0 0.0
      %2032 = vmatprep.mubr.f32.mxu0 %v1779
      %2033 = vmatmul.mubr.f32.gmra.mrb[0].mxu0 %v1233
      %v2034 = vpop.f32.mrb[0].mxu0
      %v2035 = vadd.f32 %v1760, %v2034
      %v2036 = vpop.f32.mrb[0].mxu0
      %v2037 = vadd.f32 %v1760, %v2036
      %2038 = vmatprep.mubr.f32.mxu0 %v1782
      %2039 = vmatmul.mubr.f32.gmra.mrb[0].mxu0 %v1235
      %v2040 = vpop.f32.mrb[0].mxu0
      %v2041 = vadd.f32 %v1765, %v2040
      %v2042 = vpop.f32.mrb[0].mxu0
      %v2043 = vadd.f32 %v1765, %v2042
      %2044 = vmatprep.mubr.f32.mxu0 %v1785
      %2045 = vmatmul.mubr.f32.gmra.mrb[0].mxu0 %v1237
      %v2046 = vpop.f32.mrb[0].mxu0
      %v2047 = vadd.f32 %v1770, %v2046
      %v2048 = vpop.f32.mrb[0].mxu0
      %v2049 = vadd.f32 %v1770, %v2048
      %2050 = vmatprep.mubr.f32.mxu0 %v1788
      %2051 = vmatmul.mubr.f32.gmra.mrb[0].mxu0 %v1239
      %v2052 = vpop.f32.mrb[0].mxu0
      %v2053 = vadd.f32 %v1775, %v2052
      %v2054 = vpop.f32.mrb[0].mxu0
      %v2055 = vadd.f32 %v1775, %v2054
      %2056 = vdwg.mxu0
      %2057 = vmatprep.subr.mxu0 %v1348
      %2058 = vmatpush1.msra.mxu0 %v1347
      %2059 = vmatprep.subr.mxu0 %v1356
      %2060 = vmatpush1.msra.mxu0 %v1355
      %2061 = vmatprep.subr.mxu0 %v1364
      %2062 = vmatpush1.msra.mxu0 %v1363
      %2063 = vmatprep.subr.mxu0 %v1372
      %2064 = vmatpush1.msra.mxu0 %v1371
      %2065 = vmatprep.subr.mxu0 %v1476
      %2066 = vmatpush1.msra.mxu0 %v1475
      %2067 = vmatprep.subr.mxu0 %v1484
      %2068 = vmatpush1.msra.mxu0 %v1483
      %2069 = vmatprep.subr.mxu0 %v1492
      %2070 = vmatpush1.msra.mxu0 %v1491
      %2071 = vmatprep.subr.mxu0 %v1500
      %2072 = vmatpush1.msra.mxu0 %v1499
      %2073 = vmatprep.subr.mxu0 %v1604
      %2074 = vmatpush1.msra.mxu0 %v1603
      %2075 = vmatprep.subr.mxu0 %v1612
      %2076 = vmatpush1.msra.mxu0 %v1611
      %2077 = vmatprep.subr.mxu0 %v1620
      %2078 = vmatpush1.msra.mxu0 %v1619
      %2079 = vmatprep.subr.mxu0 %v1628
      %2080 = vmatpush1.msra.mxu0 %v1627
      %2081 = vmatprep.subr.mxu0 %v1732
      %2082 = vmatpush1.msra.mxu0 %v1731
      %2083 = vmatprep.subr.mxu0 %v1740
      %2084 = vmatpush1.msra.mxu0 %v1739
      %2085 = vmatprep.subr.mxu0 %v1748
      %2086 = vmatpush1.msra.mxu0 %v1747
      %2087 = vmatprep.subr.mxu0 %v1756
      %2088 = vmatpush1.msra.mxu0 %v1755
      %2089 = vmatprep.subr.mxu0 %v1208
      %2090 = vmatpush1.msra.mxu0 %v1207
      %2091 = vmatprep.subr.mxu0 %v1216
      %2092 = vmatpush1.msra.mxu0 %v1215
      %2093 = vmatprep.subr.mxu0 %v1224
      %2094 = vmatpush1.msra.mxu0 %v1223
      %2095 = vmatprep.subr.mxu0 %v1232
      %2096 = vmatpush1.msra.mxu0 %v1231
      %2097 = vmatprep.subr.mxu0 0.0
      %2098 = vmatpush1.msra.mxu0 0.0
      %2099 = vmatprep.subr.mxu0 0.0
      %2100 = vmatpush1.msra.mxu0 0.0
      %2101 = vmatprep.subr.mxu0 0.0
      %2102 = vmatpush1.msra.mxu0 0.0
      %2103 = vmatprep.subr.mxu0 0.0
      %2104 = vmatpush1.msra.mxu0 0.0
      %2105 = vmatprep.subr.mxu0 0.0
      %2106 = vmatpush1.msra.mxu0 0.0
      %2107 = vmatprep.subr.mxu0 0.0
      %2108 = vmatpush1.msra.mxu0 0.0
      %2109 = vmatprep.subr.mxu0 0.0
      %2110 = vmatpush1.msra.mxu0 0.0
      %2111 = vmatprep.subr.mxu0 0.0
      %2112 = vmatpush1.msra.mxu0 0.0
      %2113 = vmatprep.subr.mxu0 0.0
      %2114 = vmatpush1.msra.mxu0 0.0
      %2115 = vmatprep.subr.mxu0 0.0
      %2116 = vmatpush1.msra.mxu0 0.0
      %2117 = vmatprep.subr.mxu0 0.0
      %2118 = vmatpush1.msra.mxu0 0.0
      %2119 = vmatprep.subr.mxu0 0.0
      %2120 = vmatpush1.msra.mxu0 0.0
      %2121 = vmatprep.mubr.f32.mxu0 %v1779
      %2122 = vmatmul.mubr.f32.gmra.mrb[0].mxu0 %v1233
      %v2123 = vpop.f32.mrb[0].mxu0
      %v2124 = vadd.f32 %v1760, %v2123
      %v2125 = vpop.f32.mrb[0].mxu0
      %v2126 = vadd.f32 %v1760, %v2125
      %2127 = vmatprep.mubr.f32.mxu0 %v1782
      %2128 = vmatmul.mubr.f32.gmra.mrb[0].mxu0 %v1235
      %v2129 = vpop.f32.mrb[0].mxu0
      %v2130 = vadd.f32 %v1765, %v2129
      %v2131 = vpop.f32.mrb[0].mxu0
      %v2132 = vadd.f32 %v1765, %v2131
      %2133 = vmatprep.mubr.f32.mxu0 %v1785
      %2134 = vmatmul.mubr.f32.gmra.mrb[0].mxu0 %v1237
      %v2135 = vpop.f32.mrb[0].mxu0
      %v2136 = vadd.f32 %v1770, %v2135
      %v2137 = vpop.f32.mrb[0].mxu0
      %v2138 = vadd.f32 %v1770, %v2137
      %2139 = vmatprep.mubr.f32.mxu0 %v1788
      %2140 = vmatmul.mubr.f32.gmra.mrb[0].mxu0 %v1239
      %v2141 = vpop.f32.mrb[0].mxu0
      %v2142 = vadd.f32 %v1775, %v2141
      %v2143 = vpop.f32.mrb[0].mxu0
      %v2144 = vadd.f32 %v1775, %v2143
      %2145 = vdwg.mxu0
      %v2146 = vmax.f32 %v1857, 0.0
      %v2147 = vmax.f32 %v1859, 0.0
      %v2148 = vmax.f32 %v1946, 0.0
      %v2149 = vmax.f32 %v1948, 0.0
      %v2150 = vmax.f32 %v2035, 0.0
      %v2151 = vmax.f32 %v2037, 0.0
      %v2152 = vmax.f32 %v2124, 0.0
      %v2153 = vmax.f32 %v2126, 0.0
      %v2154 = vmax.f32 %v1863, 0.0
      %v2155 = vmax.f32 %v1865, 0.0
      %v2156 = vmax.f32 %v1952, 0.0
      %v2157 = vmax.f32 %v1954, 0.0
      %v2158 = vmax.f32 %v2041, 0.0
      %v2159 = vmax.f32 %v2043, 0.0
      %v2160 = vmax.f32 %v2130, 0.0
      %v2161 = vmax.f32 %v2132, 0.0
      %v2162 = vmax.f32 %v1869, 0.0
      %v2163 = vmax.f32 %v1871, 0.0
      %v2164 = vmax.f32 %v1958, 0.0
      %v2165 = vmax.f32 %v1960, 0.0
      %v2166 = vmax.f32 %v2047, 0.0
      %v2167 = vmax.f32 %v2049, 0.0
      %v2168 = vmax.f32 %v2136, 0.0
      %v2169 = vmax.f32 %v2138, 0.0
      %v2170 = vmax.f32 %v1875, 0.0
      %v2171 = vmax.f32 %v1877, 0.0
      %v2172 = vmax.f32 %v1964, 0.0
      %v2173 = vmax.f32 %v1966, 0.0
      %v2174 = vmax.f32 %v2053, 0.0
      %v2175 = vmax.f32 %v2055, 0.0
      %v2176 = vmax.f32 %v2142, 0.0
      %v2177 = vmax.f32 %v2144, 0.0
      %v2178 = vld [vmem:[%s7] sm:$0xff]
      %v2179 = vld [vmem:[%s7 + $0x8] sm:$0xff]
      %v2180 = vld [vmem:[%s7 + $0x10] sm:$0xff]
      %v2181 = vld [vmem:[%s7 + $0x18] sm:$0xff]
      %v2182 = vld [vmem:[%s8] sm:$0xff]
      %v2183 = vld [vmem:[%s8 + $0x8] sm:$0xff]
      %v2184 = vld [vmem:[%s8 + $0x10] sm:$0xff]
      %v2185 = vld [vmem:[%s8 + $0x18] sm:$0xff]
      %2187 = vset.pattern.permute.xlu0 0
      %2188 = vperm.xlu0 %2187, %v2182
      %v2189 = vpop.permute.xlu0 %2188
      %2192 = vset.pattern.permute.xlu0 0
      %2193 = vperm.xlu0 %2192, %v2183
      %v2194 = vpop.permute.xlu0 %2193
      %2197 = vset.pattern.permute.xlu0 0
      %2198 = vperm.xlu0 %2197, %v2184
      %v2199 = vpop.permute.xlu0 %2198
      %2202 = vset.pattern.permute.xlu0 0
      %2203 = vperm.xlu0 %2202, %v2185
      %v2204 = vpop.permute.xlu0 %2203
      %vm2206 = vcmask 64512
      %v2208 = vsel %vm2206, %v2178, 0
      %v2211 = vsel %vm2206, %v2179, 0
      %v2214 = vsel %vm2206, %v2180, 0
      %v2217 = vsel %vm2206, %v2181, 0
      %2219 = vmatprep.subr.mxu0 %v494
      %2220 = vmatpush1.msra.mxu0 %v493
      %2221 = vmatprep.subr.mxu0 0.0
      %2222 = vmatpush1.msra.mxu0 0.0
      %2223 = vmatprep.subr.mxu0 0.0
      %2224 = vmatpush1.msra.mxu0 0.0
      %2225 = vmatprep.subr.mxu0 0.0
      %2226 = vmatpush1.msra.mxu0 0.0
      %2227 = vmatprep.subr.mxu0 0.0
      %2228 = vmatpush1.msra.mxu0 0.0
      %2229 = vmatprep.subr.mxu0 0.0
      %2230 = vmatpush1.msra.mxu0 0.0
      %2231 = vmatprep.subr.mxu0 0.0
      %2232 = vmatpush1.msra.mxu0 0.0
      %2233 = vmatprep.subr.mxu0 0.0
      %2234 = vmatpush1.msra.mxu0 0.0
      %2235 = vmatprep.subr.mxu0 0.0
      %2236 = vmatpush1.msra.mxu0 0.0
      %2237 = vmatprep.subr.mxu0 0.0
      %2238 = vmatpush1.msra.mxu0 0.0
      %2239 = vmatprep.subr.mxu0 0.0
      %2240 = vmatpush1.msra.mxu0 0.0
      %2241 = vmatprep.subr.mxu0 0.0
      %2242 = vmatpush1.msra.mxu0 0.0
      %2243 = vmatprep.subr.mxu0 0.0
      %2244 = vmatpush1.msra.mxu0 0.0
      %2245 = vmatprep.subr.mxu0 0.0
      %2246 = vmatpush1.msra.mxu0 0.0
      %2247 = vmatprep.subr.mxu0 0.0
      %2248 = vmatpush1.msra.mxu0 0.0
      %2249 = vmatprep.subr.mxu0 0.0
      %2250 = vmatpush1.msra.mxu0 0.0
      %2251 = vmatprep.subr.mxu0 0.0
      %2252 = vmatpush1.msra.mxu0 0.0
      %2253 = vmatprep.subr.mxu0 0.0
      %2254 = vmatpush1.msra.mxu0 0.0
      %2255 = vmatprep.subr.mxu0 0.0
      %2256 = vmatpush1.msra.mxu0 0.0
      %2257 = vmatprep.subr.mxu0 0.0
      %2258 = vmatpush1.msra.mxu0 0.0
      %2259 = vmatprep.subr.mxu0 0.0
      %2260 = vmatpush1.msra.mxu0 0.0
      %2261 = vmatprep.subr.mxu0 0.0
      %2262 = vmatpush1.msra.mxu0 0.0
      %2263 = vmatprep.subr.mxu0 0.0
      %2264 = vmatpush1.msra.mxu0 0.0
      %2265 = vmatprep.subr.mxu0 0.0
      %2266 = vmatpush1.msra.mxu0 0.0
      %2267 = vmatprep.subr.mxu0 0.0
      %2268 = vmatpush1.msra.mxu0 0.0
      %2269 = vmatprep.subr.mxu0 0.0
      %2270 = vmatpush1.msra.mxu0 0.0
      %2271 = vmatprep.subr.mxu0 0.0
      %2272 = vmatpush1.msra.mxu0 0.0
      %2273 = vmatprep.subr.mxu0 0.0
      %2274 = vmatpush1.msra.mxu0 0.0
      %2275 = vmatprep.subr.mxu0 0.0
      %2276 = vmatpush1.msra.mxu0 0.0
      %2277 = vmatprep.subr.mxu0 0.0
      %2278 = vmatpush1.msra.mxu0 0.0
      %2279 = vmatprep.subr.mxu0 0.0
      %2280 = vmatpush1.msra.mxu0 0.0
      %2281 = vmatprep.subr.mxu0 0.0
      %2282 = vmatpush1.msra.mxu0 0.0
      %2283 = vmatprep.mubr.f32.mxu0 0.0
      %2284 = vmatmul.mubr.f32.gmra.mrb[0].mxu0 %v2208
      %v2285 = vpop.f32.mrb[0].mxu0
      %v2286 = vadd.f32 %v2189, %v2285
      %v2287 = vpop.f32.mrb[0].mxu0
      %v2288 = vadd.f32 %v2189, %v2287
      %2289 = vmatprep.mubr.f32.mxu0 0.0
      %2290 = vmatmul.mubr.f32.gmra.mrb[0].mxu0 %v2211
      %v2291 = vpop.f32.mrb[0].mxu0
      %v2292 = vadd.f32 %v2194, %v2291
      %v2293 = vpop.f32.mrb[0].mxu0
      %v2294 = vadd.f32 %v2194, %v2293
      %2295 = vmatprep.mubr.f32.mxu0 0.0
      %2296 = vmatmul.mubr.f32.gmra.mrb[0].mxu0 %v2214
      %v2297 = vpop.f32.mrb[0].mxu0
      %v2298 = vadd.f32 %v2199, %v2297
      %v2299 = vpop.f32.mrb[0].mxu0
      %v2300 = vadd.f32 %v2199, %v2299
      %2301 = vmatprep.mubr.f32.mxu0 0.0
      %2302 = vmatmul.mubr.f32.gmra.mrb[0].mxu0 %v2217
      %v2303 = vpop.f32.mrb[0].mxu0
      %v2304 = vadd.f32 %v2204, %v2303
      %v2305 = vpop.f32.mrb[0].mxu0
      %v2306 = vadd.f32 %v2204, %v2305
      %2307 = vdwg.mxu0
      %2308 = vmatprep.subr.mxu0 %v496
      %2309 = vmatpush1.msra.mxu0 %v495
      %2310 = vmatprep.subr.mxu0 0.0
      %2311 = vmatpush1.msra.mxu0 0.0
      %2312 = vmatprep.subr.mxu0 0.0
      %2313 = vmatpush1.msra.mxu0 0.0
      %2314 = vmatprep.subr.mxu0 0.0
      %2315 = vmatpush1.msra.mxu0 0.0
      %2316 = vmatprep.subr.mxu0 0.0
      %2317 = vmatpush1.msra.mxu0 0.0
      %2318 = vmatprep.subr.mxu0 0.0
      %2319 = vmatpush1.msra.mxu0 0.0
      %2320 = vmatprep.subr.mxu0 0.0
      %2321 = vmatpush1.msra.mxu0 0.0
      %2322 = vmatprep.subr.mxu0 0.0
      %2323 = vmatpush1.msra.mxu0 0.0
      %2324 = vmatprep.subr.mxu0 0.0
      %2325 = vmatpush1.msra.mxu0 0.0
      %2326 = vmatprep.subr.mxu0 0.0
      %2327 = vmatpush1.msra.mxu0 0.0
      %2328 = vmatprep.subr.mxu0 0.0
      %2329 = vmatpush1.msra.mxu0 0.0
      %2330 = vmatprep.subr.mxu0 0.0
      %2331 = vmatpush1.msra.mxu0 0.0
      %2332 = vmatprep.subr.mxu0 0.0
      %2333 = vmatpush1.msra.mxu0 0.0
      %2334 = vmatprep.subr.mxu0 0.0
      %2335 = vmatpush1.msra.mxu0 0.0
      %2336 = vmatprep.subr.mxu0 0.0
      %2337 = vmatpush1.msra.mxu0 0.0
      %2338 = vmatprep.subr.mxu0 0.0
      %2339 = vmatpush1.msra.mxu0 0.0
      %2340 = vmatprep.subr.mxu0 0.0
      %2341 = vmatpush1.msra.mxu0 0.0
      %2342 = vmatprep.subr.mxu0 0.0
      %2343 = vmatpush1.msra.mxu0 0.0
      %2344 = vmatprep.subr.mxu0 0.0
      %2345 = vmatpush1.msra.mxu0 0.0
      %2346 = vmatprep.subr.mxu0 0.0
      %2347 = vmatpush1.msra.mxu0 0.0
      %2348 = vmatprep.subr.mxu0 0.0
      %2349 = vmatpush1.msra.mxu0 0.0
      %2350 = vmatprep.subr.mxu0 0.0
      %2351 = vmatpush1.msra.mxu0 0.0
      %2352 = vmatprep.subr.mxu0 0.0
      %2353 = vmatpush1.msra.mxu0 0.0
      %2354 = vmatprep.subr.mxu0 0.0
      %2355 = vmatpush1.msra.mxu0 0.0
      %2356 = vmatprep.subr.mxu0 0.0
      %2357 = vmatpush1.msra.mxu0 0.0
      %2358 = vmatprep.subr.mxu0 0.0
      %2359 = vmatpush1.msra.mxu0 0.0
      %2360 = vmatprep.subr.mxu0 0.0
      %2361 = vmatpush1.msra.mxu0 0.0
      %2362 = vmatprep.subr.mxu0 0.0
      %2363 = vmatpush1.msra.mxu0 0.0
      %2364 = vmatprep.subr.mxu0 0.0
      %2365 = vmatpush1.msra.mxu0 0.0
      %2366 = vmatprep.subr.mxu0 0.0
      %2367 = vmatpush1.msra.mxu0 0.0
      %2368 = vmatprep.subr.mxu0 0.0
      %2369 = vmatpush1.msra.mxu0 0.0
      %2370 = vmatprep.subr.mxu0 0.0
      %2371 = vmatpush1.msra.mxu0 0.0
      %2372 = vmatprep.mubr.f32.mxu0 0.0
      %2373 = vmatmul.mubr.f32.gmra.mrb[0].mxu0 %v2208
      %v2374 = vpop.f32.mrb[0].mxu0
      %v2375 = vadd.f32 %v2189, %v2374
      %v2376 = vpop.f32.mrb[0].mxu0
      %v2377 = vadd.f32 %v2189, %v2376
      %2378 = vmatprep.mubr.f32.mxu0 0.0
      %2379 = vmatmul.mubr.f32.gmra.mrb[0].mxu0 %v2211
      %v2380 = vpop.f32.mrb[0].mxu0
      %v2381 = vadd.f32 %v2194, %v2380
      %v2382 = vpop.f32.mrb[0].mxu0
      %v2383 = vadd.f32 %v2194, %v2382
      %2384 = vmatprep.mubr.f32.mxu0 0.0
      %2385 = vmatmul.mubr.f32.gmra.mrb[0].mxu0 %v2214
      %v2386 = vpop.f32.mrb[0].mxu0
      %v2387 = vadd.f32 %v2199, %v2386
      %v2388 = vpop.f32.mrb[0].mxu0
      %v2389 = vadd.f32 %v2199, %v2388
      %2390 = vmatprep.mubr.f32.mxu0 0.0
      %2391 = vmatmul.mubr.f32.gmra.mrb[0].mxu0 %v2217
      %v2392 = vpop.f32.mrb[0].mxu0
      %v2393 = vadd.f32 %v2204, %v2392
      %v2394 = vpop.f32.mrb[0].mxu0
      %v2395 = vadd.f32 %v2204, %v2394
      %2396 = vdwg.mxu0
      %2397 = vmatprep.subr.mxu0 %v498
      %2398 = vmatpush1.msra.mxu0 %v497
      %2399 = vmatprep.subr.mxu0 0.0
      %2400 = vmatpush1.msra.mxu0 0.0
      %2401 = vmatprep.subr.mxu0 0.0
      %2402 = vmatpush1.msra.mxu0 0.0
      %2403 = vmatprep.subr.mxu0 0.0
      %2404 = vmatpush1.msra.mxu0 0.0
      %2405 = vmatprep.subr.mxu0 0.0
      %2406 = vmatpush1.msra.mxu0 0.0
      %2407 = vmatprep.subr.mxu0 0.0
      %2408 = vmatpush1.msra.mxu0 0.0
      %2409 = vmatprep.subr.mxu0 0.0
      %2410 = vmatpush1.msra.mxu0 0.0
      %2411 = vmatprep.subr.mxu0 0.0
      %2412 = vmatpush1.msra.mxu0 0.0
      %2413 = vmatprep.subr.mxu0 0.0
      %2414 = vmatpush1.msra.mxu0 0.0
      %2415 = vmatprep.subr.mxu0 0.0
      %2416 = vmatpush1.msra.mxu0 0.0
      %2417 = vmatprep.subr.mxu0 0.0
      %2418 = vmatpush1.msra.mxu0 0.0
      %2419 = vmatprep.subr.mxu0 0.0
      %2420 = vmatpush1.msra.mxu0 0.0
      %2421 = vmatprep.subr.mxu0 0.0
      %2422 = vmatpush1.msra.mxu0 0.0
      %2423 = vmatprep.subr.mxu0 0.0
      %2424 = vmatpush1.msra.mxu0 0.0
      %2425 = vmatprep.subr.mxu0 0.0
      %2426 = vmatpush1.msra.mxu0 0.0
      %2427 = vmatprep.subr.mxu0 0.0
      %2428 = vmatpush1.msra.mxu0 0.0
      %2429 = vmatprep.subr.mxu0 0.0
      %2430 = vmatpush1.msra.mxu0 0.0
      %2431 = vmatprep.subr.mxu0 0.0
      %2432 = vmatpush1.msra.mxu0 0.0
      %2433 = vmatprep.subr.mxu0 0.0
      %2434 = vmatpush1.msra.mxu0 0.0
      %2435 = vmatprep.subr.mxu0 0.0
      %2436 = vmatpush1.msra.mxu0 0.0
      %2437 = vmatprep.subr.mxu0 0.0
      %2438 = vmatpush1.msra.mxu0 0.0
      %2439 = vmatprep.subr.mxu0 0.0
      %2440 = vmatpush1.msra.mxu0 0.0
      %2441 = vmatprep.subr.mxu0 0.0
      %2442 = vmatpush1.msra.mxu0 0.0
      %2443 = vmatprep.subr.mxu0 0.0
      %2444 = vmatpush1.msra.mxu0 0.0
      %2445 = vmatprep.subr.mxu0 0.0
      %2446 = vmatpush1.msra.mxu0 0.0
      %2447 = vmatprep.subr.mxu0 0.0
      %2448 = vmatpush1.msra.mxu0 0.0
      %2449 = vmatprep.subr.mxu0 0.0
      %2450 = vmatpush1.msra.mxu0 0.0
      %2451 = vmatprep.subr.mxu0 0.0
      %2452 = vmatpush1.msra.mxu0 0.0
      %2453 = vmatprep.subr.mxu0 0.0
      %2454 = vmatpush1.msra.mxu0 0.0
      %2455 = vmatprep.subr.mxu0 0.0
      %2456 = vmatpush1.msra.mxu0 0.0
      %2457 = vmatprep.subr.mxu0 0.0
      %2458 = vmatpush1.msra.mxu0 0.0
      %2459 = vmatprep.subr.mxu0 0.0
      %2460 = vmatpush1.msra.mxu0 0.0
      %2461 = vmatprep.mubr.f32.mxu0 0.0
      %2462 = vmatmul.mubr.f32.gmra.mrb[0].mxu0 %v2208
      %v2463 = vpop.f32.mrb[0].mxu0
      %v2464 = vadd.f32 %v2189, %v2463
      %v2465 = vpop.f32.mrb[0].mxu0
      %v2466 = vadd.f32 %v2189, %v2465
      %2467 = vmatprep.mubr.f32.mxu0 0.0
      %2468 = vmatmul.mubr.f32.gmra.mrb[0].mxu0 %v2211
      %v2469 = vpop.f32.mrb[0].mxu0
      %v2470 = vadd.f32 %v2194, %v2469
      %v2471 = vpop.f32.mrb[0].mxu0
      %v2472 = vadd.f32 %v2194, %v2471
      %2473 = vmatprep.mubr.f32.mxu0 0.0
      %2474 = vmatmul.mubr.f32.gmra.mrb[0].mxu0 %v2214
      %v2475 = vpop.f32.mrb[0].mxu0
      %v2476 = vadd.f32 %v2199, %v2475
      %v2477 = vpop.f32.mrb[0].mxu0
      %v2478 = vadd.f32 %v2199, %v2477
      %2479 = vmatprep.mubr.f32.mxu0 0.0
      %2480 = vmatmul.mubr.f32.gmra.mrb[0].mxu0 %v2217
      %v2481 = vpop.f32.mrb[0].mxu0
      %v2482 = vadd.f32 %v2204, %v2481
      %v2483 = vpop.f32.mrb[0].mxu0
      %v2484 = vadd.f32 %v2204, %v2483
      %2485 = vdwg.mxu0
      %2486 = vmatprep.subr.mxu0 %v500
      %2487 = vmatpush1.msra.mxu0 %v499
      %2488 = vmatprep.subr.mxu0 0.0
      %2489 = vmatpush1.msra.mxu0 0.0
      %2490 = vmatprep.subr.mxu0 0.0
      %2491 = vmatpush1.msra.mxu0 0.0
      %2492 = vmatprep.subr.mxu0 0.0
      %2493 = vmatpush1.msra.mxu0 0.0
      %2494 = vmatprep.subr.mxu0 0.0
      %2495 = vmatpush1.msra.mxu0 0.0
      %2496 = vmatprep.subr.mxu0 0.0
      %2497 = vmatpush1.msra.mxu0 0.0
      %2498 = vmatprep.subr.mxu0 0.0
      %2499 = vmatpush1.msra.mxu0 0.0
      %2500 = vmatprep.subr.mxu0 0.0
      %2501 = vmatpush1.msra.mxu0 0.0
      %2502 = vmatprep.subr.mxu0 0.0
      %2503 = vmatpush1.msra.mxu0 0.0
      %2504 = vmatprep.subr.mxu0 0.0
      %2505 = vmatpush1.msra.mxu0 0.0
      %2506 = vmatprep.subr.mxu0 0.0
      %2507 = vmatpush1.msra.mxu0 0.0
      %2508 = vmatprep.subr.mxu0 0.0
      %2509 = vmatpush1.msra.mxu0 0.0
      %2510 = vmatprep.subr.mxu0 0.0
      %2511 = vmatpush1.msra.mxu0 0.0
      %2512 = vmatprep.subr.mxu0 0.0
      %2513 = vmatpush1.msra.mxu0 0.0
      %2514 = vmatprep.subr.mxu0 0.0
      %2515 = vmatpush1.msra.mxu0 0.0
      %2516 = vmatprep.subr.mxu0 0.0
      %2517 = vmatpush1.msra.mxu0 0.0
      %2518 = vmatprep.subr.mxu0 0.0
      %2519 = vmatpush1.msra.mxu0 0.0
      %2520 = vmatprep.subr.mxu0 0.0
      %2521 = vmatpush1.msra.mxu0 0.0
      %2522 = vmatprep.subr.mxu0 0.0
      %2523 = vmatpush1.msra.mxu0 0.0
      %2524 = vmatprep.subr.mxu0 0.0
      %2525 = vmatpush1.msra.mxu0 0.0
      %2526 = vmatprep.subr.mxu0 0.0
      %2527 = vmatpush1.msra.mxu0 0.0
      %2528 = vmatprep.subr.mxu0 0.0
      %2529 = vmatpush1.msra.mxu0 0.0
      %2530 = vmatprep.subr.mxu0 0.0
      %2531 = vmatpush1.msra.mxu0 0.0
      %2532 = vmatprep.subr.mxu0 0.0
      %2533 = vmatpush1.msra.mxu0 0.0
      %2534 = vmatprep.subr.mxu0 0.0
      %2535 = vmatpush1.msra.mxu0 0.0
      %2536 = vmatprep.subr.mxu0 0.0
      %2537 = vmatpush1.msra.mxu0 0.0
      %2538 = vmatprep.subr.mxu0 0.0
      %2539 = vmatpush1.msra.mxu0 0.0
      %2540 = vmatprep.subr.mxu0 0.0
      %2541 = vmatpush1.msra.mxu0 0.0
      %2542 = vmatprep.subr.mxu0 0.0
      %2543 = vmatpush1.msra.mxu0 0.0
      %2544 = vmatprep.subr.mxu0 0.0
      %2545 = vmatpush1.msra.mxu0 0.0
      %2546 = vmatprep.subr.mxu0 0.0
      %2547 = vmatpush1.msra.mxu0 0.0
      %2548 = vmatprep.subr.mxu0 0.0
      %2549 = vmatpush1.msra.mxu0 0.0
      %2550 = vmatprep.mubr.f32.mxu0 0.0
      %2551 = vmatmul.mubr.f32.gmra.mrb[0].mxu0 %v2208
      %v2552 = vpop.f32.mrb[0].mxu0
      %v2553 = vadd.f32 %v2189, %v2552
      %v2554 = vpop.f32.mrb[0].mxu0
      %v2555 = vadd.f32 %v2189, %v2554
      %2556 = vmatprep.mubr.f32.mxu0 0.0
      %2557 = vmatmul.mubr.f32.gmra.mrb[0].mxu0 %v2211
      %v2558 = vpop.f32.mrb[0].mxu0
      %v2559 = vadd.f32 %v2194, %v2558
      %v2560 = vpop.f32.mrb[0].mxu0
      %v2561 = vadd.f32 %v2194, %v2560
      %2562 = vmatprep.mubr.f32.mxu0 0.0
      %2563 = vmatmul.mubr.f32.gmra.mrb[0].mxu0 %v2214
      %v2564 = vpop.f32.mrb[0].mxu0
      %v2565 = vadd.f32 %v2199, %v2564
      %v2566 = vpop.f32.mrb[0].mxu0
      %v2567 = vadd.f32 %v2199, %v2566
      %2568 = vmatprep.mubr.f32.mxu0 0.0
      %2569 = vmatmul.mubr.f32.gmra.mrb[0].mxu0 %v2217
      %v2570 = vpop.f32.mrb[0].mxu0
      %v2571 = vadd.f32 %v2204, %v2570
      %v2572 = vpop.f32.mrb[0].mxu0
      %v2573 = vadd.f32 %v2204, %v2572
      %2574 = vdwg.mxu0
      %v2575 = vadd.f32 %v2146, %v2286
      %v2576 = vadd.f32 %v2147, %v2288
      %v2577 = vadd.f32 %v2148, %v2375
      %v2578 = vadd.f32 %v2149, %v2377
      %v2579 = vadd.f32 %v2150, %v2464
      %v2580 = vadd.f32 %v2151, %v2466
      %v2581 = vadd.f32 %v2152, %v2553
      %v2582 = vadd.f32 %v2153, %v2555
      %v2583 = vadd.f32 %v2154, %v2292
      %v2584 = vadd.f32 %v2155, %v2294
      %v2585 = vadd.f32 %v2156, %v2381
      %v2586 = vadd.f32 %v2157, %v2383
      %v2587 = vadd.f32 %v2158, %v2470
      %v2588 = vadd.f32 %v2159, %v2472
      %v2589 = vadd.f32 %v2160, %v2559
      %v2590 = vadd.f32 %v2161, %v2561
      %v2591 = vadd.f32 %v2162, %v2298
      %v2592 = vadd.f32 %v2163, %v2300
      %v2593 = vadd.f32 %v2164, %v2387
      %v2594 = vadd.f32 %v2165, %v2389
      %v2595 = vadd.f32 %v2166, %v2476
      %v2596 = vadd.f32 %v2167, %v2478
      %v2597 = vadd.f32 %v2168, %v2565
      %v2598 = vadd.f32 %v2169, %v2567
      %v2599 = vadd.f32 %v2170, %v2304
      %v2600 = vadd.f32 %v2171, %v2306
      %v2601 = vadd.f32 %v2172, %v2393
      %v2602 = vadd.f32 %v2173, %v2395
      %v2603 = vadd.f32 %v2174, %v2482
      %v2604 = vadd.f32 %v2175, %v2484
      %v2605 = vadd.f32 %v2176, %v2571
      %v2606 = vadd.f32 %v2177, %v2573
      %v2607 = vmax.f32 %v2575, 0.0
      %v2608 = vmax.f32 %v2576, 0.0
      %v2609 = vmax.f32 %v2577, 0.0
      %v2610 = vmax.f32 %v2578, 0.0
      %v2611 = vmax.f32 %v2579, 0.0
      %v2612 = vmax.f32 %v2580, 0.0
      %v2613 = vmax.f32 %v2581, 0.0
      %v2614 = vmax.f32 %v2582, 0.0
      %v2615 = vmax.f32 %v2583, 0.0
      %v2616 = vmax.f32 %v2584, 0.0
      %v2617 = vmax.f32 %v2585, 0.0
      %v2618 = vmax.f32 %v2586, 0.0
      %v2619 = vmax.f32 %v2587, 0.0
      %v2620 = vmax.f32 %v2588, 0.0
      %v2621 = vmax.f32 %v2589, 0.0
      %v2622 = vmax.f32 %v2590, 0.0
      %v2623 = vmax.f32 %v2591, 0.0
      %v2624 = vmax.f32 %v2592, 0.0
      %v2625 = vmax.f32 %v2593, 0.0
      %v2626 = vmax.f32 %v2594, 0.0
      %v2627 = vmax.f32 %v2595, 0.0
      %v2628 = vmax.f32 %v2596, 0.0
      %v2629 = vmax.f32 %v2597, 0.0
      %v2630 = vmax.f32 %v2598, 0.0
      %v2631 = vmax.f32 %v2599, 0.0
      %v2632 = vmax.f32 %v2600, 0.0
      %v2633 = vmax.f32 %v2601, 0.0
      %v2634 = vmax.f32 %v2602, 0.0
      %v2635 = vmax.f32 %v2603, 0.0
      %v2636 = vmax.f32 %v2604, 0.0
      %v2637 = vmax.f32 %v2605, 0.0
      %v2638 = vmax.f32 %v2606, 0.0
      %vm2639 = vcmp.ge.s32.totalorder %v501, 8
      %vm2640 = vcmp.ge.s32.totalorder %v501, 6
      %v2641 = vld [vmem:[%s9] sm:$0xff]
      %v2642 = vld [vmem:[%s9 + $0x8] sm:$0xff]
      %v2643 = vld [vmem:[%s9 + $0x10] sm:$0xff]
      %v2644 = vld [vmem:[%s9 + $0x18] sm:$0xff]
      %v2645 = vld [vmem:[%s9 + $0x20] sm:$0xff]
      %v2646 = vld [vmem:[%s9 + $0x28] sm:$0xff]
      %v2647 = vld [vmem:[%s9 + $0x30] sm:$0xff]
      %v2648 = vld [vmem:[%s9 + $0x38] sm:$0xff]
      %v2649 = vld [vmem:[%s10] sm:$0xff]
      %v2650 = vld [vmem:[%s10 + $0x8] sm:$0xff]
      %v2651 = vld [vmem:[%s10 + $0x10] sm:$0xff]
      %v2652 = vld [vmem:[%s10 + $0x18] sm:$0xff]
      %2653 = vrot.lane.b32.xlu0 %v2607, 8
      %v2654 = vpop.permute.xlu0 %2653
      %2655 = vrot.lane.b32.xlu0 %v2615, 8
      %v2656 = vpop.permute.xlu0 %2655
      %2657 = vrot.lane.b32.xlu0 %v2623, 8
      %v2658 = vpop.permute.xlu0 %2657
      %2659 = vrot.lane.b32.xlu0 %v2631, 8
      %v2660 = vpop.permute.xlu0 %2659
      %2661 = vrot.lane.b32.xlu0 %v2608, 8
      %v2662 = vpop.permute.xlu0 %2661
      %2663 = vrot.lane.b32.xlu0 %v2616, 8
      %v2664 = vpop.permute.xlu0 %2663
      %2665 = vrot.lane.b32.xlu0 %v2624, 8
      %v2666 = vpop.permute.xlu0 %2665
      %2667 = vrot.lane.b32.xlu0 %v2632, 8
      %v2668 = vpop.permute.xlu0 %2667
      %2669 = vrot.lane.b32.xlu0 %v2609, 8
      %v2670 = vpop.permute.xlu0 %2669
      %2671 = vrot.lane.b32.xlu0 %v2617, 8
      %v2672 = vpop.permute.xlu0 %2671
      %2673 = vrot.lane.b32.xlu0 %v2625, 8
      %v2674 = vpop.permute.xlu0 %2673
      %2675 = vrot.lane.b32.xlu0 %v2633, 8
      %v2676 = vpop.permute.xlu0 %2675
      %2677 = vrot.lane.b32.xlu0 %v2610, 8
      %v2678 = vpop.permute.xlu0 %2677
      %2679 = vrot.lane.b32.xlu0 %v2618, 8
      %v2680 = vpop.permute.xlu0 %2679
      %2681 = vrot.lane.b32.xlu0 %v2626, 8
      %v2682 = vpop.permute.xlu0 %2681
      %2683 = vrot.lane.b32.xlu0 %v2634, 8
      %v2684 = vpop.permute.xlu0 %2683
      %2685 = vrot.lane.b32.xlu0 %v2611, 8
      %v2686 = vpop.permute.xlu0 %2685
      %2687 = vrot.lane.b32.xlu0 %v2619, 8
      %v2688 = vpop.permute.xlu0 %2687
      %2689 = vrot.lane.b32.xlu0 %v2627, 8
      %v2690 = vpop.permute.xlu0 %2689
      %2691 = vrot.lane.b32.xlu0 %v2635, 8
      %v2692 = vpop.permute.xlu0 %2691
      %2693 = vrot.lane.b32.xlu0 %v2612, 8
      %v2694 = vpop.permute.xlu0 %2693
      %2695 = vrot.lane.b32.xlu0 %v2620, 8
      %v2696 = vpop.permute.xlu0 %2695
      %2697 = vrot.lane.b32.xlu0 %v2628, 8
      %v2698 = vpop.permute.xlu0 %2697
      %2699 = vrot.lane.b32.xlu0 %v2636, 8
      %v2700 = vpop.permute.xlu0 %2699
      %2701 = vrot.lane.b32.xlu0 %v2613, 8
      %v2702 = vpop.permute.xlu0 %2701
      %2703 = vrot.lane.b32.xlu0 %v2621, 8
      %v2704 = vpop.permute.xlu0 %2703
      %2705 = vrot.lane.b32.xlu0 %v2629, 8
      %v2706 = vpop.permute.xlu0 %2705
      %2707 = vrot.lane.b32.xlu0 %v2637, 8
      %v2708 = vpop.permute.xlu0 %2707
      %2709 = vrot.lane.b32.xlu0 %v2614, 8
      %v2710 = vpop.permute.xlu0 %2709
      %2711 = vrot.lane.b32.xlu0 %v2622, 8
      %v2712 = vpop.permute.xlu0 %2711
      %2713 = vrot.lane.b32.xlu0 %v2630, 8
      %v2714 = vpop.permute.xlu0 %2713
      %2715 = vrot.lane.b32.xlu0 %v2638, 8
      %v2716 = vpop.permute.xlu0 %2715
      %vm2717 = vcmp.lt.s32.totalorder %v531, 8
      %v2718 = vsel %vm2717, %v2702, %v2710
      %v2719 = vsel %vm2717, %v2704, %v2712
      %v2720 = vsel %vm2717, %v2706, %v2714
      %v2721 = vsel %vm2717, %v2708, %v2716
      %v2722 = vsel %vm2717, %v2694, %v2702
      %v2723 = vsel %vm2717, %v2696, %v2704
      %v2724 = vsel %vm2717, %v2698, %v2706
      %v2725 = vsel %vm2717, %v2700, %v2708
      %v2726 = vsel %vm2717, %v2686, %v2694
      %v2727 = vsel %vm2717, %v2688, %v2696
      %v2728 = vsel %vm2717, %v2690, %v2698
      %v2729 = vsel %vm2717, %v2692, %v2700
      %v2730 = vsel %vm2717, %v2678, %v2686
      %v2731 = vsel %vm2717, %v2680, %v2688
      %v2732 = vsel %vm2717, %v2682, %v2690
      %v2733 = vsel %vm2717, %v2684, %v2692
      %v2734 = vsel %vm2717, %v2670, %v2678
      %v2735 = vsel %vm2717, %v2672, %v2680
      %v2736 = vsel %vm2717, %v2674, %v2682
      %v2737 = vsel %vm2717, %v2676, %v2684
      %v2738 = vsel %vm2717, %v2662, %v2670
      %v2739 = vsel %vm2717, %v2664, %v2672
      %v2740 = vsel %vm2717, %v2666, %v2674
      %v2741 = vsel %vm2717, %v2668, %v2676
      %v2742 = vsel %vm2717, %v2654, %v2662
      %v2743 = vsel %vm2717, %v2656, %v2664
      %v2744 = vsel %vm2717, %v2658, %v2666
      %v2745 = vsel %vm2717, %v2660, %v2668
      %v2746 = vsel %vm2717, %v2710, %v2654
      %v2747 = vsel %vm2717, %v2712, %v2656
      %v2748 = vsel %vm2717, %v2714, %v2658
      %v2749 = vsel %vm2717, %v2716, %v2660
      %v2750 = vsel %vm2639, 1, 0
      %v2751 = vlaneseq
      %v2752 = vshrl.u32 %v2751, 7
      %v2753 = vsub.s32 0, %v2752
      %v2754 = vrot.slane %v2750, %v2753
      %v2755 = vlaneseq
      %v2756 = vshrl.u32 %v2755, 7
      %v2757 = vsub.s32 1, %v2756
      %v2758 = vrot.slane %v2750, %v2757
      %v2759 = vlaneseq
      %v2760 = vshrl.u32 %v2759, 7
      %v2761 = vsub.s32 2, %v2760
      %v2762 = vrot.slane %v2750, %v2761
      %v2763 = vlaneseq
      %v2764 = vshrl.u32 %v2763, 7
      %v2765 = vsub.s32 3, %v2764
      %v2766 = vrot.slane %v2750, %v2765
      %v2767 = vlaneseq
      %v2768 = vshrl.u32 %v2767, 7
      %v2769 = vsub.s32 4, %v2768
      %v2770 = vrot.slane %v2750, %v2769
      %v2771 = vlaneseq
      %v2772 = vshrl.u32 %v2771, 7
      %v2773 = vsub.s32 5, %v2772
      %v2774 = vrot.slane %v2750, %v2773
      %v2775 = vlaneseq
      %v2776 = vshrl.u32 %v2775, 7
      %v2777 = vsub.s32 6, %v2776
      %v2778 = vrot.slane %v2750, %v2777
      %v2779 = vlaneseq
      %v2780 = vshrl.u32 %v2779, 7
      %v2781 = vsub.s32 7, %v2780
      %v2782 = vrot.slane %v2750, %v2781
      %vm2783 = vcmp.eq.s32.totalorder %v2754, 1
      %vm2784 = vcmp.eq.s32.totalorder %v2758, 1
      %vm2785 = vcmp.eq.s32.totalorder %v2762, 1
      %vm2786 = vcmp.eq.s32.totalorder %v2766, 1
      %vm2787 = vcmp.eq.s32.totalorder %v2770, 1
      %vm2788 = vcmp.eq.s32.totalorder %v2774, 1
      %vm2789 = vcmp.eq.s32.totalorder %v2778, 1
      %vm2790 = vcmp.eq.s32.totalorder %v2782, 1
      %v2791 = vsel %vm2783, %v2746, 0.0
      %v2792 = vsel %vm2784, %v2742, 0.0
      %v2793 = vsel %vm2785, %v2738, 0.0
      %v2794 = vsel %vm2786, %v2734, 0.0
      %v2795 = vsel %vm2787, %v2730, 0.0
      %v2796 = vsel %vm2788, %v2726, 0.0
      %v2797 = vsel %vm2789, %v2722, 0.0
      %v2798 = vsel %vm2790, %v2718, 0.0
      %v2799 = vsel %vm2783, %v2747, 0.0
      %v2800 = vsel %vm2784, %v2743, 0.0
      %v2801 = vsel %vm2785, %v2739, 0.0
      %v2802 = vsel %vm2786, %v2735, 0.0
      %v2803 = vsel %vm2787, %v2731, 0.0
      %v2804 = vsel %vm2788, %v2727, 0.0
      %v2805 = vsel %vm2789, %v2723, 0.0
      %v2806 = vsel %vm2790, %v2719, 0.0
      %v2807 = vsel %vm2783, %v2748, 0.0
      %v2808 = vsel %vm2784, %v2744, 0.0
      %v2809 = vsel %vm2785, %v2740, 0.0
      %v2810 = vsel %vm2786, %v2736, 0.0
      %v2811 = vsel %vm2787, %v2732, 0.0
      %v2812 = vsel %vm2788, %v2728, 0.0
      %v2813 = vsel %vm2789, %v2724, 0.0
      %v2814 = vsel %vm2790, %v2720, 0.0
      %v2815 = vsel %vm2783, %v2749, 0.0
      %v2816 = vsel %vm2784, %v2745, 0.0
      %v2817 = vsel %vm2785, %v2741, 0.0
      %v2818 = vsel %vm2786, %v2737, 0.0
      %v2819 = vsel %vm2787, %v2733, 0.0
      %v2820 = vsel %vm2788, %v2729, 0.0
      %v2821 = vsel %vm2789, %v2725, 0.0
      %v2822 = vsel %vm2790, %v2721, 0.0
      %2823 = vrot.lane.b32.xlu0 %v2607, 6
      %v2824 = vpop.permute.xlu0 %2823
      %2825 = vrot.lane.b32.xlu0 %v2615, 6
      %v2826 = vpop.permute.xlu0 %2825
      %2827 = vrot.lane.b32.xlu0 %v2623, 6
      %v2828 = vpop.permute.xlu0 %2827
      %2829 = vrot.lane.b32.xlu0 %v2631, 6
      %v2830 = vpop.permute.xlu0 %2829
      %2831 = vrot.lane.b32.xlu0 %v2608, 6
      %v2832 = vpop.permute.xlu0 %2831
      %2833 = vrot.lane.b32.xlu0 %v2616, 6
      %v2834 = vpop.permute.xlu0 %2833
      %2835 = vrot.lane.b32.xlu0 %v2624, 6
      %v2836 = vpop.permute.xlu0 %2835
      %2837 = vrot.lane.b32.xlu0 %v2632, 6
      %v2838 = vpop.permute.xlu0 %2837
      %2839 = vrot.lane.b32.xlu0 %v2609, 6
      %v2840 = vpop.permute.xlu0 %2839
      %2841 = vrot.lane.b32.xlu0 %v2617, 6
      %v2842 = vpop.permute.xlu0 %2841
      %2843 = vrot.lane.b32.xlu0 %v2625, 6
      %v2844 = vpop.permute.xlu0 %2843
      %2845 = vrot.lane.b32.xlu0 %v2633, 6
      %v2846 = vpop.permute.xlu0 %2845
      %2847 = vrot.lane.b32.xlu0 %v2610, 6
      %v2848 = vpop.permute.xlu0 %2847
      %2849 = vrot.lane.b32.xlu0 %v2618, 6
      %v2850 = vpop.permute.xlu0 %2849
      %2851 = vrot.lane.b32.xlu0 %v2626, 6
      %v2852 = vpop.permute.xlu0 %2851
      %2853 = vrot.lane.b32.xlu0 %v2634, 6
      %v2854 = vpop.permute.xlu0 %2853
      %2855 = vrot.lane.b32.xlu0 %v2611, 6
      %v2856 = vpop.permute.xlu0 %2855
      %2857 = vrot.lane.b32.xlu0 %v2619, 6
      %v2858 = vpop.permute.xlu0 %2857
      %2859 = vrot.lane.b32.xlu0 %v2627, 6
      %v2860 = vpop.permute.xlu0 %2859
      %2861 = vrot.lane.b32.xlu0 %v2635, 6
      %v2862 = vpop.permute.xlu0 %2861
      %2863 = vrot.lane.b32.xlu0 %v2612, 6
      %v2864 = vpop.permute.xlu0 %2863
      %2865 = vrot.lane.b32.xlu0 %v2620, 6
      %v2866 = vpop.permute.xlu0 %2865
      %2867 = vrot.lane.b32.xlu0 %v2628, 6
      %v2868 = vpop.permute.xlu0 %2867
      %2869 = vrot.lane.b32.xlu0 %v2636, 6
      %v2870 = vpop.permute.xlu0 %2869
      %2871 = vrot.lane.b32.xlu0 %v2613, 6
      %v2872 = vpop.permute.xlu0 %2871
      %2873 = vrot.lane.b32.xlu0 %v2621, 6
      %v2874 = vpop.permute.xlu0 %2873
      %2875 = vrot.lane.b32.xlu0 %v2629, 6
      %v2876 = vpop.permute.xlu0 %2875
      %2877 = vrot.lane.b32.xlu0 %v2637, 6
      %v2878 = vpop.permute.xlu0 %2877
      %2879 = vrot.lane.b32.xlu0 %v2614, 6
      %v2880 = vpop.permute.xlu0 %2879
      %2881 = vrot.lane.b32.xlu0 %v2622, 6
      %v2882 = vpop.permute.xlu0 %2881
      %2883 = vrot.lane.b32.xlu0 %v2630, 6
      %v2884 = vpop.permute.xlu0 %2883
      %2885 = vrot.lane.b32.xlu0 %v2638, 6
      %v2886 = vpop.permute.xlu0 %2885
      %vm2887 = vcmp.lt.s32.totalorder %v531, 6
      %v2888 = vsel %vm2887, %v2872, %v2880
      %v2889 = vsel %vm2887, %v2874, %v2882
      %v2890 = vsel %vm2887, %v2876, %v2884
      %v2891 = vsel %vm2887, %v2878, %v2886
      %v2892 = vsel %vm2887, %v2864, %v2872
      %v2893 = vsel %vm2887, %v2866, %v2874
      %v2894 = vsel %vm2887, %v2868, %v2876
      %v2895 = vsel %vm2887, %v2870, %v2878
      %v2896 = vsel %vm2887, %v2856, %v2864
      %v2897 = vsel %vm2887, %v2858, %v2866
      %v2898 = vsel %vm2887, %v2860, %v2868
      %v2899 = vsel %vm2887, %v2862, %v2870
      %v2900 = vsel %vm2887, %v2848, %v2856
      %v2901 = vsel %vm2887, %v2850, %v2858
      %v2902 = vsel %vm2887, %v2852, %v2860
      %v2903 = vsel %vm2887, %v2854, %v2862
      %v2904 = vsel %vm2887, %v2840, %v2848
      %v2905 = vsel %vm2887, %v2842, %v2850
      %v2906 = vsel %vm2887, %v2844, %v2852
      %v2907 = vsel %vm2887, %v2846, %v2854
      %v2908 = vsel %vm2887, %v2832, %v2840
      %v2909 = vsel %vm2887, %v2834, %v2842
      %v2910 = vsel %vm2887, %v2836, %v2844
      %v2911 = vsel %vm2887, %v2838, %v2846
      %v2912 = vsel %vm2887, %v2824, %v2832
      %v2913 = vsel %vm2887, %v2826, %v2834
      %v2914 = vsel %vm2887, %v2828, %v2836
      %v2915 = vsel %vm2887, %v2830, %v2838
      %v2916 = vsel %vm2887, %v2880, %v2824
      %v2917 = vsel %vm2887, %v2882, %v2826
      %v2918 = vsel %vm2887, %v2884, %v2828
      %v2919 = vsel %vm2887, %v2886, %v2830
      %v2920 = vsel %vm2640, 1, 0
      %v2921 = vlaneseq
      %v2922 = vshrl.u32 %v2921, 7
      %v2923 = vsub.s32 0, %v2922
      %v2924 = vrot.slane %v2920, %v2923
      %v2925 = vlaneseq
      %v2926 = vshrl.u32 %v2925, 7
      %v2927 = vsub.s32 1, %v2926
      %v2928 = vrot.slane %v2920, %v2927
      %v2929 = vlaneseq
      %v2930 = vshrl.u32 %v2929, 7
      %v2931 = vsub.s32 2, %v2930
      %v2932 = vrot.slane %v2920, %v2931
      %v2933 = vlaneseq
      %v2934 = vshrl.u32 %v2933, 7
      %v2935 = vsub.s32 3, %v2934
      %v2936 = vrot.slane %v2920, %v2935
      %v2937 = vlaneseq
      %v2938 = vshrl.u32 %v2937, 7
      %v2939 = vsub.s32 4, %v2938
      %v2940 = vrot.slane %v2920, %v2939
      %v2941 = vlaneseq
      %v2942 = vshrl.u32 %v2941, 7
      %v2943 = vsub.s32 5, %v2942
      %v2944 = vrot.slane %v2920, %v2943
      %v2945 = vlaneseq
      %v2946 = vshrl.u32 %v2945, 7
      %v2947 = vsub.s32 6, %v2946
      %v2948 = vrot.slane %v2920, %v2947
      %v2949 = vlaneseq
      %v2950 = vshrl.u32 %v2949, 7
      %v2951 = vsub.s32 7, %v2950
      %v2952 = vrot.slane %v2920, %v2951
      %vm2953 = vcmp.eq.s32.totalorder %v2924, 1
      %vm2954 = vcmp.eq.s32.totalorder %v2928, 1
      %vm2955 = vcmp.eq.s32.totalorder %v2932, 1
      %vm2956 = vcmp.eq.s32.totalorder %v2936, 1
      %vm2957 = vcmp.eq.s32.totalorder %v2940, 1
      %vm2958 = vcmp.eq.s32.totalorder %v2944, 1
      %vm2959 = vcmp.eq.s32.totalorder %v2948, 1
      %vm2960 = vcmp.eq.s32.totalorder %v2952, 1
      %v2961 = vsel %vm2953, %v2916, 0.0
      %v2962 = vsel %vm2954, %v2912, 0.0
      %v2963 = vsel %vm2955, %v2908, 0.0
      %v2964 = vsel %vm2956, %v2904, 0.0
      %v2965 = vsel %vm2957, %v2900, 0.0
      %v2966 = vsel %vm2958, %v2896, 0.0
      %v2967 = vsel %vm2959, %v2892, 0.0
      %v2968 = vsel %vm2960, %v2888, 0.0
      %v2969 = vsel %vm2953, %v2917, 0.0
      %v2970 = vsel %vm2954, %v2913, 0.0
      %v2971 = vsel %vm2955, %v2909, 0.0
      %v2972 = vsel %vm2956, %v2905, 0.0
      %v2973 = vsel %vm2957, %v2901, 0.0
      %v2974 = vsel %vm2958, %v2897, 0.0
      %v2975 = vsel %vm2959, %v2893, 0.0
      %v2976 = vsel %vm2960, %v2889, 0.0
      %v2977 = vsel %vm2953, %v2918, 0.0
      %v2978 = vsel %vm2954, %v2914, 0.0
      %v2979 = vsel %vm2955, %v2910, 0.0
      %v2980 = vsel %vm2956, %v2906, 0.0
      %v2981 = vsel %vm2957, %v2902, 0.0
      %v2982 = vsel %vm2958, %v2898, 0.0
      %v2983 = vsel %vm2959, %v2894, 0.0
      %v2984 = vsel %vm2960, %v2890, 0.0
      %v2985 = vsel %vm2953, %v2919, 0.0
      %v2986 = vsel %vm2954, %v2915, 0.0
      %v2987 = vsel %vm2955, %v2911, 0.0
      %v2988 = vsel %vm2956, %v2907, 0.0
      %v2989 = vsel %vm2957, %v2903, 0.0
      %v2990 = vsel %vm2958, %v2899, 0.0
      %v2991 = vsel %vm2959, %v2895, 0.0
      %v2992 = vsel %vm2960, %v2891, 0.0
      %2993 = vrot.lane.b32.xlu0 %v2607, 4
      %v2994 = vpop.permute.xlu0 %2993
      %2995 = vrot.lane.b32.xlu0 %v2615, 4
      %v2996 = vpop.permute.xlu0 %2995
      %2997 = vrot.lane.b32.xlu0 %v2623, 4
      %v2998 = vpop.permute.xlu0 %2997
      %2999 = vrot.lane.b32.xlu0 %v2631, 4
      %v3000 = vpop.permute.xlu0 %2999
      %3001 = vrot.lane.b32.xlu0 %v2608, 4
      %v3002 = vpop.permute.xlu0 %3001
      %3003 = vrot.lane.b32.xlu0 %v2616, 4
      %v3004 = vpop.permute.xlu0 %3003
      %3005 = vrot.lane.b32.xlu0 %v2624, 4
      %v3006 = vpop.permute.xlu0 %3005
      %3007 = vrot.lane.b32.xlu0 %v2632, 4
      %v3008 = vpop.permute.xlu0 %3007
      %3009 = vrot.lane.b32.xlu0 %v2609, 4
      %v3010 = vpop.permute.xlu0 %3009
      %3011 = vrot.lane.b32.xlu0 %v2617, 4
      %v3012 = vpop.permute.xlu0 %3011
      %3013 = vrot.lane.b32.xlu0 %v2625, 4
      %v3014 = vpop.permute.xlu0 %3013
      %3015 = vrot.lane.b32.xlu0 %v2633, 4
      %v3016 = vpop.permute.xlu0 %3015
      %3017 = vrot.lane.b32.xlu0 %v2610, 4
      %v3018 = vpop.permute.xlu0 %3017
      %3019 = vrot.lane.b32.xlu0 %v2618, 4
      %v3020 = vpop.permute.xlu0 %3019
      %3021 = vrot.lane.b32.xlu0 %v2626, 4
      %v3022 = vpop.permute.xlu0 %3021
      %3023 = vrot.lane.b32.xlu0 %v2634, 4
      %v3024 = vpop.permute.xlu0 %3023
      %3025 = vrot.lane.b32.xlu0 %v2611, 4
      %v3026 = vpop.permute.xlu0 %3025
      %3027 = vrot.lane.b32.xlu0 %v2619, 4
      %v3028 = vpop.permute.xlu0 %3027
      %3029 = vrot.lane.b32.xlu0 %v2627, 4
      %v3030 = vpop.permute.xlu0 %3029
      %3031 = vrot.lane.b32.xlu0 %v2635, 4
      %v3032 = vpop.permute.xlu0 %3031
      %3033 = vrot.lane.b32.xlu0 %v2612, 4
      %v3034 = vpop.permute.xlu0 %3033
      %3035 = vrot.lane.b32.xlu0 %v2620, 4
      %v3036 = vpop.permute.xlu0 %3035
      %3037 = vrot.lane.b32.xlu0 %v2628, 4
      %v3038 = vpop.permute.xlu0 %3037
      %3039 = vrot.lane.b32.xlu0 %v2636, 4
      %v3040 = vpop.permute.xlu0 %3039
      %3041 = vrot.lane.b32.xlu0 %v2613, 4
      %v3042 = vpop.permute.xlu0 %3041
      %3043 = vrot.lane.b32.xlu0 %v2621, 4
      %v3044 = vpop.permute.xlu0 %3043
      %3045 = vrot.lane.b32.xlu0 %v2629, 4
      %v3046 = vpop.permute.xlu0 %3045
      %3047 = vrot.lane.b32.xlu0 %v2637, 4
      %v3048 = vpop.permute.xlu0 %3047
      %3049 = vrot.lane.b32.xlu0 %v2614, 4
      %v3050 = vpop.permute.xlu0 %3049
      %3051 = vrot.lane.b32.xlu0 %v2622, 4
      %v3052 = vpop.permute.xlu0 %3051
      %3053 = vrot.lane.b32.xlu0 %v2630, 4
      %v3054 = vpop.permute.xlu0 %3053
      %3055 = vrot.lane.b32.xlu0 %v2638, 4
      %v3056 = vpop.permute.xlu0 %3055
      %v3057 = vsel %vm532, %v3042, %v3050
      %v3058 = vsel %vm532, %v3044, %v3052
      %v3059 = vsel %vm532, %v3046, %v3054
      %v3060 = vsel %vm532, %v3048, %v3056
      %v3061 = vsel %vm532, %v3034, %v3042
      %v3062 = vsel %vm532, %v3036, %v3044
      %v3063 = vsel %vm532, %v3038, %v3046
      %v3064 = vsel %vm532, %v3040, %v3048
      %v3065 = vsel %vm532, %v3026, %v3034
      %v3066 = vsel %vm532, %v3028, %v3036
      %v3067 = vsel %vm532, %v3030, %v3038
      %v3068 = vsel %vm532, %v3032, %v3040
      %v3069 = vsel %vm532, %v3018, %v3026
      %v3070 = vsel %vm532, %v3020, %v3028
      %v3071 = vsel %vm532, %v3022, %v3030
      %v3072 = vsel %vm532, %v3024, %v3032
      %v3073 = vsel %vm532, %v3010, %v3018
      %v3074 = vsel %vm532, %v3012, %v3020
      %v3075 = vsel %vm532, %v3014, %v3022
      %v3076 = vsel %vm532, %v3016, %v3024
      %v3077 = vsel %vm532, %v3002, %v3010
      %v3078 = vsel %vm532, %v3004, %v3012
      %v3079 = vsel %vm532, %v3006, %v3014
      %v3080 = vsel %vm532, %v3008, %v3016
      %v3081 = vsel %vm532, %v2994, %v3002
      %v3082 = vsel %vm532, %v2996, %v3004
      %v3083 = vsel %vm532, %v2998, %v3006
      %v3084 = vsel %vm532, %v3000, %v3008
      %v3085 = vsel %vm532, %v3050, %v2994
      %v3086 = vsel %vm532, %v3052, %v2996
      %v3087 = vsel %vm532, %v3054, %v2998
      %v3088 = vsel %vm532, %v3056, %v3000
      %v3089 = vsel %vm574, %v3085, 0.0
      %v3090 = vsel %vm575, %v3081, 0.0
      %v3091 = vsel %vm576, %v3077, 0.0
      %v3092 = vsel %vm577, %v3073, 0.0
      %v3093 = vsel %vm578, %v3069, 0.0
      %v3094 = vsel %vm579, %v3065, 0.0
      %v3095 = vsel %vm580, %v3061, 0.0
      %v3096 = vsel %vm581, %v3057, 0.0
      %v3097 = vsel %vm574, %v3086, 0.0
      %v3098 = vsel %vm575, %v3082, 0.0
      %v3099 = vsel %vm576, %v3078, 0.0
      %v3100 = vsel %vm577, %v3074, 0.0
      %v3101 = vsel %vm578, %v3070, 0.0
      %v3102 = vsel %vm579, %v3066, 0.0
      %v3103 = vsel %vm580, %v3062, 0.0
      %v3104 = vsel %vm581, %v3058, 0.0
      %v3105 = vsel %vm574, %v3087, 0.0
      %v3106 = vsel %vm575, %v3083, 0.0
      %v3107 = vsel %vm576, %v3079, 0.0
      %v3108 = vsel %vm577, %v3075, 0.0
      %v3109 = vsel %vm578, %v3071, 0.0
      %v3110 = vsel %vm579, %v3067, 0.0
      %v3111 = vsel %vm580, %v3063, 0.0
      %v3112 = vsel %vm581, %v3059, 0.0
      %v3113 = vsel %vm574, %v3088, 0.0
      %v3114 = vsel %vm575, %v3084, 0.0
      %v3115 = vsel %vm576, %v3080, 0.0
      %v3116 = vsel %vm577, %v3076, 0.0
      %v3117 = vsel %vm578, %v3072, 0.0
      %v3118 = vsel %vm579, %v3068, 0.0
      %v3119 = vsel %vm580, %v3064, 0.0
      %v3120 = vsel %vm581, %v3060, 0.0
      %3121 = vrot.lane.b32.xlu0 %v2607, 2
      %v3122 = vpop.permute.xlu0 %3121
      %3123 = vrot.lane.b32.xlu0 %v2615, 2
      %v3124 = vpop.permute.xlu0 %3123
      %3125 = vrot.lane.b32.xlu0 %v2623, 2
      %v3126 = vpop.permute.xlu0 %3125
      %3127 = vrot.lane.b32.xlu0 %v2631, 2
      %v3128 = vpop.permute.xlu0 %3127
      %3129 = vrot.lane.b32.xlu0 %v2608, 2
      %v3130 = vpop.permute.xlu0 %3129
      %3131 = vrot.lane.b32.xlu0 %v2616, 2
      %v3132 = vpop.permute.xlu0 %3131
      %3133 = vrot.lane.b32.xlu0 %v2624, 2
      %v3134 = vpop.permute.xlu0 %3133
      %3135 = vrot.lane.b32.xlu0 %v2632, 2
      %v3136 = vpop.permute.xlu0 %3135
      %3137 = vrot.lane.b32.xlu0 %v2609, 2
      %v3138 = vpop.permute.xlu0 %3137
      %3139 = vrot.lane.b32.xlu0 %v2617, 2
      %v3140 = vpop.permute.xlu0 %3139
      %3141 = vrot.lane.b32.xlu0 %v2625, 2
      %v3142 = vpop.permute.xlu0 %3141
      %3143 = vrot.lane.b32.xlu0 %v2633, 2
      %v3144 = vpop.permute.xlu0 %3143
      %3145 = vrot.lane.b32.xlu0 %v2610, 2
      %v3146 = vpop.permute.xlu0 %3145
      %3147 = vrot.lane.b32.xlu0 %v2618, 2
      %v3148 = vpop.permute.xlu0 %3147
      %3149 = vrot.lane.b32.xlu0 %v2626, 2
      %v3150 = vpop.permute.xlu0 %3149
      %3151 = vrot.lane.b32.xlu0 %v2634, 2
      %v3152 = vpop.permute.xlu0 %3151
      %3153 = vrot.lane.b32.xlu0 %v2611, 2
      %v3154 = vpop.permute.xlu0 %3153
      %3155 = vrot.lane.b32.xlu0 %v2619, 2
      %v3156 = vpop.permute.xlu0 %3155
      %3157 = vrot.lane.b32.xlu0 %v2627, 2
      %v3158 = vpop.permute.xlu0 %3157
      %3159 = vrot.lane.b32.xlu0 %v2635, 2
      %v3160 = vpop.permute.xlu0 %3159
      %3161 = vrot.lane.b32.xlu0 %v2612, 2
      %v3162 = vpop.permute.xlu0 %3161
      %3163 = vrot.lane.b32.xlu0 %v2620, 2
      %v3164 = vpop.permute.xlu0 %3163
      %3165 = vrot.lane.b32.xlu0 %v2628, 2
      %v3166 = vpop.permute.xlu0 %3165
      %3167 = vrot.lane.b32.xlu0 %v2636, 2
      %v3168 = vpop.permute.xlu0 %3167
      %3169 = vrot.lane.b32.xlu0 %v2613, 2
      %v3170 = vpop.permute.xlu0 %3169
      %3171 = vrot.lane.b32.xlu0 %v2621, 2
      %v3172 = vpop.permute.xlu0 %3171
      %3173 = vrot.lane.b32.xlu0 %v2629, 2
      %v3174 = vpop.permute.xlu0 %3173
      %3175 = vrot.lane.b32.xlu0 %v2637, 2
      %v3176 = vpop.permute.xlu0 %3175
      %3177 = vrot.lane.b32.xlu0 %v2614, 2
      %v3178 = vpop.permute.xlu0 %3177
      %3179 = vrot.lane.b32.xlu0 %v2622, 2
      %v3180 = vpop.permute.xlu0 %3179
      %3181 = vrot.lane.b32.xlu0 %v2630, 2
      %v3182 = vpop.permute.xlu0 %3181
      %3183 = vrot.lane.b32.xlu0 %v2638, 2
      %v3184 = vpop.permute.xlu0 %3183
      %v3185 = vsel %vm680, %v3170, %v3178
      %v3186 = vsel %vm680, %v3172, %v3180
      %v3187 = vsel %vm680, %v3174, %v3182
      %v3188 = vsel %vm680, %v3176, %v3184
      %v3189 = vsel %vm680, %v3162, %v3170
      %v3190 = vsel %vm680, %v3164, %v3172
      %v3191 = vsel %vm680, %v3166, %v3174
      %v3192 = vsel %vm680, %v3168, %v3176
      %v3193 = vsel %vm680, %v3154, %v3162
      %v3194 = vsel %vm680, %v3156, %v3164
      %v3195 = vsel %vm680, %v3158, %v3166
      %v3196 = vsel %vm680, %v3160, %v3168
      %v3197 = vsel %vm680, %v3146, %v3154
      %v3198 = vsel %vm680, %v3148, %v3156
      %v3199 = vsel %vm680, %v3150, %v3158
      %v3200 = vsel %vm680, %v3152, %v3160
      %v3201 = vsel %vm680, %v3138, %v3146
      %v3202 = vsel %vm680, %v3140, %v3148
      %v3203 = vsel %vm680, %v3142, %v3150
      %v3204 = vsel %vm680, %v3144, %v3152
      %v3205 = vsel %vm680, %v3130, %v3138
      %v3206 = vsel %vm680, %v3132, %v3140
      %v3207 = vsel %vm680, %v3134, %v3142
      %v3208 = vsel %vm680, %v3136, %v3144
      %v3209 = vsel %vm680, %v3122, %v3130
      %v3210 = vsel %vm680, %v3124, %v3132
      %v3211 = vsel %vm680, %v3126, %v3134
      %v3212 = vsel %vm680, %v3128, %v3136
      %v3213 = vsel %vm680, %v3178, %v3122
      %v3214 = vsel %vm680, %v3180, %v3124
      %v3215 = vsel %vm680, %v3182, %v3126
      %v3216 = vsel %vm680, %v3184, %v3128
      %v3217 = vsel %vm722, %v3213, 0.0
      %v3218 = vsel %vm723, %v3209, 0.0
      %v3219 = vsel %vm724, %v3205, 0.0
      %v3220 = vsel %vm725, %v3201, 0.0
      %v3221 = vsel %vm726, %v3197, 0.0
      %v3222 = vsel %vm727, %v3193, 0.0
      %v3223 = vsel %vm728, %v3189, 0.0
      %v3224 = vsel %vm729, %v3185, 0.0
      %v3225 = vsel %vm722, %v3214, 0.0
      %v3226 = vsel %vm723, %v3210, 0.0
      %v3227 = vsel %vm724, %v3206, 0.0
      %v3228 = vsel %vm725, %v3202, 0.0
      %v3229 = vsel %vm726, %v3198, 0.0
      %v3230 = vsel %vm727, %v3194, 0.0
      %v3231 = vsel %vm728, %v3190, 0.0
      %v3232 = vsel %vm729, %v3186, 0.0
      %v3233 = vsel %vm722, %v3215, 0.0
      %v3234 = vsel %vm723, %v3211, 0.0
      %v3235 = vsel %vm724, %v3207, 0.0
      %v3236 = vsel %vm725, %v3203, 0.0
      %v3237 = vsel %vm726, %v3199, 0.0
      %v3238 = vsel %vm727, %v3195, 0.0
      %v3239 = vsel %vm728, %v3191, 0.0
      %v3240 = vsel %vm729, %v3187, 0.0
      %v3241 = vsel %vm722, %v3216, 0.0
      %v3242 = vsel %vm723, %v3212, 0.0
      %v3243 = vsel %vm724, %v3208, 0.0
      %v3244 = vsel %vm725, %v3204, 0.0
      %v3245 = vsel %vm726, %v3200, 0.0
      %v3246 = vsel %vm727, %v3196, 0.0
      %v3247 = vsel %vm728, %v3192, 0.0
      %v3248 = vsel %vm729, %v3188, 0.0
      %3250 = vset.pattern.permute.xlu0 0
      %3251 = vperm.xlu0 %3250, %v2649
      %v3252 = vpop.permute.xlu0 %3251
      %3255 = vset.pattern.permute.xlu0 0
      %3256 = vperm.xlu0 %3255, %v2650
      %v3257 = vpop.permute.xlu0 %3256
      %3260 = vset.pattern.permute.xlu0 0
      %3261 = vperm.xlu0 %3260, %v2651
      %v3262 = vpop.permute.xlu0 %3261
      %3265 = vset.pattern.permute.xlu0 0
      %3266 = vperm.xlu0 %3265, %v2652
      %v3267 = vpop.permute.xlu0 %3266
      %v3270 = vsel %vm1777, %v2642, 0
      %v3273 = vsel %vm1777, %v2644, 0
      %v3276 = vsel %vm1777, %v2646, 0
      %v3279 = vsel %vm1777, %v2648, 0
      %3281 = vmatprep.subr.mxu0 %v2792
      %3282 = vmatpush1.msra.mxu0 %v2791
      %3283 = vmatprep.subr.mxu0 %v2800
      %3284 = vmatpush1.msra.mxu0 %v2799
      %3285 = vmatprep.subr.mxu0 %v2808
      %3286 = vmatpush1.msra.mxu0 %v2807
      %3287 = vmatprep.subr.mxu0 %v2816
      %3288 = vmatpush1.msra.mxu0 %v2815
      %3289 = vmatprep.subr.mxu0 %v2962
      %3290 = vmatpush1.msra.mxu0 %v2961
      %3291 = vmatprep.subr.mxu0 %v2970
      %3292 = vmatpush1.msra.mxu0 %v2969
      %3293 = vmatprep.subr.mxu0 %v2978
      %3294 = vmatpush1.msra.mxu0 %v2977
      %3295 = vmatprep.subr.mxu0 %v2986
      %3296 = vmatpush1.msra.mxu0 %v2985
      %3297 = vmatprep.subr.mxu0 %v3090
      %3298 = vmatpush1.msra.mxu0 %v3089
      %3299 = vmatprep.subr.mxu0 %v3098
      %3300 = vmatpush1.msra.mxu0 %v3097
      %3301 = vmatprep.subr.mxu0 %v3106
      %3302 = vmatpush1.msra.mxu0 %v3105
      %3303 = vmatprep.subr.mxu0 %v3114
      %3304 = vmatpush1.msra.mxu0 %v3113
      %3305 = vmatprep.subr.mxu0 %v3218
      %3306 = vmatpush1.msra.mxu0 %v3217
      %3307 = vmatprep.subr.mxu0 %v3226
      %3308 = vmatpush1.msra.mxu0 %v3225
      %3309 = vmatprep.subr.mxu0 %v3234
      %3310 = vmatpush1.msra.mxu0 %v3233
      %3311 = vmatprep.subr.mxu0 %v3242
      %3312 = vmatpush1.msra.mxu0 %v3241
      %3313 = vmatprep.subr.mxu0 %v2608
      %3314 = vmatpush1.msra.mxu0 %v2607
      %3315 = vmatprep.subr.mxu0 %v2616
      %3316 = vmatpush1.msra.mxu0 %v2615
      %3317 = vmatprep.subr.mxu0 %v2624
      %3318 = vmatpush1.msra.mxu0 %v2623
      %3319 = vmatprep.subr.mxu0 %v2632
      %3320 = vmatpush1.msra.mxu0 %v2631
      %3321 = vmatprep.subr.mxu0 0.0
      %3322 = vmatpush1.msra.mxu0 0.0
      %3323 = vmatprep.subr.mxu0 0.0
      %3324 = vmatpush1.msra.mxu0 0.0
      %3325 = vmatprep.subr.mxu0 0.0
      %3326 = vmatpush1.msra.mxu0 0.0
      %3327 = vmatprep.subr.mxu0 0.0
      %3328 = vmatpush1.msra.mxu0 0.0
      %3329 = vmatprep.subr.mxu0 0.0
      %3330 = vmatpush1.msra.mxu0 0.0
      %3331 = vmatprep.subr.mxu0 0.0
      %3332 = vmatpush1.msra.mxu0 0.0
      %3333 = vmatprep.subr.mxu0 0.0
      %3334 = vmatpush1.msra.mxu0 0.0
      %3335 = vmatprep.subr.mxu0 0.0
      %3336 = vmatpush1.msra.mxu0 0.0
      %3337 = vmatprep.subr.mxu0 0.0
      %3338 = vmatpush1.msra.mxu0 0.0
      %3339 = vmatprep.subr.mxu0 0.0
      %3340 = vmatpush1.msra.mxu0 0.0
      %3341 = vmatprep.subr.mxu0 0.0
      %3342 = vmatpush1.msra.mxu0 0.0
      %3343 = vmatprep.subr.mxu0 0.0
      %3344 = vmatpush1.msra.mxu0 0.0
      %3345 = vmatprep.mubr.f32.mxu0 %v3270
      %3346 = vmatmul.mubr.f32.gmra.mrb[0].mxu0 %v2641
      %v3347 = vpop.f32.mrb[0].mxu0
      %v3348 = vadd.f32 %v3252, %v3347
      %v3349 = vpop.f32.mrb[0].mxu0
      %v3350 = vadd.f32 %v3252, %v3349
      %3351 = vmatprep.mubr.f32.mxu0 %v3273
      %3352 = vmatmul.mubr.f32.gmra.mrb[0].mxu0 %v2643
      %v3353 = vpop.f32.mrb[0].mxu0
      %v3354 = vadd.f32 %v3257, %v3353
      %v3355 = vpop.f32.mrb[0].mxu0
      %v3356 = vadd.f32 %v3257, %v3355
      %3357 = vmatprep.mubr.f32.mxu0 %v3276
      %3358 = vmatmul.mubr.f32.gmra.mrb[0].mxu0 %v2645
      %v3359 = vpop.f32.mrb[0].mxu0
      %v3360 = vadd.f32 %v3262, %v3359
      %v3361 = vpop.f32.mrb[0].mxu0
      %v3362 = vadd.f32 %v3262, %v3361
      %3363 = vmatprep.mubr.f32.mxu0 %v3279
      %3364 = vmatmul.mubr.f32.gmra.mrb[0].mxu0 %v2647
      %v3365 = vpop.f32.mrb[0].mxu0
      %v3366 = vadd.f32 %v3267, %v3365
      %v3367 = vpop.f32.mrb[0].mxu0
      %v3368 = vadd.f32 %v3267, %v3367
      %3369 = vdwg.mxu0
      %3370 = vmatprep.subr.mxu0 %v2794
      %3371 = vmatpush1.msra.mxu0 %v2793
      %3372 = vmatprep.subr.mxu0 %v2802
      %3373 = vmatpush1.msra.mxu0 %v2801
      %3374 = vmatprep.subr.mxu0 %v2810
      %3375 = vmatpush1.msra.mxu0 %v2809
      %3376 = vmatprep.subr.mxu0 %v2818
      %3377 = vmatpush1.msra.mxu0 %v2817
      %3378 = vmatprep.subr.mxu0 %v2964
      %3379 = vmatpush1.msra.mxu0 %v2963
      %3380 = vmatprep.subr.mxu0 %v2972
      %3381 = vmatpush1.msra.mxu0 %v2971
      %3382 = vmatprep.subr.mxu0 %v2980
      %3383 = vmatpush1.msra.mxu0 %v2979
      %3384 = vmatprep.subr.mxu0 %v2988
      %3385 = vmatpush1.msra.mxu0 %v2987
      %3386 = vmatprep.subr.mxu0 %v3092
      %3387 = vmatpush1.msra.mxu0 %v3091
      %3388 = vmatprep.subr.mxu0 %v3100
      %3389 = vmatpush1.msra.mxu0 %v3099
      %3390 = vmatprep.subr.mxu0 %v3108
      %3391 = vmatpush1.msra.mxu0 %v3107
      %3392 = vmatprep.subr.mxu0 %v3116
      %3393 = vmatpush1.msra.mxu0 %v3115
      %3394 = vmatprep.subr.mxu0 %v3220
      %3395 = vmatpush1.msra.mxu0 %v3219
      %3396 = vmatprep.subr.mxu0 %v3228
      %3397 = vmatpush1.msra.mxu0 %v3227
      %3398 = vmatprep.subr.mxu0 %v3236
      %3399 = vmatpush1.msra.mxu0 %v3235
      %3400 = vmatprep.subr.mxu0 %v3244
      %3401 = vmatpush1.msra.mxu0 %v3243
      %3402 = vmatprep.subr.mxu0 %v2610
      %3403 = vmatpush1.msra.mxu0 %v2609
      %3404 = vmatprep.subr.mxu0 %v2618
      %3405 = vmatpush1.msra.mxu0 %v2617
      %3406 = vmatprep.subr.mxu0 %v2626
      %3407 = vmatpush1.msra.mxu0 %v2625
      %3408 = vmatprep.subr.mxu0 %v2634
      %3409 = vmatpush1.msra.mxu0 %v2633
      %3410 = vmatprep.subr.mxu0 0.0
      %3411 = vmatpush1.msra.mxu0 0.0
      %3412 = vmatprep.subr.mxu0 0.0
      %3413 = vmatpush1.msra.mxu0 0.0
      %3414 = vmatprep.subr.mxu0 0.0
      %3415 = vmatpush1.msra.mxu0 0.0
      %3416 = vmatprep.subr.mxu0 0.0
      %3417 = vmatpush1.msra.mxu0 0.0
      %3418 = vmatprep.subr.mxu0 0.0
      %3419 = vmatpush1.msra.mxu0 0.0
      %3420 = vmatprep.subr.mxu0 0.0
      %3421 = vmatpush1.msra.mxu0 0.0
      %3422 = vmatprep.subr.mxu0 0.0
      %3423 = vmatpush1.msra.mxu0 0.0
      %3424 = vmatprep.subr.mxu0 0.0
      %3425 = vmatpush1.msra.mxu0 0.0
      %3426 = vmatprep.subr.mxu0 0.0
      %3427 = vmatpush1.msra.mxu0 0.0
      %3428 = vmatprep.subr.mxu0 0.0
      %3429 = vmatpush1.msra.mxu0 0.0
      %3430 = vmatprep.subr.mxu0 0.0
      %3431 = vmatpush1.msra.mxu0 0.0
      %3432 = vmatprep.subr.mxu0 0.0
      %3433 = vmatpush1.msra.mxu0 0.0
      %3434 = vmatprep.mubr.f32.mxu0 %v3270
      %3435 = vmatmul.mubr.f32.gmra.mrb[0].mxu0 %v2641
      %v3436 = vpop.f32.mrb[0].mxu0
      %v3437 = vadd.f32 %v3252, %v3436
      %v3438 = vpop.f32.mrb[0].mxu0
      %v3439 = vadd.f32 %v3252, %v3438
      %3440 = vmatprep.mubr.f32.mxu0 %v3273
      %3441 = vmatmul.mubr.f32.gmra.mrb[0].mxu0 %v2643
      %v3442 = vpop.f32.mrb[0].mxu0
      %v3443 = vadd.f32 %v3257, %v3442
      %v3444 = vpop.f32.mrb[0].mxu0
      %v3445 = vadd.f32 %v3257, %v3444
      %3446 = vmatprep.mubr.f32.mxu0 %v3276
      %3447 = vmatmul.mubr.f32.gmra.mrb[0].mxu0 %v2645
      %v3448 = vpop.f32.mrb[0].mxu0
      %v3449 = vadd.f32 %v3262, %v3448
      %v3450 = vpop.f32.mrb[0].mxu0
      %v3451 = vadd.f32 %v3262, %v3450
      %3452 = vmatprep.mubr.f32.mxu0 %v3279
      %3453 = vmatmul.mubr.f32.gmra.mrb[0].mxu0 %v2647
      %v3454 = vpop.f32.mrb[0].mxu0
      %v3455 = vadd.f32 %v3267, %v3454
      %v3456 = vpop.f32.mrb[0].mxu0
      %v3457 = vadd.f32 %v3267, %v3456
      %3458 = vdwg.mxu0
      %3459 = vmatprep.subr.mxu0 %v2796
      %3460 = vmatpush1.msra.mxu0 %v2795
      %3461 = vmatprep.subr.mxu0 %v2804
      %3462 = vmatpush1.msra.mxu0 %v2803
      %3463 = vmatprep.subr.mxu0 %v2812
      %3464 = vmatpush1.msra.mxu0 %v2811
      %3465 = vmatprep.subr.mxu0 %v2820
      %3466 = vmatpush1.msra.mxu0 %v2819
      %3467 = vmatprep.subr.mxu0 %v2966
      %3468 = vmatpush1.msra.mxu0 %v2965
      %3469 = vmatprep.subr.mxu0 %v2974
      %3470 = vmatpush1.msra.mxu0 %v2973
      %3471 = vmatprep.subr.mxu0 %v2982
      %3472 = vmatpush1.msra.mxu0 %v2981
      %3473 = vmatprep.subr.mxu0 %v2990
      %3474 = vmatpush1.msra.mxu0 %v2989
      %3475 = vmatprep.subr.mxu0 %v3094
      %3476 = vmatpush1.msra.mxu0 %v3093
      %3477 = vmatprep.subr.mxu0 %v3102
      %3478 = vmatpush1.msra.mxu0 %v3101
      %3479 = vmatprep.subr.mxu0 %v3110
      %3480 = vmatpush1.msra.mxu0 %v3109
      %3481 = vmatprep.subr.mxu0 %v3118
      %3482 = vmatpush1.msra.mxu0 %v3117
      %3483 = vmatprep.subr.mxu0 %v3222
      %3484 = vmatpush1.msra.mxu0 %v3221
      %3485 = vmatprep.subr.mxu0 %v3230
      %3486 = vmatpush1.msra.mxu0 %v3229
      %3487 = vmatprep.subr.mxu0 %v3238
      %3488 = vmatpush1.msra.mxu0 %v3237
      %3489 = vmatprep.subr.mxu0 %v3246
      %3490 = vmatpush1.msra.mxu0 %v3245
      %3491 = vmatprep.subr.mxu0 %v2612
      %3492 = vmatpush1.msra.mxu0 %v2611
      %3493 = vmatprep.subr.mxu0 %v2620
      %3494 = vmatpush1.msra.mxu0 %v2619
      %3495 = vmatprep.subr.mxu0 %v2628
      %3496 = vmatpush1.msra.mxu0 %v2627
      %3497 = vmatprep.subr.mxu0 %v2636
      %3498 = vmatpush1.msra.mxu0 %v2635
      %3499 = vmatprep.subr.mxu0 0.0
      %3500 = vmatpush1.msra.mxu0 0.0
      %3501 = vmatprep.subr.mxu0 0.0
      %3502 = vmatpush1.msra.mxu0 0.0
      %3503 = vmatprep.subr.mxu0 0.0
      %3504 = vmatpush1.msra.mxu0 0.0
      %3505 = vmatprep.subr.mxu0 0.0
      %3506 = vmatpush1.msra.mxu0 0.0
      %3507 = vmatprep.subr.mxu0 0.0
      %3508 = vmatpush1.msra.mxu0 0.0
      %3509 = vmatprep.subr.mxu0 0.0
      %3510 = vmatpush1.msra.mxu0 0.0
      %3511 = vmatprep.subr.mxu0 0.0
      %3512 = vmatpush1.msra.mxu0 0.0
      %3513 = vmatprep.subr.mxu0 0.0
      %3514 = vmatpush1.msra.mxu0 0.0
      %3515 = vmatprep.subr.mxu0 0.0
      %3516 = vmatpush1.msra.mxu0 0.0
      %3517 = vmatprep.subr.mxu0 0.0
      %3518 = vmatpush1.msra.mxu0 0.0
      %3519 = vmatprep.subr.mxu0 0.0
      %3520 = vmatpush1.msra.mxu0 0.0
      %3521 = vmatprep.subr.mxu0 0.0
      %3522 = vmatpush1.msra.mxu0 0.0
      %3523 = vmatprep.mubr.f32.mxu0 %v3270
      %3524 = vmatmul.mubr.f32.gmra.mrb[0].mxu0 %v2641
      %v3525 = vpop.f32.mrb[0].mxu0
      %v3526 = vadd.f32 %v3252, %v3525
      %v3527 = vpop.f32.mrb[0].mxu0
      %v3528 = vadd.f32 %v3252, %v3527
      %3529 = vmatprep.mubr.f32.mxu0 %v3273
      %3530 = vmatmul.mubr.f32.gmra.mrb[0].mxu0 %v2643
      %v3531 = vpop.f32.mrb[0].mxu0
      %v3532 = vadd.f32 %v3257, %v3531
      %v3533 = vpop.f32.mrb[0].mxu0
      %v3534 = vadd.f32 %v3257, %v3533
      %3535 = vmatprep.mubr.f32.mxu0 %v3276
      %3536 = vmatmul.mubr.f32.gmra.mrb[0].mxu0 %v2645
      %v3537 = vpop.f32.mrb[0].mxu0
      %v3538 = vadd.f32 %v3262, %v3537
      %v3539 = vpop.f32.mrb[0].mxu0
      %v3540 = vadd.f32 %v3262, %v3539
      %3541 = vmatprep.mubr.f32.mxu0 %v3279
      %3542 = vmatmul.mubr.f32.gmra.mrb[0].mxu0 %v2647
      %v3543 = vpop.f32.mrb[0].mxu0
      %v3544 = vadd.f32 %v3267, %v3543
      %v3545 = vpop.f32.mrb[0].mxu0
      %v3546 = vadd.f32 %v3267, %v3545
      %3547 = vdwg.mxu0
      %3548 = vmatprep.subr.mxu0 %v2798
      %3549 = vmatpush1.msra.mxu0 %v2797
      %3550 = vmatprep.subr.mxu0 %v2806
      %3551 = vmatpush1.msra.mxu0 %v2805
      %3552 = vmatprep.subr.mxu0 %v2814
      %3553 = vmatpush1.msra.mxu0 %v2813
      %3554 = vmatprep.subr.mxu0 %v2822
      %3555 = vmatpush1.msra.mxu0 %v2821
      %3556 = vmatprep.subr.mxu0 %v2968
      %3557 = vmatpush1.msra.mxu0 %v2967
      %3558 = vmatprep.subr.mxu0 %v2976
      %3559 = vmatpush1.msra.mxu0 %v2975
      %3560 = vmatprep.subr.mxu0 %v2984
      %3561 = vmatpush1.msra.mxu0 %v2983
      %3562 = vmatprep.subr.mxu0 %v2992
      %3563 = vmatpush1.msra.mxu0 %v2991
      %3564 = vmatprep.subr.mxu0 %v3096
      %3565 = vmatpush1.msra.mxu0 %v3095
      %3566 = vmatprep.subr.mxu0 %v3104
      %3567 = vmatpush1.msra.mxu0 %v3103
      %3568 = vmatprep.subr.mxu0 %v3112
      %3569 = vmatpush1.msra.mxu0 %v3111
      %3570 = vmatprep.subr.mxu0 %v3120
      %3571 = vmatpush1.msra.mxu0 %v3119
      %3572 = vmatprep.subr.mxu0 %v3224
      %3573 = vmatpush1.msra.mxu0 %v3223
      %3574 = vmatprep.subr.mxu0 %v3232
      %3575 = vmatpush1.msra.mxu0 %v3231
      %3576 = vmatprep.subr.mxu0 %v3240
      %3577 = vmatpush1.msra.mxu0 %v3239
      %3578 = vmatprep.subr.mxu0 %v3248
      %3579 = vmatpush1.msra.mxu0 %v3247
      %3580 = vmatprep.subr.mxu0 %v2614
      %3581 = vmatpush1.msra.mxu0 %v2613
      %3582 = vmatprep.subr.mxu0 %v2622
      %3583 = vmatpush1.msra.mxu0 %v2621
      %3584 = vmatprep.subr.mxu0 %v2630
      %3585 = vmatpush1.msra.mxu0 %v2629
      %3586 = vmatprep.subr.mxu0 %v2638
      %3587 = vmatpush1.msra.mxu0 %v2637
      %3588 = vmatprep.subr.mxu0 0.0
      %3589 = vmatpush1.msra.mxu0 0.0
      %3590 = vmatprep.subr.mxu0 0.0
      %3591 = vmatpush1.msra.mxu0 0.0
      %3592 = vmatprep.subr.mxu0 0.0
      %3593 = vmatpush1.msra.mxu0 0.0
      %3594 = vmatprep.subr.mxu0 0.0
      %3595 = vmatpush1.msra.mxu0 0.0
      %3596 = vmatprep.subr.mxu0 0.0
      %3597 = vmatpush1.msra.mxu0 0.0
      %3598 = vmatprep.subr.mxu0 0.0
      %3599 = vmatpush1.msra.mxu0 0.0
      %3600 = vmatprep.subr.mxu0 0.0
      %3601 = vmatpush1.msra.mxu0 0.0
      %3602 = vmatprep.subr.mxu0 0.0
      %3603 = vmatpush1.msra.mxu0 0.0
      %3604 = vmatprep.subr.mxu0 0.0
      %3605 = vmatpush1.msra.mxu0 0.0
      %3606 = vmatprep.subr.mxu0 0.0
      %3607 = vmatpush1.msra.mxu0 0.0
      %3608 = vmatprep.subr.mxu0 0.0
      %3609 = vmatpush1.msra.mxu0 0.0
      %3610 = vmatprep.subr.mxu0 0.0
      %3611 = vmatpush1.msra.mxu0 0.0
      %3612 = vmatprep.mubr.f32.mxu0 %v3270
      %3613 = vmatmul.mubr.f32.gmra.mrb[0].mxu0 %v2641
      %v3614 = vpop.f32.mrb[0].mxu0
      %v3615 = vadd.f32 %v3252, %v3614
      %v3616 = vpop.f32.mrb[0].mxu0
      %v3617 = vadd.f32 %v3252, %v3616
      %3618 = vmatprep.mubr.f32.mxu0 %v3273
      %3619 = vmatmul.mubr.f32.gmra.mrb[0].mxu0 %v2643
      %v3620 = vpop.f32.mrb[0].mxu0
      %v3621 = vadd.f32 %v3257, %v3620
      %v3622 = vpop.f32.mrb[0].mxu0
      %v3623 = vadd.f32 %v3257, %v3622
      %3624 = vmatprep.mubr.f32.mxu0 %v3276
      %3625 = vmatmul.mubr.f32.gmra.mrb[0].mxu0 %v2645
      %v3626 = vpop.f32.mrb[0].mxu0
      %v3627 = vadd.f32 %v3262, %v3626
      %v3628 = vpop.f32.mrb[0].mxu0
      %v3629 = vadd.f32 %v3262, %v3628
      %3630 = vmatprep.mubr.f32.mxu0 %v3279
      %3631 = vmatmul.mubr.f32.gmra.mrb[0].mxu0 %v2647
      %v3632 = vpop.f32.mrb[0].mxu0
      %v3633 = vadd.f32 %v3267, %v3632
      %v3634 = vpop.f32.mrb[0].mxu0
      %v3635 = vadd.f32 %v3267, %v3634
      %3636 = vdwg.mxu0
      %v3637 = vmax.f32 %v3348, 0.0
      %v3638 = vmax.f32 %v3350, 0.0
      %v3639 = vmax.f32 %v3437, 0.0
      %v3640 = vmax.f32 %v3439, 0.0
      %v3641 = vmax.f32 %v3526, 0.0
      %v3642 = vmax.f32 %v3528, 0.0
      %v3643 = vmax.f32 %v3615, 0.0
      %v3644 = vmax.f32 %v3617, 0.0
      %v3645 = vmax.f32 %v3354, 0.0
      %v3646 = vmax.f32 %v3356, 0.0
      %v3647 = vmax.f32 %v3443, 0.0
      %v3648 = vmax.f32 %v3445, 0.0
      %v3649 = vmax.f32 %v3532, 0.0
      %v3650 = vmax.f32 %v3534, 0.0
      %v3651 = vmax.f32 %v3621, 0.0
      %v3652 = vmax.f32 %v3623, 0.0
      %v3653 = vmax.f32 %v3360, 0.0
      %v3654 = vmax.f32 %v3362, 0.0
      %v3655 = vmax.f32 %v3449, 0.0
      %v3656 = vmax.f32 %v3451, 0.0
      %v3657 = vmax.f32 %v3538, 0.0
      %v3658 = vmax.f32 %v3540, 0.0
      %v3659 = vmax.f32 %v3627, 0.0
      %v3660 = vmax.f32 %v3629, 0.0
      %v3661 = vmax.f32 %v3366, 0.0
      %v3662 = vmax.f32 %v3368, 0.0
      %v3663 = vmax.f32 %v3455, 0.0
      %v3664 = vmax.f32 %v3457, 0.0
      %v3665 = vmax.f32 %v3544, 0.0
      %v3666 = vmax.f32 %v3546, 0.0
      %v3667 = vmax.f32 %v3633, 0.0
      %v3668 = vmax.f32 %v3635, 0.0
      %v3669 = vld [vmem:[%s11] sm:$0xff]
      %v3670 = vld [vmem:[%s11 + $0x8] sm:$0xff]
      %v3671 = vld [vmem:[%s11 + $0x10] sm:$0xff]
      %v3672 = vld [vmem:[%s11 + $0x18] sm:$0xff]
      %v3673 = vld [vmem:[%s11 + $0x20] sm:$0xff]
      %v3674 = vld [vmem:[%s11 + $0x28] sm:$0xff]
      %v3675 = vld [vmem:[%s11 + $0x30] sm:$0xff]
      %v3676 = vld [vmem:[%s11 + $0x38] sm:$0xff]
      %v3677 = vld [vmem:[%s12] sm:$0xff]
      %v3678 = vld [vmem:[%s12 + $0x8] sm:$0xff]
      %v3679 = vld [vmem:[%s12 + $0x10] sm:$0xff]
      %v3680 = vld [vmem:[%s12 + $0x18] sm:$0xff]
      %3681 = vrot.lane.b32.xlu0 %v3637, 8
      %v3682 = vpop.permute.xlu0 %3681
      %3683 = vrot.lane.b32.xlu0 %v3645, 8
      %v3684 = vpop.permute.xlu0 %3683
      %3685 = vrot.lane.b32.xlu0 %v3653, 8
      %v3686 = vpop.permute.xlu0 %3685
      %3687 = vrot.lane.b32.xlu0 %v3661, 8
      %v3688 = vpop.permute.xlu0 %3687
      %3689 = vrot.lane.b32.xlu0 %v3638, 8
      %v3690 = vpop.permute.xlu0 %3689
      %3691 = vrot.lane.b32.xlu0 %v3646, 8
      %v3692 = vpop.permute.xlu0 %3691
      %3693 = vrot.lane.b32.xlu0 %v3654, 8
      %v3694 = vpop.permute.xlu0 %3693
      %3695 = vrot.lane.b32.xlu0 %v3662, 8
      %v3696 = vpop.permute.xlu0 %3695
      %3697 = vrot.lane.b32.xlu0 %v3639, 8
      %v3698 = vpop.permute.xlu0 %3697
      %3699 = vrot.lane.b32.xlu0 %v3647, 8
      %v3700 = vpop.permute.xlu0 %3699
      %3701 = vrot.lane.b32.xlu0 %v3655, 8
      %v3702 = vpop.permute.xlu0 %3701
      %3703 = vrot.lane.b32.xlu0 %v3663, 8
      %v3704 = vpop.permute.xlu0 %3703
      %3705 = vrot.lane.b32.xlu0 %v3640, 8
      %v3706 = vpop.permute.xlu0 %3705
      %3707 = vrot.lane.b32.xlu0 %v3648, 8
      %v3708 = vpop.permute.xlu0 %3707
      %3709 = vrot.lane.b32.xlu0 %v3656, 8
      %v3710 = vpop.permute.xlu0 %3709
      %3711 = vrot.lane.b32.xlu0 %v3664, 8
      %v3712 = vpop.permute.xlu0 %3711
      %3713 = vrot.lane.b32.xlu0 %v3641, 8
      %v3714 = vpop.permute.xlu0 %3713
      %3715 = vrot.lane.b32.xlu0 %v3649, 8
      %v3716 = vpop.permute.xlu0 %3715
      %3717 = vrot.lane.b32.xlu0 %v3657, 8
      %v3718 = vpop.permute.xlu0 %3717
      %3719 = vrot.lane.b32.xlu0 %v3665, 8
      %v3720 = vpop.permute.xlu0 %3719
      %3721 = vrot.lane.b32.xlu0 %v3642, 8
      %v3722 = vpop.permute.xlu0 %3721
      %3723 = vrot.lane.b32.xlu0 %v3650, 8
      %v3724 = vpop.permute.xlu0 %3723
      %3725 = vrot.lane.b32.xlu0 %v3658, 8
      %v3726 = vpop.permute.xlu0 %3725
      %3727 = vrot.lane.b32.xlu0 %v3666, 8
      %v3728 = vpop.permute.xlu0 %3727
      %3729 = vrot.lane.b32.xlu0 %v3643, 8
      %v3730 = vpop.permute.xlu0 %3729
      %3731 = vrot.lane.b32.xlu0 %v3651, 8
      %v3732 = vpop.permute.xlu0 %3731
      %3733 = vrot.lane.b32.xlu0 %v3659, 8
      %v3734 = vpop.permute.xlu0 %3733
      %3735 = vrot.lane.b32.xlu0 %v3667, 8
      %v3736 = vpop.permute.xlu0 %3735
      %3737 = vrot.lane.b32.xlu0 %v3644, 8
      %v3738 = vpop.permute.xlu0 %3737
      %3739 = vrot.lane.b32.xlu0 %v3652, 8
      %v3740 = vpop.permute.xlu0 %3739
      %3741 = vrot.lane.b32.xlu0 %v3660, 8
      %v3742 = vpop.permute.xlu0 %3741
      %3743 = vrot.lane.b32.xlu0 %v3668, 8
      %v3744 = vpop.permute.xlu0 %3743
      %v3745 = vsel %vm2717, %v3730, %v3738
      %v3746 = vsel %vm2717, %v3732, %v3740
      %v3747 = vsel %vm2717, %v3734, %v3742
      %v3748 = vsel %vm2717, %v3736, %v3744
      %v3749 = vsel %vm2717, %v3722, %v3730
      %v3750 = vsel %vm2717, %v3724, %v3732
      %v3751 = vsel %vm2717, %v3726, %v3734
      %v3752 = vsel %vm2717, %v3728, %v3736
      %v3753 = vsel %vm2717, %v3714, %v3722
      %v3754 = vsel %vm2717, %v3716, %v3724
      %v3755 = vsel %vm2717, %v3718, %v3726
      %v3756 = vsel %vm2717, %v3720, %v3728
      %v3757 = vsel %vm2717, %v3706, %v3714
      %v3758 = vsel %vm2717, %v3708, %v3716
      %v3759 = vsel %vm2717, %v3710, %v3718
      %v3760 = vsel %vm2717, %v3712, %v3720
      %v3761 = vsel %vm2717, %v3698, %v3706
      %v3762 = vsel %vm2717, %v3700, %v3708
      %v3763 = vsel %vm2717, %v3702, %v3710
      %v3764 = vsel %vm2717, %v3704, %v3712
      %v3765 = vsel %vm2717, %v3690, %v3698
      %v3766 = vsel %vm2717, %v3692, %v3700
      %v3767 = vsel %vm2717, %v3694, %v3702
      %v3768 = vsel %vm2717, %v3696, %v3704
      %v3769 = vsel %vm2717, %v3682, %v3690
      %v3770 = vsel %vm2717, %v3684, %v3692
      %v3771 = vsel %vm2717, %v3686, %v3694
      %v3772 = vsel %vm2717, %v3688, %v3696
      %v3773 = vsel %vm2717, %v3738, %v3682
      %v3774 = vsel %vm2717, %v3740, %v3684
      %v3775 = vsel %vm2717, %v3742, %v3686
      %v3776 = vsel %vm2717, %v3744, %v3688
      %v3777 = vsel %vm2783, %v3773, 0.0
      %v3778 = vsel %vm2784, %v3769, 0.0
      %v3779 = vsel %vm2785, %v3765, 0.0
      %v3780 = vsel %vm2786, %v3761, 0.0
      %v3781 = vsel %vm2787, %v3757, 0.0
      %v3782 = vsel %vm2788, %v3753, 0.0
      %v3783 = vsel %vm2789, %v3749, 0.0
      %v3784 = vsel %vm2790, %v3745, 0.0
      %v3785 = vsel %vm2783, %v3774, 0.0
      %v3786 = vsel %vm2784, %v3770, 0.0
      %v3787 = vsel %vm2785, %v3766, 0.0
      %v3788 = vsel %vm2786, %v3762, 0.0
      %v3789 = vsel %vm2787, %v3758, 0.0
      %v3790 = vsel %vm2788, %v3754, 0.0
      %v3791 = vsel %vm2789, %v3750, 0.0
      %v3792 = vsel %vm2790, %v3746, 0.0
      %v3793 = vsel %vm2783, %v3775, 0.0
      %v3794 = vsel %vm2784, %v3771, 0.0
      %v3795 = vsel %vm2785, %v3767, 0.0
      %v3796 = vsel %vm2786, %v3763, 0.0
      %v3797 = vsel %vm2787, %v3759, 0.0
      %v3798 = vsel %vm2788, %v3755, 0.0
      %v3799 = vsel %vm2789, %v3751, 0.0
      %v3800 = vsel %vm2790, %v3747, 0.0
      %v3801 = vsel %vm2783, %v3776, 0.0
      %v3802 = vsel %vm2784, %v3772, 0.0
      %v3803 = vsel %vm2785, %v3768, 0.0
      %v3804 = vsel %vm2786, %v3764, 0.0
      %v3805 = vsel %vm2787, %v3760, 0.0
      %v3806 = vsel %vm2788, %v3756, 0.0
      %v3807 = vsel %vm2789, %v3752, 0.0
      %v3808 = vsel %vm2790, %v3748, 0.0
      %3809 = vrot.lane.b32.xlu0 %v3637, 6
      %v3810 = vpop.permute.xlu0 %3809
      %3811 = vrot.lane.b32.xlu0 %v3645, 6
      %v3812 = vpop.permute.xlu0 %3811
      %3813 = vrot.lane.b32.xlu0 %v3653, 6
      %v3814 = vpop.permute.xlu0 %3813
      %3815 = vrot.lane.b32.xlu0 %v3661, 6
      %v3816 = vpop.permute.xlu0 %3815
      %3817 = vrot.lane.b32.xlu0 %v3638, 6
      %v3818 = vpop.permute.xlu0 %3817
      %3819 = vrot.lane.b32.xlu0 %v3646, 6
      %v3820 = vpop.permute.xlu0 %3819
      %3821 = vrot.lane.b32.xlu0 %v3654, 6
      %v3822 = vpop.permute.xlu0 %3821
      %3823 = vrot.lane.b32.xlu0 %v3662, 6
      %v3824 = vpop.permute.xlu0 %3823
      %3825 = vrot.lane.b32.xlu0 %v3639, 6
      %v3826 = vpop.permute.xlu0 %3825
      %3827 = vrot.lane.b32.xlu0 %v3647, 6
      %v3828 = vpop.permute.xlu0 %3827
      %3829 = vrot.lane.b32.xlu0 %v3655, 6
      %v3830 = vpop.permute.xlu0 %3829
      %3831 = vrot.lane.b32.xlu0 %v3663, 6
      %v3832 = vpop.permute.xlu0 %3831
      %3833 = vrot.lane.b32.xlu0 %v3640, 6
      %v3834 = vpop.permute.xlu0 %3833
      %3835 = vrot.lane.b32.xlu0 %v3648, 6
      %v3836 = vpop.permute.xlu0 %3835
      %3837 = vrot.lane.b32.xlu0 %v3656, 6
      %v3838 = vpop.permute.xlu0 %3837
      %3839 = vrot.lane.b32.xlu0 %v3664, 6
      %v3840 = vpop.permute.xlu0 %3839
      %3841 = vrot.lane.b32.xlu0 %v3641, 6
      %v3842 = vpop.permute.xlu0 %3841
      %3843 = vrot.lane.b32.xlu0 %v3649, 6
      %v3844 = vpop.permute.xlu0 %3843
      %3845 = vrot.lane.b32.xlu0 %v3657, 6
      %v3846 = vpop.permute.xlu0 %3845
      %3847 = vrot.lane.b32.xlu0 %v3665, 6
      %v3848 = vpop.permute.xlu0 %3847
      %3849 = vrot.lane.b32.xlu0 %v3642, 6
      %v3850 = vpop.permute.xlu0 %3849
      %3851 = vrot.lane.b32.xlu0 %v3650, 6
      %v3852 = vpop.permute.xlu0 %3851
      %3853 = vrot.lane.b32.xlu0 %v3658, 6
      %v3854 = vpop.permute.xlu0 %3853
      %3855 = vrot.lane.b32.xlu0 %v3666, 6
      %v3856 = vpop.permute.xlu0 %3855
      %3857 = vrot.lane.b32.xlu0 %v3643, 6
      %v3858 = vpop.permute.xlu0 %3857
      %3859 = vrot.lane.b32.xlu0 %v3651, 6
      %v3860 = vpop.permute.xlu0 %3859
      %3861 = vrot.lane.b32.xlu0 %v3659, 6
      %v3862 = vpop.permute.xlu0 %3861
      %3863 = vrot.lane.b32.xlu0 %v3667, 6
      %v3864 = vpop.permute.xlu0 %3863
      %3865 = vrot.lane.b32.xlu0 %v3644, 6
      %v3866 = vpop.permute.xlu0 %3865
      %3867 = vrot.lane.b32.xlu0 %v3652, 6
      %v3868 = vpop.permute.xlu0 %3867
      %3869 = vrot.lane.b32.xlu0 %v3660, 6
      %v3870 = vpop.permute.xlu0 %3869
      %3871 = vrot.lane.b32.xlu0 %v3668, 6
      %v3872 = vpop.permute.xlu0 %3871
      %v3873 = vsel %vm2887, %v3858, %v3866
      %v3874 = vsel %vm2887, %v3860, %v3868
      %v3875 = vsel %vm2887, %v3862, %v3870
      %v3876 = vsel %vm2887, %v3864, %v3872
      %v3877 = vsel %vm2887, %v3850, %v3858
      %v3878 = vsel %vm2887, %v3852, %v3860
      %v3879 = vsel %vm2887, %v3854, %v3862
      %v3880 = vsel %vm2887, %v3856, %v3864
      %v3881 = vsel %vm2887, %v3842, %v3850
      %v3882 = vsel %vm2887, %v3844, %v3852
      %v3883 = vsel %vm2887, %v3846, %v3854
      %v3884 = vsel %vm2887, %v3848, %v3856
      %v3885 = vsel %vm2887, %v3834, %v3842
      %v3886 = vsel %vm2887, %v3836, %v3844
      %v3887 = vsel %vm2887, %v3838, %v3846
      %v3888 = vsel %vm2887, %v3840, %v3848
      %v3889 = vsel %vm2887, %v3826, %v3834
      %v3890 = vsel %vm2887, %v3828, %v3836
      %v3891 = vsel %vm2887, %v3830, %v3838
      %v3892 = vsel %vm2887, %v3832, %v3840
      %v3893 = vsel %vm2887, %v3818, %v3826
      %v3894 = vsel %vm2887, %v3820, %v3828
      %v3895 = vsel %vm2887, %v3822, %v3830
      %v3896 = vsel %vm2887, %v3824, %v3832
      %v3897 = vsel %vm2887, %v3810, %v3818
      %v3898 = vsel %vm2887, %v3812, %v3820
      %v3899 = vsel %vm2887, %v3814, %v3822
      %v3900 = vsel %vm2887, %v3816, %v3824
      %v3901 = vsel %vm2887, %v3866, %v3810
      %v3902 = vsel %vm2887, %v3868, %v3812
      %v3903 = vsel %vm2887, %v3870, %v3814
      %v3904 = vsel %vm2887, %v3872, %v3816
      %v3905 = vsel %vm2953, %v3901, 0.0
      %v3906 = vsel %vm2954, %v3897, 0.0
      %v3907 = vsel %vm2955, %v3893, 0.0
      %v3908 = vsel %vm2956, %v3889, 0.0
      %v3909 = vsel %vm2957, %v3885, 0.0
      %v3910 = vsel %vm2958, %v3881, 0.0
      %v3911 = vsel %vm2959, %v3877, 0.0
      %v3912 = vsel %vm2960, %v3873, 0.0
      %v3913 = vsel %vm2953, %v3902, 0.0
      %v3914 = vsel %vm2954, %v3898, 0.0
      %v3915 = vsel %vm2955, %v3894, 0.0
      %v3916 = vsel %vm2956, %v3890, 0.0
      %v3917 = vsel %vm2957, %v3886, 0.0
      %v3918 = vsel %vm2958, %v3882, 0.0
      %v3919 = vsel %vm2959, %v3878, 0.0
      %v3920 = vsel %vm2960, %v3874, 0.0
      %v3921 = vsel %vm2953, %v3903, 0.0
      %v3922 = vsel %vm2954, %v3899, 0.0
      %v3923 = vsel %vm2955, %v3895, 0.0
      %v3924 = vsel %vm2956, %v3891, 0.0
      %v3925 = vsel %vm2957, %v3887, 0.0
      %v3926 = vsel %vm2958, %v3883, 0.0
      %v3927 = vsel %vm2959, %v3879, 0.0
      %v3928 = vsel %vm2960, %v3875, 0.0
      %v3929 = vsel %vm2953, %v3904, 0.0
      %v3930 = vsel %vm2954, %v3900, 0.0
      %v3931 = vsel %vm2955, %v3896, 0.0
      %v3932 = vsel %vm2956, %v3892, 0.0
      %v3933 = vsel %vm2957, %v3888, 0.0
      %v3934 = vsel %vm2958, %v3884, 0.0
      %v3935 = vsel %vm2959, %v3880, 0.0
      %v3936 = vsel %vm2960, %v3876, 0.0
      %3937 = vrot.lane.b32.xlu0 %v3637, 4
      %v3938 = vpop.permute.xlu0 %3937
      %3939 = vrot.lane.b32.xlu0 %v3645, 4
      %v3940 = vpop.permute.xlu0 %3939
      %3941 = vrot.lane.b32.xlu0 %v3653, 4
      %v3942 = vpop.permute.xlu0 %3941
      %3943 = vrot.lane.b32.xlu0 %v3661, 4
      %v3944 = vpop.permute.xlu0 %3943
      %3945 = vrot.lane.b32.xlu0 %v3638, 4
      %v3946 = vpop.permute.xlu0 %3945
      %3947 = vrot.lane.b32.xlu0 %v3646, 4
      %v3948 = vpop.permute.xlu0 %3947
      %3949 = vrot.lane.b32.xlu0 %v3654, 4
      %v3950 = vpop.permute.xlu0 %3949
      %3951 = vrot.lane.b32.xlu0 %v3662, 4
      %v3952 = vpop.permute.xlu0 %3951
      %3953 = vrot.lane.b32.xlu0 %v3639, 4
      %v3954 = vpop.permute.xlu0 %3953
      %3955 = vrot.lane.b32.xlu0 %v3647, 4
      %v3956 = vpop.permute.xlu0 %3955
      %3957 = vrot.lane.b32.xlu0 %v3655, 4
      %v3958 = vpop.permute.xlu0 %3957
      %3959 = vrot.lane.b32.xlu0 %v3663, 4
      %v3960 = vpop.permute.xlu0 %3959
      %3961 = vrot.lane.b32.xlu0 %v3640, 4
      %v3962 = vpop.permute.xlu0 %3961
      %3963 = vrot.lane.b32.xlu0 %v3648, 4
      %v3964 = vpop.permute.xlu0 %3963
      %3965 = vrot.lane.b32.xlu0 %v3656, 4
      %v3966 = vpop.permute.xlu0 %3965
      %3967 = vrot.lane.b32.xlu0 %v3664, 4
      %v3968 = vpop.permute.xlu0 %3967
      %3969 = vrot.lane.b32.xlu0 %v3641, 4
      %v3970 = vpop.permute.xlu0 %3969
      %3971 = vrot.lane.b32.xlu0 %v3649, 4
      %v3972 = vpop.permute.xlu0 %3971
      %3973 = vrot.lane.b32.xlu0 %v3657, 4
      %v3974 = vpop.permute.xlu0 %3973
      %3975 = vrot.lane.b32.xlu0 %v3665, 4
      %v3976 = vpop.permute.xlu0 %3975
      %3977 = vrot.lane.b32.xlu0 %v3642, 4
      %v3978 = vpop.permute.xlu0 %3977
      %3979 = vrot.lane.b32.xlu0 %v3650, 4
      %v3980 = vpop.permute.xlu0 %3979
      %3981 = vrot.lane.b32.xlu0 %v3658, 4
      %v3982 = vpop.permute.xlu0 %3981
      %3983 = vrot.lane.b32.xlu0 %v3666, 4
      %v3984 = vpop.permute.xlu0 %3983
      %3985 = vrot.lane.b32.xlu0 %v3643, 4
      %v3986 = vpop.permute.xlu0 %3985
      %3987 = vrot.lane.b32.xlu0 %v3651, 4
      %v3988 = vpop.permute.xlu0 %3987
      %3989 = vrot.lane.b32.xlu0 %v3659, 4
      %v3990 = vpop.permute.xlu0 %3989
      %3991 = vrot.lane.b32.xlu0 %v3667, 4
      %v3992 = vpop.permute.xlu0 %3991
      %3993 = vrot.lane.b32.xlu0 %v3644, 4
      %v3994 = vpop.permute.xlu0 %3993
      %3995 = vrot.lane.b32.xlu0 %v3652, 4
      %v3996 = vpop.permute.xlu0 %3995
      %3997 = vrot.lane.b32.xlu0 %v3660, 4
      %v3998 = vpop.permute.xlu0 %3997
      %3999 = vrot.lane.b32.xlu0 %v3668, 4
      %v4000 = vpop.permute.xlu0 %3999
      %v4001 = vsel %vm532, %v3986, %v3994
      %v4002 = vsel %vm532, %v3988, %v3996
      %v4003 = vsel %vm532, %v3990, %v3998
      %v4004 = vsel %vm532, %v3992, %v4000
      %v4005 = vsel %vm532, %v3978, %v3986
      %v4006 = vsel %vm532, %v3980, %v3988
      %v4007 = vsel %vm532, %v3982, %v3990
      %v4008 = vsel %vm532, %v3984, %v3992
      %v4009 = vsel %vm532, %v3970, %v3978
      %v4010 = vsel %vm532, %v3972, %v3980
      %v4011 = vsel %vm532, %v3974, %v3982
      %v4012 = vsel %vm532, %v3976, %v3984
      %v4013 = vsel %vm532, %v3962, %v3970
      %v4014 = vsel %vm532, %v3964, %v3972
      %v4015 = vsel %vm532, %v3966, %v3974
      %v4016 = vsel %vm532, %v3968, %v3976
      %v4017 = vsel %vm532, %v3954, %v3962
      %v4018 = vsel %vm532, %v3956, %v3964
      %v4019 = vsel %vm532, %v3958, %v3966
      %v4020 = vsel %vm532, %v3960, %v3968
      %v4021 = vsel %vm532, %v3946, %v3954
      %v4022 = vsel %vm532, %v3948, %v3956
      %v4023 = vsel %vm532, %v3950, %v3958
      %v4024 = vsel %vm532, %v3952, %v3960
      %v4025 = vsel %vm532, %v3938, %v3946
      %v4026 = vsel %vm532, %v3940, %v3948
      %v4027 = vsel %vm532, %v3942, %v3950
      %v4028 = vsel %vm532, %v3944, %v3952
      %v4029 = vsel %vm532, %v3994, %v3938
      %v4030 = vsel %vm532, %v3996, %v3940
      %v4031 = vsel %vm532, %v3998, %v3942
      %v4032 = vsel %vm532, %v4000, %v3944
      %v4033 = vsel %vm574, %v4029, 0.0
      %v4034 = vsel %vm575, %v4025, 0.0
      %v4035 = vsel %vm576, %v4021, 0.0
      %v4036 = vsel %vm577, %v4017, 0.0
      %v4037 = vsel %vm578, %v4013, 0.0
      %v4038 = vsel %vm579, %v4009, 0.0
      %v4039 = vsel %vm580, %v4005, 0.0
      %v4040 = vsel %vm581, %v4001, 0.0
      %v4041 = vsel %vm574, %v4030, 0.0
      %v4042 = vsel %vm575, %v4026, 0.0
      %v4043 = vsel %vm576, %v4022, 0.0
      %v4044 = vsel %vm577, %v4018, 0.0
      %v4045 = vsel %vm578, %v4014, 0.0
      %v4046 = vsel %vm579, %v4010, 0.0
      %v4047 = vsel %vm580, %v4006, 0.0
      %v4048 = vsel %vm581, %v4002, 0.0
      %v4049 = vsel %vm574, %v4031, 0.0
      %v4050 = vsel %vm575, %v4027, 0.0
      %v4051 = vsel %vm576, %v4023, 0.0
      %v4052 = vsel %vm577, %v4019, 0.0
      %v4053 = vsel %vm578, %v4015, 0.0
      %v4054 = vsel %vm579, %v4011, 0.0
      %v4055 = vsel %vm580, %v4007, 0.0
      %v4056 = vsel %vm581, %v4003, 0.0
      %v4057 = vsel %vm574, %v4032, 0.0
      %v4058 = vsel %vm575, %v4028, 0.0
      %v4059 = vsel %vm576, %v4024, 0.0
      %v4060 = vsel %vm577, %v4020, 0.0
      %v4061 = vsel %vm578, %v4016, 0.0
      %v4062 = vsel %vm579, %v4012, 0.0
      %v4063 = vsel %vm580, %v4008, 0.0
      %v4064 = vsel %vm581, %v4004, 0.0
      %4065 = vrot.lane.b32.xlu0 %v3637, 2
      %v4066 = vpop.permute.xlu0 %4065
      %4067 = vrot.lane.b32.xlu0 %v3645, 2
      %v4068 = vpop.permute.xlu0 %4067
      %4069 = vrot.lane.b32.xlu0 %v3653, 2
      %v4070 = vpop.permute.xlu0 %4069
      %4071 = vrot.lane.b32.xlu0 %v3661, 2
      %v4072 = vpop.permute.xlu0 %4071
      %4073 = vrot.lane.b32.xlu0 %v3638, 2
      %v4074 = vpop.permute.xlu0 %4073
      %4075 = vrot.lane.b32.xlu0 %v3646, 2
      %v4076 = vpop.permute.xlu0 %4075
      %4077 = vrot.lane.b32.xlu0 %v3654, 2
      %v4078 = vpop.permute.xlu0 %4077
      %4079 = vrot.lane.b32.xlu0 %v3662, 2
      %v4080 = vpop.permute.xlu0 %4079
      %4081 = vrot.lane.b32.xlu0 %v3639, 2
      %v4082 = vpop.permute.xlu0 %4081
      %4083 = vrot.lane.b32.xlu0 %v3647, 2
      %v4084 = vpop.permute.xlu0 %4083
      %4085 = vrot.lane.b32.xlu0 %v3655, 2
      %v4086 = vpop.permute.xlu0 %4085
      %4087 = vrot.lane.b32.xlu0 %v3663, 2
      %v4088 = vpop.permute.xlu0 %4087
      %4089 = vrot.lane.b32.xlu0 %v3640, 2
      %v4090 = vpop.permute.xlu0 %4089
      %4091 = vrot.lane.b32.xlu0 %v3648, 2
      %v4092 = vpop.permute.xlu0 %4091
      %4093 = vrot.lane.b32.xlu0 %v3656, 2
      %v4094 = vpop.permute.xlu0 %4093
      %4095 = vrot.lane.b32.xlu0 %v3664, 2
      %v4096 = vpop.permute.xlu0 %4095
      %4097 = vrot.lane.b32.xlu0 %v3641, 2
      %v4098 = vpop.permute.xlu0 %4097
      %4099 = vrot.lane.b32.xlu0 %v3649, 2
      %v4100 = vpop.permute.xlu0 %4099
      %4101 = vrot.lane.b32.xlu0 %v3657, 2
      %v4102 = vpop.permute.xlu0 %4101
      %4103 = vrot.lane.b32.xlu0 %v3665, 2
      %v4104 = vpop.permute.xlu0 %4103
      %4105 = vrot.lane.b32.xlu0 %v3642, 2
      %v4106 = vpop.permute.xlu0 %4105
      %4107 = vrot.lane.b32.xlu0 %v3650, 2
      %v4108 = vpop.permute.xlu0 %4107
      %4109 = vrot.lane.b32.xlu0 %v3658, 2
      %v4110 = vpop.permute.xlu0 %4109
      %4111 = vrot.lane.b32.xlu0 %v3666, 2
      %v4112 = vpop.permute.xlu0 %4111
      %4113 = vrot.lane.b32.xlu0 %v3643, 2
      %v4114 = vpop.permute.xlu0 %4113
      %4115 = vrot.lane.b32.xlu0 %v3651, 2
      %v4116 = vpop.permute.xlu0 %4115
      %4117 = vrot.lane.b32.xlu0 %v3659, 2
      %v4118 = vpop.permute.xlu0 %4117
      %4119 = vrot.lane.b32.xlu0 %v3667, 2
      %v4120 = vpop.permute.xlu0 %4119
      %4121 = vrot.lane.b32.xlu0 %v3644, 2
      %v4122 = vpop.permute.xlu0 %4121
      %4123 = vrot.lane.b32.xlu0 %v3652, 2
      %v4124 = vpop.permute.xlu0 %4123
      %4125 = vrot.lane.b32.xlu0 %v3660, 2
      %v4126 = vpop.permute.xlu0 %4125
      %4127 = vrot.lane.b32.xlu0 %v3668, 2
      %v4128 = vpop.permute.xlu0 %4127
      %v4129 = vsel %vm680, %v4114, %v4122
      %v4130 = vsel %vm680, %v4116, %v4124
      %v4131 = vsel %vm680, %v4118, %v4126
      %v4132 = vsel %vm680, %v4120, %v4128
      %v4133 = vsel %vm680, %v4106, %v4114
      %v4134 = vsel %vm680, %v4108, %v4116
      %v4135 = vsel %vm680, %v4110, %v4118
      %v4136 = vsel %vm680, %v4112, %v4120
      %v4137 = vsel %vm680, %v4098, %v4106
      %v4138 = vsel %vm680, %v4100, %v4108
      %v4139 = vsel %vm680, %v4102, %v4110
      %v4140 = vsel %vm680, %v4104, %v4112
      %v4141 = vsel %vm680, %v4090, %v4098
      %v4142 = vsel %vm680, %v4092, %v4100
      %v4143 = vsel %vm680, %v4094, %v4102
      %v4144 = vsel %vm680, %v4096, %v4104
      %v4145 = vsel %vm680, %v4082, %v4090
      %v4146 = vsel %vm680, %v4084, %v4092
      %v4147 = vsel %vm680, %v4086, %v4094
      %v4148 = vsel %vm680, %v4088, %v4096
      %v4149 = vsel %vm680, %v4074, %v4082
      %v4150 = vsel %vm680, %v4076, %v4084
      %v4151 = vsel %vm680, %v4078, %v4086
      %v4152 = vsel %vm680, %v4080, %v4088
      %v4153 = vsel %vm680, %v4066, %v4074
      %v4154 = vsel %vm680, %v4068, %v4076
      %v4155 = vsel %vm680, %v4070, %v4078
      %v4156 = vsel %vm680, %v4072, %v4080
      %v4157 = vsel %vm680, %v4122, %v4066
      %v4158 = vsel %vm680, %v4124, %v4068
      %v4159 = vsel %vm680, %v4126, %v4070
      %v4160 = vsel %vm680, %v4128, %v4072
      %v4161 = vsel %vm722, %v4157, 0.0
      %v4162 = vsel %vm723, %v4153, 0.0
      %v4163 = vsel %vm724, %v4149, 0.0
      %v4164 = vsel %vm725, %v4145, 0.0
      %v4165 = vsel %vm726, %v4141, 0.0
      %v4166 = vsel %vm727, %v4137, 0.0
      %v4167 = vsel %vm728, %v4133, 0.0
      %v4168 = vsel %vm729, %v4129, 0.0
      %v4169 = vsel %vm722, %v4158, 0.0
      %v4170 = vsel %vm723, %v4154, 0.0
      %v4171 = vsel %vm724, %v4150, 0.0
      %v4172 = vsel %vm725, %v4146, 0.0
      %v4173 = vsel %vm726, %v4142, 0.0
      %v4174 = vsel %vm727, %v4138, 0.0
      %v4175 = vsel %vm728, %v4134, 0.0
      %v4176 = vsel %vm729, %v4130, 0.0
      %v4177 = vsel %vm722, %v4159, 0.0
      %v4178 = vsel %vm723, %v4155, 0.0
      %v4179 = vsel %vm724, %v4151, 0.0
      %v4180 = vsel %vm725, %v4147, 0.0
      %v4181 = vsel %vm726, %v4143, 0.0
      %v4182 = vsel %vm727, %v4139, 0.0
      %v4183 = vsel %vm728, %v4135, 0.0
      %v4184 = vsel %vm729, %v4131, 0.0
      %v4185 = vsel %vm722, %v4160, 0.0
      %v4186 = vsel %vm723, %v4156, 0.0
      %v4187 = vsel %vm724, %v4152, 0.0
      %v4188 = vsel %vm725, %v4148, 0.0
      %v4189 = vsel %vm726, %v4144, 0.0
      %v4190 = vsel %vm727, %v4140, 0.0
      %v4191 = vsel %vm728, %v4136, 0.0
      %v4192 = vsel %vm729, %v4132, 0.0
      %4194 = vset.pattern.permute.xlu0 0
      %4195 = vperm.xlu0 %4194, %v3677
      %v4196 = vpop.permute.xlu0 %4195
      %4199 = vset.pattern.permute.xlu0 0
      %4200 = vperm.xlu0 %4199, %v3678
      %v4201 = vpop.permute.xlu0 %4200
      %4204 = vset.pattern.permute.xlu0 0
      %4205 = vperm.xlu0 %4204, %v3679
      %v4206 = vpop.permute.xlu0 %4205
      %4209 = vset.pattern.permute.xlu0 0
      %4210 = vperm.xlu0 %4209, %v3680
      %v4211 = vpop.permute.xlu0 %4210
      %v4214 = vsel %vm1777, %v3670, 0
      %v4217 = vsel %vm1777, %v3672, 0
      %v4220 = vsel %vm1777, %v3674, 0
      %v4223 = vsel %vm1777, %v3676, 0
      %4225 = vmatprep.subr.mxu0 %v3778
      %4226 = vmatpush1.msra.mxu0 %v3777
      %4227 = vmatprep.subr.mxu0 %v3786
      %4228 = vmatpush1.msra.mxu0 %v3785
      %4229 = vmatprep.subr.mxu0 %v3794
      %4230 = vmatpush1.msra.mxu0 %v3793
      %4231 = vmatprep.subr.mxu0 %v3802
      %4232 = vmatpush1.msra.mxu0 %v3801
      %4233 = vmatprep.subr.mxu0 %v3906
      %4234 = vmatpush1.msra.mxu0 %v3905
      %4235 = vmatprep.subr.mxu0 %v3914
      %4236 = vmatpush1.msra.mxu0 %v3913
      %4237 = vmatprep.subr.mxu0 %v3922
      %4238 = vmatpush1.msra.mxu0 %v3921
      %4239 = vmatprep.subr.mxu0 %v3930
      %4240 = vmatpush1.msra.mxu0 %v3929
      %4241 = vmatprep.subr.mxu0 %v4034
      %4242 = vmatpush1.msra.mxu0 %v4033
      %4243 = vmatprep.subr.mxu0 %v4042
      %4244 = vmatpush1.msra.mxu0 %v4041
      %4245 = vmatprep.subr.mxu0 %v4050
      %4246 = vmatpush1.msra.mxu0 %v4049
      %4247 = vmatprep.subr.mxu0 %v4058
      %4248 = vmatpush1.msra.mxu0 %v4057
      %4249 = vmatprep.subr.mxu0 %v4162
      %4250 = vmatpush1.msra.mxu0 %v4161
      %4251 = vmatprep.subr.mxu0 %v4170
      %4252 = vmatpush1.msra.mxu0 %v4169
      %4253 = vmatprep.subr.mxu0 %v4178
      %4254 = vmatpush1.msra.mxu0 %v4177
      %4255 = vmatprep.subr.mxu0 %v4186
      %4256 = vmatpush1.msra.mxu0 %v4185
      %4257 = vmatprep.subr.mxu0 %v3638
      %4258 = vmatpush1.msra.mxu0 %v3637
      %4259 = vmatprep.subr.mxu0 %v3646
      %4260 = vmatpush1.msra.mxu0 %v3645
      %4261 = vmatprep.subr.mxu0 %v3654
      %4262 = vmatpush1.msra.mxu0 %v3653
      %4263 = vmatprep.subr.mxu0 %v3662
      %4264 = vmatpush1.msra.mxu0 %v3661
      %4265 = vmatprep.subr.mxu0 0.0
      %4266 = vmatpush1.msra.mxu0 0.0
      %4267 = vmatprep.subr.mxu0 0.0
      %4268 = vmatpush1.msra.mxu0 0.0
      %4269 = vmatprep.subr.mxu0 0.0
      %4270 = vmatpush1.msra.mxu0 0.0
      %4271 = vmatprep.subr.mxu0 0.0
      %4272 = vmatpush1.msra.mxu0 0.0
      %4273 = vmatprep.subr.mxu0 0.0
      %4274 = vmatpush1.msra.mxu0 0.0
      %4275 = vmatprep.subr.mxu0 0.0
      %4276 = vmatpush1.msra.mxu0 0.0
      %4277 = vmatprep.subr.mxu0 0.0
      %4278 = vmatpush1.msra.mxu0 0.0
      %4279 = vmatprep.subr.mxu0 0.0
      %4280 = vmatpush1.msra.mxu0 0.0
      %4281 = vmatprep.subr.mxu0 0.0
      %4282 = vmatpush1.msra.mxu0 0.0
      %4283 = vmatprep.subr.mxu0 0.0
      %4284 = vmatpush1.msra.mxu0 0.0
      %4285 = vmatprep.subr.mxu0 0.0
      %4286 = vmatpush1.msra.mxu0 0.0
      %4287 = vmatprep.subr.mxu0 0.0
      %4288 = vmatpush1.msra.mxu0 0.0
      %4289 = vmatprep.mubr.f32.mxu0 %v4214
      %4290 = vmatmul.mubr.f32.gmra.mrb[0].mxu0 %v3669
      %v4291 = vpop.f32.mrb[0].mxu0
      %v4292 = vadd.f32 %v4196, %v4291
      %v4293 = vpop.f32.mrb[0].mxu0
      %v4294 = vadd.f32 %v4196, %v4293
      %4295 = vmatprep.mubr.f32.mxu0 %v4217
      %4296 = vmatmul.mubr.f32.gmra.mrb[0].mxu0 %v3671
      %v4297 = vpop.f32.mrb[0].mxu0
      %v4298 = vadd.f32 %v4201, %v4297
      %v4299 = vpop.f32.mrb[0].mxu0
      %v4300 = vadd.f32 %v4201, %v4299
      %4301 = vmatprep.mubr.f32.mxu0 %v4220
      %4302 = vmatmul.mubr.f32.gmra.mrb[0].mxu0 %v3673
      %v4303 = vpop.f32.mrb[0].mxu0
      %v4304 = vadd.f32 %v4206, %v4303
      %v4305 = vpop.f32.mrb[0].mxu0
      %v4306 = vadd.f32 %v4206, %v4305
      %4307 = vmatprep.mubr.f32.mxu0 %v4223
      %4308 = vmatmul.mubr.f32.gmra.mrb[0].mxu0 %v3675
      %v4309 = vpop.f32.mrb[0].mxu0
      %v4310 = vadd.f32 %v4211, %v4309
      %v4311 = vpop.f32.mrb[0].mxu0
      %v4312 = vadd.f32 %v4211, %v4311
      %4313 = vdwg.mxu0
      %4314 = vmatprep.subr.mxu0 %v3780
      %4315 = vmatpush1.msra.mxu0 %v3779
      %4316 = vmatprep.subr.mxu0 %v3788
      %4317 = vmatpush1.msra.mxu0 %v3787
      %4318 = vmatprep.subr.mxu0 %v3796
      %4319 = vmatpush1.msra.mxu0 %v3795
      %4320 = vmatprep.subr.mxu0 %v3804
      %4321 = vmatpush1.msra.mxu0 %v3803
      %4322 = vmatprep.subr.mxu0 %v3908
      %4323 = vmatpush1.msra.mxu0 %v3907
      %4324 = vmatprep.subr.mxu0 %v3916
      %4325 = vmatpush1.msra.mxu0 %v3915
      %4326 = vmatprep.subr.mxu0 %v3924
      %4327 = vmatpush1.msra.mxu0 %v3923
      %4328 = vmatprep.subr.mxu0 %v3932
      %4329 = vmatpush1.msra.mxu0 %v3931
      %4330 = vmatprep.subr.mxu0 %v4036
      %4331 = vmatpush1.msra.mxu0 %v4035
      %4332 = vmatprep.subr.mxu0 %v4044
      %4333 = vmatpush1.msra.mxu0 %v4043
      %4334 = vmatprep.subr.mxu0 %v4052
      %4335 = vmatpush1.msra.mxu0 %v4051
      %4336 = vmatprep.subr.mxu0 %v4060
      %4337 = vmatpush1.msra.mxu0 %v4059
      %4338 = vmatprep.subr.mxu0 %v4164
      %4339 = vmatpush1.msra.mxu0 %v4163
      %4340 = vmatprep.subr.mxu0 %v4172
      %4341 = vmatpush1.msra.mxu0 %v4171
      %4342 = vmatprep.subr.mxu0 %v4180
      %4343 = vmatpush1.msra.mxu0 %v4179
      %4344 = vmatprep.subr.mxu0 %v4188
      %4345 = vmatpush1.msra.mxu0 %v4187
      %4346 = vmatprep.subr.mxu0 %v3640
      %4347 = vmatpush1.msra.mxu0 %v3639
      %4348 = vmatprep.subr.mxu0 %v3648
      %4349 = vmatpush1.msra.mxu0 %v3647
      %4350 = vmatprep.subr.mxu0 %v3656
      %4351 = vmatpush1.msra.mxu0 %v3655
      %4352 = vmatprep.subr.mxu0 %v3664
      %4353 = vmatpush1.msra.mxu0 %v3663
      %4354 = vmatprep.subr.mxu0 0.0
      %4355 = vmatpush1.msra.mxu0 0.0
      %4356 = vmatprep.subr.mxu0 0.0
      %4357 = vmatpush1.msra.mxu0 0.0
      %4358 = vmatprep.subr.mxu0 0.0
      %4359 = vmatpush1.msra.mxu0 0.0
      %4360 = vmatprep.subr.mxu0 0.0
      %4361 = vmatpush1.msra.mxu0 0.0
      %4362 = vmatprep.subr.mxu0 0.0
      %4363 = vmatpush1.msra.mxu0 0.0
      %4364 = vmatprep.subr.mxu0 0.0
      %4365 = vmatpush1.msra.mxu0 0.0
      %4366 = vmatprep.subr.mxu0 0.0
      %4367 = vmatpush1.msra.mxu0 0.0
      %4368 = vmatprep.subr.mxu0 0.0
      %4369 = vmatpush1.msra.mxu0 0.0
      %4370 = vmatprep.subr.mxu0 0.0
      %4371 = vmatpush1.msra.mxu0 0.0
      %4372 = vmatprep.subr.mxu0 0.0
      %4373 = vmatpush1.msra.mxu0 0.0
      %4374 = vmatprep.subr.mxu0 0.0
      %4375 = vmatpush1.msra.mxu0 0.0
      %4376 = vmatprep.subr.mxu0 0.0
      %4377 = vmatpush1.msra.mxu0 0.0
      %4378 = vmatprep.mubr.f32.mxu0 %v4214
      %4379 = vmatmul.mubr.f32.gmra.mrb[0].mxu0 %v3669
      %v4380 = vpop.f32.mrb[0].mxu0
      %v4381 = vadd.f32 %v4196, %v4380
      %v4382 = vpop.f32.mrb[0].mxu0
      %v4383 = vadd.f32 %v4196, %v4382
      %4384 = vmatprep.mubr.f32.mxu0 %v4217
      %4385 = vmatmul.mubr.f32.gmra.mrb[0].mxu0 %v3671
      %v4386 = vpop.f32.mrb[0].mxu0
      %v4387 = vadd.f32 %v4201, %v4386
      %v4388 = vpop.f32.mrb[0].mxu0
      %v4389 = vadd.f32 %v4201, %v4388
      %4390 = vmatprep.mubr.f32.mxu0 %v4220
      %4391 = vmatmul.mubr.f32.gmra.mrb[0].mxu0 %v3673
      %v4392 = vpop.f32.mrb[0].mxu0
      %v4393 = vadd.f32 %v4206, %v4392
      %v4394 = vpop.f32.mrb[0].mxu0
      %v4395 = vadd.f32 %v4206, %v4394
      %4396 = vmatprep.mubr.f32.mxu0 %v4223
      %4397 = vmatmul.mubr.f32.gmra.mrb[0].mxu0 %v3675
      %v4398 = vpop.f32.mrb[0].mxu0
      %v4399 = vadd.f32 %v4211, %v4398
      %v4400 = vpop.f32.mrb[0].mxu0
      %v4401 = vadd.f32 %v4211, %v4400
      %4402 = vdwg.mxu0
      %4403 = vmatprep.subr.mxu0 %v3782
      %4404 = vmatpush1.msra.mxu0 %v3781
      %4405 = vmatprep.subr.mxu0 %v3790
      %4406 = vmatpush1.msra.mxu0 %v3789
      %4407 = vmatprep.subr.mxu0 %v3798
      %4408 = vmatpush1.msra.mxu0 %v3797
      %4409 = vmatprep.subr.mxu0 %v3806
      %4410 = vmatpush1.msra.mxu0 %v3805
      %4411 = vmatprep.subr.mxu0 %v3910
      %4412 = vmatpush1.msra.mxu0 %v3909
      %4413 = vmatprep.subr.mxu0 %v3918
      %4414 = vmatpush1.msra.mxu0 %v3917
      %4415 = vmatprep.subr.mxu0 %v3926
      %4416 = vmatpush1.msra.mxu0 %v3925
      %4417 = vmatprep.subr.mxu0 %v3934
      %4418 = vmatpush1.msra.mxu0 %v3933
      %4419 = vmatprep.subr.mxu0 %v4038
      %4420 = vmatpush1.msra.mxu0 %v4037
      %4421 = vmatprep.subr.mxu0 %v4046
      %4422 = vmatpush1.msra.mxu0 %v4045
      %4423 = vmatprep.subr.mxu0 %v4054
      %4424 = vmatpush1.msra.mxu0 %v4053
      %4425 = vmatprep.subr.mxu0 %v4062
      %4426 = vmatpush1.msra.mxu0 %v4061
      %4427 = vmatprep.subr.mxu0 %v4166
      %4428 = vmatpush1.msra.mxu0 %v4165
      %4429 = vmatprep.subr.mxu0 %v4174
      %4430 = vmatpush1.msra.mxu0 %v4173
      %4431 = vmatprep.subr.mxu0 %v4182
      %4432 = vmatpush1.msra.mxu0 %v4181
      %4433 = vmatprep.subr.mxu0 %v4190
      %4434 = vmatpush1.msra.mxu0 %v4189
      %4435 = vmatprep.subr.mxu0 %v3642
      %4436 = vmatpush1.msra.mxu0 %v3641
      %4437 = vmatprep.subr.mxu0 %v3650
      %4438 = vmatpush1.msra.mxu0 %v3649
      %4439 = vmatprep.subr.mxu0 %v3658
      %4440 = vmatpush1.msra.mxu0 %v3657
      %4441 = vmatprep.subr.mxu0 %v3666
      %4442 = vmatpush1.msra.mxu0 %v3665
      %4443 = vmatprep.subr.mxu0 0.0
      %4444 = vmatpush1.msra.mxu0 0.0
      %4445 = vmatprep.subr.mxu0 0.0
      %4446 = vmatpush1.msra.mxu0 0.0
      %4447 = vmatprep.subr.mxu0 0.0
      %4448 = vmatpush1.msra.mxu0 0.0
      %4449 = vmatprep.subr.mxu0 0.0
      %4450 = vmatpush1.msra.mxu0 0.0
      %4451 = vmatprep.subr.mxu0 0.0
      %4452 = vmatpush1.msra.mxu0 0.0
      %4453 = vmatprep.subr.mxu0 0.0
      %4454 = vmatpush1.msra.mxu0 0.0
      %4455 = vmatprep.subr.mxu0 0.0
      %4456 = vmatpush1.msra.mxu0 0.0
      %4457 = vmatprep.subr.mxu0 0.0
      %4458 = vmatpush1.msra.mxu0 0.0
      %4459 = vmatprep.subr.mxu0 0.0
      %4460 = vmatpush1.msra.mxu0 0.0
      %4461 = vmatprep.subr.mxu0 0.0
      %4462 = vmatpush1.msra.mxu0 0.0
      %4463 = vmatprep.subr.mxu0 0.0
      %4464 = vmatpush1.msra.mxu0 0.0
      %4465 = vmatprep.subr.mxu0 0.0
      %4466 = vmatpush1.msra.mxu0 0.0
      %4467 = vmatprep.mubr.f32.mxu0 %v4214
      %4468 = vmatmul.mubr.f32.gmra.mrb[0].mxu0 %v3669
      %v4469 = vpop.f32.mrb[0].mxu0
      %v4470 = vadd.f32 %v4196, %v4469
      %v4471 = vpop.f32.mrb[0].mxu0
      %v4472 = vadd.f32 %v4196, %v4471
      %4473 = vmatprep.mubr.f32.mxu0 %v4217
      %4474 = vmatmul.mubr.f32.gmra.mrb[0].mxu0 %v3671
      %v4475 = vpop.f32.mrb[0].mxu0
      %v4476 = vadd.f32 %v4201, %v4475
      %v4477 = vpop.f32.mrb[0].mxu0
      %v4478 = vadd.f32 %v4201, %v4477
      %4479 = vmatprep.mubr.f32.mxu0 %v4220
      %4480 = vmatmul.mubr.f32.gmra.mrb[0].mxu0 %v3673
      %v4481 = vpop.f32.mrb[0].mxu0
      %v4482 = vadd.f32 %v4206, %v4481
      %v4483 = vpop.f32.mrb[0].mxu0
      %v4484 = vadd.f32 %v4206, %v4483
      %4485 = vmatprep.mubr.f32.mxu0 %v4223
      %4486 = vmatmul.mubr.f32.gmra.mrb[0].mxu0 %v3675
      %v4487 = vpop.f32.mrb[0].mxu0
      %v4488 = vadd.f32 %v4211, %v4487
      %v4489 = vpop.f32.mrb[0].mxu0
      %v4490 = vadd.f32 %v4211, %v4489
      %4491 = vdwg.mxu0
      %4492 = vmatprep.subr.mxu0 %v3784
      %4493 = vmatpush1.msra.mxu0 %v3783
      %4494 = vmatprep.subr.mxu0 %v3792
      %4495 = vmatpush1.msra.mxu0 %v3791
      %4496 = vmatprep.subr.mxu0 %v3800
      %4497 = vmatpush1.msra.mxu0 %v3799
      %4498 = vmatprep.subr.mxu0 %v3808
      %4499 = vmatpush1.msra.mxu0 %v3807
      %4500 = vmatprep.subr.mxu0 %v3912
      %4501 = vmatpush1.msra.mxu0 %v3911
      %4502 = vmatprep.subr.mxu0 %v3920
      %4503 = vmatpush1.msra.mxu0 %v3919
      %4504 = vmatprep.subr.mxu0 %v3928
      %4505 = vmatpush1.msra.mxu0 %v3927
      %4506 = vmatprep.subr.mxu0 %v3936
      %4507 = vmatpush1.msra.mxu0 %v3935
      %4508 = vmatprep.subr.mxu0 %v4040
      %4509 = vmatpush1.msra.mxu0 %v4039
      %4510 = vmatprep.subr.mxu0 %v4048
      %4511 = vmatpush1.msra.mxu0 %v4047
      %4512 = vmatprep.subr.mxu0 %v4056
      %4513 = vmatpush1.msra.mxu0 %v4055
      %4514 = vmatprep.subr.mxu0 %v4064
      %4515 = vmatpush1.msra.mxu0 %v4063
      %4516 = vmatprep.subr.mxu0 %v4168
      %4517 = vmatpush1.msra.mxu0 %v4167
      %4518 = vmatprep.subr.mxu0 %v4176
      %4519 = vmatpush1.msra.mxu0 %v4175
      %4520 = vmatprep.subr.mxu0 %v4184
      %4521 = vmatpush1.msra.mxu0 %v4183
      %4522 = vmatprep.subr.mxu0 %v4192
      %4523 = vmatpush1.msra.mxu0 %v4191
      %4524 = vmatprep.subr.mxu0 %v3644
      %4525 = vmatpush1.msra.mxu0 %v3643
      %4526 = vmatprep.subr.mxu0 %v3652
      %4527 = vmatpush1.msra.mxu0 %v3651
      %4528 = vmatprep.subr.mxu0 %v3660
      %4529 = vmatpush1.msra.mxu0 %v3659
      %4530 = vmatprep.subr.mxu0 %v3668
      %4531 = vmatpush1.msra.mxu0 %v3667
      %4532 = vmatprep.subr.mxu0 0.0
      %4533 = vmatpush1.msra.mxu0 0.0
      %4534 = vmatprep.subr.mxu0 0.0
      %4535 = vmatpush1.msra.mxu0 0.0
      %4536 = vmatprep.subr.mxu0 0.0
      %4537 = vmatpush1.msra.mxu0 0.0
      %4538 = vmatprep.subr.mxu0 0.0
      %4539 = vmatpush1.msra.mxu0 0.0
      %4540 = vmatprep.subr.mxu0 0.0
      %4541 = vmatpush1.msra.mxu0 0.0
      %4542 = vmatprep.subr.mxu0 0.0
      %4543 = vmatpush1.msra.mxu0 0.0
      %4544 = vmatprep.subr.mxu0 0.0
      %4545 = vmatpush1.msra.mxu0 0.0
      %4546 = vmatprep.subr.mxu0 0.0
      %4547 = vmatpush1.msra.mxu0 0.0
      %4548 = vmatprep.subr.mxu0 0.0
      %4549 = vmatpush1.msra.mxu0 0.0
      %4550 = vmatprep.subr.mxu0 0.0
      %4551 = vmatpush1.msra.mxu0 0.0
      %4552 = vmatprep.subr.mxu0 0.0
      %4553 = vmatpush1.msra.mxu0 0.0
      %4554 = vmatprep.subr.mxu0 0.0
      %4555 = vmatpush1.msra.mxu0 0.0
      %4556 = vmatprep.mubr.f32.mxu0 %v4214
      %4557 = vmatmul.mubr.f32.gmra.mrb[0].mxu0 %v3669
      %v4558 = vpop.f32.mrb[0].mxu0
      %v4559 = vadd.f32 %v4196, %v4558
      %v4560 = vpop.f32.mrb[0].mxu0
      %v4561 = vadd.f32 %v4196, %v4560
      %4562 = vmatprep.mubr.f32.mxu0 %v4217
      %4563 = vmatmul.mubr.f32.gmra.mrb[0].mxu0 %v3671
      %v4564 = vpop.f32.mrb[0].mxu0
      %v4565 = vadd.f32 %v4201, %v4564
      %v4566 = vpop.f32.mrb[0].mxu0
      %v4567 = vadd.f32 %v4201, %v4566
      %4568 = vmatprep.mubr.f32.mxu0 %v4220
      %4569 = vmatmul.mubr.f32.gmra.mrb[0].mxu0 %v3673
      %v4570 = vpop.f32.mrb[0].mxu0
      %v4571 = vadd.f32 %v4206, %v4570
      %v4572 = vpop.f32.mrb[0].mxu0
      %v4573 = vadd.f32 %v4206, %v4572
      %4574 = vmatprep.mubr.f32.mxu0 %v4223
      %4575 = vmatmul.mubr.f32.gmra.mrb[0].mxu0 %v3675
      %v4576 = vpop.f32.mrb[0].mxu0
      %v4577 = vadd.f32 %v4211, %v4576
      %v4578 = vpop.f32.mrb[0].mxu0
      %v4579 = vadd.f32 %v4211, %v4578
      %4580 = vdwg.mxu0
      %v4581 = vmax.f32 %v4292, 0.0
      %v4582 = vmax.f32 %v4294, 0.0
      %v4583 = vmax.f32 %v4381, 0.0
      %v4584 = vmax.f32 %v4383, 0.0
      %v4585 = vmax.f32 %v4470, 0.0
      %v4586 = vmax.f32 %v4472, 0.0
      %v4587 = vmax.f32 %v4559, 0.0
      %v4588 = vmax.f32 %v4561, 0.0
      %v4589 = vmax.f32 %v4298, 0.0
      %v4590 = vmax.f32 %v4300, 0.0
      %v4591 = vmax.f32 %v4387, 0.0
      %v4592 = vmax.f32 %v4389, 0.0
      %v4593 = vmax.f32 %v4476, 0.0
      %v4594 = vmax.f32 %v4478, 0.0
      %v4595 = vmax.f32 %v4565, 0.0
      %v4596 = vmax.f32 %v4567, 0.0
      %v4597 = vmax.f32 %v4304, 0.0
      %v4598 = vmax.f32 %v4306, 0.0
      %v4599 = vmax.f32 %v4393, 0.0
      %v4600 = vmax.f32 %v4395, 0.0
      %v4601 = vmax.f32 %v4482, 0.0
      %v4602 = vmax.f32 %v4484, 0.0
      %v4603 = vmax.f32 %v4571, 0.0
      %v4604 = vmax.f32 %v4573, 0.0
      %v4605 = vmax.f32 %v4310, 0.0
      %v4606 = vmax.f32 %v4312, 0.0
      %v4607 = vmax.f32 %v4399, 0.0
      %v4608 = vmax.f32 %v4401, 0.0
      %v4609 = vmax.f32 %v4488, 0.0
      %v4610 = vmax.f32 %v4490, 0.0
      %v4611 = vmax.f32 %v4577, 0.0
      %v4612 = vmax.f32 %v4579, 0.0
      %v4613 = vadd.f32 %v4581, %v2607
      %v4614 = vadd.f32 %v4582, %v2608
      %v4615 = vadd.f32 %v4583, %v2609
      %v4616 = vadd.f32 %v4584, %v2610
      %v4617 = vadd.f32 %v4585, %v2611
      %v4618 = vadd.f32 %v4586, %v2612
      %v4619 = vadd.f32 %v4587, %v2613
      %v4620 = vadd.f32 %v4588, %v2614
      %v4621 = vadd.f32 %v4589, %v2615
      %v4622 = vadd.f32 %v4590, %v2616
      %v4623 = vadd.f32 %v4591, %v2617
      %v4624 = vadd.f32 %v4592, %v2618
      %v4625 = vadd.f32 %v4593, %v2619
      %v4626 = vadd.f32 %v4594, %v2620
      %v4627 = vadd.f32 %v4595, %v2621
      %v4628 = vadd.f32 %v4596, %v2622
      %v4629 = vadd.f32 %v4597, %v2623
      %v4630 = vadd.f32 %v4598, %v2624
      %v4631 = vadd.f32 %v4599, %v2625
      %v4632 = vadd.f32 %v4600, %v2626
      %v4633 = vadd.f32 %v4601, %v2627
      %v4634 = vadd.f32 %v4602, %v2628
      %v4635 = vadd.f32 %v4603, %v2629
      %v4636 = vadd.f32 %v4604, %v2630
      %v4637 = vadd.f32 %v4605, %v2631
      %v4638 = vadd.f32 %v4606, %v2632
      %v4639 = vadd.f32 %v4607, %v2633
      %v4640 = vadd.f32 %v4608, %v2634
      %v4641 = vadd.f32 %v4609, %v2635
      %v4642 = vadd.f32 %v4610, %v2636
      %v4643 = vadd.f32 %v4611, %v2637
      %v4644 = vadd.f32 %v4612, %v2638
      %v4645 = vmax.f32 %v4613, 0.0
      %v4646 = vmax.f32 %v4614, 0.0
      %v4647 = vmax.f32 %v4615, 0.0
      %v4648 = vmax.f32 %v4616, 0.0
      %v4649 = vmax.f32 %v4617, 0.0
      %v4650 = vmax.f32 %v4618, 0.0
      %v4651 = vmax.f32 %v4619, 0.0
      %v4652 = vmax.f32 %v4620, 0.0
      %v4653 = vmax.f32 %v4621, 0.0
      %v4654 = vmax.f32 %v4622, 0.0
      %v4655 = vmax.f32 %v4623, 0.0
      %v4656 = vmax.f32 %v4624, 0.0
      %v4657 = vmax.f32 %v4625, 0.0
      %v4658 = vmax.f32 %v4626, 0.0
      %v4659 = vmax.f32 %v4627, 0.0
      %v4660 = vmax.f32 %v4628, 0.0
      %v4661 = vmax.f32 %v4629, 0.0
      %v4662 = vmax.f32 %v4630, 0.0
      %v4663 = vmax.f32 %v4631, 0.0
      %v4664 = vmax.f32 %v4632, 0.0
      %v4665 = vmax.f32 %v4633, 0.0
      %v4666 = vmax.f32 %v4634, 0.0
      %v4667 = vmax.f32 %v4635, 0.0
      %v4668 = vmax.f32 %v4636, 0.0
      %v4669 = vmax.f32 %v4637, 0.0
      %v4670 = vmax.f32 %v4638, 0.0
      %v4671 = vmax.f32 %v4639, 0.0
      %v4672 = vmax.f32 %v4640, 0.0
      %v4673 = vmax.f32 %v4641, 0.0
      %v4674 = vmax.f32 %v4642, 0.0
      %v4675 = vmax.f32 %v4643, 0.0
      %v4676 = vmax.f32 %v4644, 0.0
      %v4677 = vld [vmem:[%s1] sm:$0xff]
      %v4678 = vld [vmem:[%s1 + $0x8] sm:$0xff]
      %v4679 = vld [vmem:[%s1 + $0x10] sm:$0xff]
      %v4680 = vld [vmem:[%s1 + $0x18] sm:$0xff]
      %v4681 = vld [vmem:[%s1 + $0x20] sm:$0xff]
      %v4682 = vld [vmem:[%s1 + $0x28] sm:$0xff]
      %v4683 = vld [vmem:[%s1 + $0x30] sm:$0xff]
      %v4684 = vld [vmem:[%s1 + $0x38] sm:$0xff]
      %4685 = vmatprep.subr.mxu0 %v4646
      %4686 = vmatpush1.xpose.msra.mxu0 %v4645
      %4687 = vmatprep.subr.mxu0 %v4654
      %4688 = vmatpush1.xpose.msra.mxu0 %v4653
      %4689 = vmatprep.subr.mxu0 %v4662
      %4690 = vmatpush1.xpose.msra.mxu0 %v4661
      %4691 = vmatprep.subr.mxu0 %v4670
      %4692 = vmatpush1.xpose.msra.mxu0 %v4669
      %4693 = vmatprep.subr.mxu0 0.0
      %4694 = vmatpush1.xpose.msra.mxu0 0.0
      %4695 = vmatprep.subr.mxu0 0.0
      %4696 = vmatpush1.xpose.msra.mxu0 0.0
      %4697 = vmatprep.subr.mxu0 0.0
      %4698 = vmatpush1.xpose.msra.mxu0 0.0
      %4699 = vmatprep.subr.mxu0 0.0
      %4700 = vmatpush1.xpose.msra.mxu0 0.0
      %4701 = vmatprep.subr.mxu0 0.0
      %4702 = vmatpush1.xpose.msra.mxu0 0.0
      %4703 = vmatprep.subr.mxu0 0.0
      %4704 = vmatpush1.xpose.msra.mxu0 0.0
      %4705 = vmatprep.subr.mxu0 0.0
      %4706 = vmatpush1.xpose.msra.mxu0 0.0
      %4707 = vmatprep.subr.mxu0 0.0
      %4708 = vmatpush1.xpose.msra.mxu0 0.0
      %4709 = vmatprep.subr.mxu0 0.0
      %4710 = vmatpush1.xpose.msra.mxu0 0.0
      %4711 = vmatprep.subr.mxu0 0.0
      %4712 = vmatpush1.xpose.msra.mxu0 0.0
      %4713 = vmatprep.subr.mxu0 0.0
      %4714 = vmatpush1.xpose.msra.mxu0 0.0
      %4715 = vmatprep.subr.mxu0 0.0
      %4716 = vmatpush1.xpose.msra.mxu0 0.0
      %4717 = vmatprep.subr.mxu0 0.0
      %4718 = vmatpush1.xpose.msra.mxu0 0.0
      %4719 = vmatprep.subr.mxu0 0.0
      %4720 = vmatpush1.xpose.msra.mxu0 0.0
      %4721 = vmatprep.subr.mxu0 0.0
      %4722 = vmatpush1.xpose.msra.mxu0 0.0
      %4723 = vmatprep.subr.mxu0 0.0
      %4724 = vmatpush1.xpose.msra.mxu0 0.0
      %4725 = vmatprep.subr.mxu0 0.0
      %4726 = vmatpush1.xpose.msra.mxu0 0.0
      %4727 = vmatprep.subr.mxu0 0.0
      %4728 = vmatpush1.xpose.msra.mxu0 0.0
      %4729 = vmatprep.subr.mxu0 0.0
      %4730 = vmatpush1.xpose.msra.mxu0 0.0
      %4731 = vmatprep.subr.mxu0 0.0
      %4732 = vmatpush1.xpose.msra.mxu0 0.0
      %4733 = vmatprep.subr.mxu0 0.0
      %4734 = vmatpush1.xpose.msra.mxu0 0.0
      %4735 = vmatprep.subr.mxu0 0.0
      %4736 = vmatpush1.xpose.msra.mxu0 0.0
      %4737 = vmatprep.subr.mxu0 0.0
      %4738 = vmatpush1.xpose.msra.mxu0 0.0
      %4739 = vmatprep.subr.mxu0 0.0
      %4740 = vmatpush1.xpose.msra.mxu0 0.0
      %4741 = vmatprep.subr.mxu0 0.0
      %4742 = vmatpush1.xpose.msra.mxu0 0.0
      %4743 = vmatprep.subr.mxu0 0.0
      %4744 = vmatpush1.xpose.msra.mxu0 0.0
      %4745 = vmatprep.subr.mxu0 0.0
      %4746 = vmatpush1.xpose.msra.mxu0 0.0
      %4747 = vmatprep.subr.mxu0 0.0
      %4748 = vmatpush1.xpose.msra.mxu0 0.0
      %4749 = vmatprep.mubr.f32.mxu0 %v4678
      %4750 = vmatmul.mubr.f32.gmra.mrb[0].mxu0 %v4677
      %v4751 = vpop.f32.mrb[0].mxu0
      %v4752 = vadd.f32 0.0, %v4751
      %v4753 = vpop.f32.mrb[0].mxu0
      %4754 = vdwg.mxu0
      %4755 = vmatprep.subr.mxu0 %v4648
      %4756 = vmatpush1.xpose.msra.mxu0 %v4647
      %4757 = vmatprep.subr.mxu0 %v4656
      %4758 = vmatpush1.xpose.msra.mxu0 %v4655
      %4759 = vmatprep.subr.mxu0 %v4664
      %4760 = vmatpush1.xpose.msra.mxu0 %v4663
      %4761 = vmatprep.subr.mxu0 %v4672
      %4762 = vmatpush1.xpose.msra.mxu0 %v4671
      %4763 = vmatprep.subr.mxu0 0.0
      %4764 = vmatpush1.xpose.msra.mxu0 0.0
      %4765 = vmatprep.subr.mxu0 0.0
      %4766 = vmatpush1.xpose.msra.mxu0 0.0
      %4767 = vmatprep.subr.mxu0 0.0
      %4768 = vmatpush1.xpose.msra.mxu0 0.0
      %4769 = vmatprep.subr.mxu0 0.0
      %4770 = vmatpush1.xpose.msra.mxu0 0.0
      %4771 = vmatprep.subr.mxu0 0.0
      %4772 = vmatpush1.xpose.msra.mxu0 0.0
      %4773 = vmatprep.subr.mxu0 0.0
      %4774 = vmatpush1.xpose.msra.mxu0 0.0
      %4775 = vmatprep.subr.mxu0 0.0
      %4776 = vmatpush1.xpose.msra.mxu0 0.0
      %4777 = vmatprep.subr.mxu0 0.0
      %4778 = vmatpush1.xpose.msra.mxu0 0.0
      %4779 = vmatprep.subr.mxu0 0.0
      %4780 = vmatpush1.xpose.msra.mxu0 0.0
      %4781 = vmatprep.subr.mxu0 0.0
      %4782 = vmatpush1.xpose.msra.mxu0 0.0
      %4783 = vmatprep.subr.mxu0 0.0
      %4784 = vmatpush1.xpose.msra.mxu0 0.0
      %4785 = vmatprep.subr.mxu0 0.0
      %4786 = vmatpush1.xpose.msra.mxu0 0.0
      %4787 = vmatprep.subr.mxu0 0.0
      %4788 = vmatpush1.xpose.msra.mxu0 0.0
      %4789 = vmatprep.subr.mxu0 0.0
      %4790 = vmatpush1.xpose.msra.mxu0 0.0
      %4791 = vmatprep.subr.mxu0 0.0
      %4792 = vmatpush1.xpose.msra.mxu0 0.0
      %4793 = vmatprep.subr.mxu0 0.0
      %4794 = vmatpush1.xpose.msra.mxu0 0.0
      %4795 = vmatprep.subr.mxu0 0.0
      %4796 = vmatpush1.xpose.msra.mxu0 0.0
      %4797 = vmatprep.subr.mxu0 0.0
      %4798 = vmatpush1.xpose.msra.mxu0 0.0
      %4799 = vmatprep.subr.mxu0 0.0
      %4800 = vmatpush1.xpose.msra.mxu0 0.0
      %4801 = vmatprep.subr.mxu0 0.0
      %4802 = vmatpush1.xpose.msra.mxu0 0.0
      %4803 = vmatprep.subr.mxu0 0.0
      %4804 = vmatpush1.xpose.msra.mxu0 0.0
      %4805 = vmatprep.subr.mxu0 0.0
      %4806 = vmatpush1.xpose.msra.mxu0 0.0
      %4807 = vmatprep.subr.mxu0 0.0
      %4808 = vmatpush1.xpose.msra.mxu0 0.0
      %4809 = vmatprep.subr.mxu0 0.0
      %4810 = vmatpush1.xpose.msra.mxu0 0.0
      %4811 = vmatprep.subr.mxu0 0.0
      %4812 = vmatpush1.xpose.msra.mxu0 0.0
      %4813 = vmatprep.subr.mxu0 0.0
      %4814 = vmatpush1.xpose.msra.mxu0 0.0
      %4815 = vmatprep.subr.mxu0 0.0
      %4816 = vmatpush1.xpose.msra.mxu0 0.0
      %4817 = vmatprep.subr.mxu0 0.0
      %4818 = vmatpush1.xpose.msra.mxu0 0.0
      %4819 = vmatprep.mubr.f32.mxu0 %v4680
      %4820 = vmatmul.mubr.f32.gmra.mrb[0].mxu0 %v4679
      %v4821 = vpop.f32.mrb[0].mxu0
      %v4822 = vadd.f32 %v4752, %v4821
      %v4823 = vpop.f32.mrb[0].mxu0
      %4824 = vdwg.mxu0
      %4825 = vmatprep.subr.mxu0 %v4650
      %4826 = vmatpush1.xpose.msra.mxu0 %v4649
      %4827 = vmatprep.subr.mxu0 %v4658
      %4828 = vmatpush1.xpose.msra.mxu0 %v4657
      %4829 = vmatprep.subr.mxu0 %v4666
      %4830 = vmatpush1.xpose.msra.mxu0 %v4665
      %4831 = vmatprep.subr.mxu0 %v4674
      %4832 = vmatpush1.xpose.msra.mxu0 %v4673
      %4833 = vmatprep.subr.mxu0 0.0
      %4834 = vmatpush1.xpose.msra.mxu0 0.0
      %4835 = vmatprep.subr.mxu0 0.0
      %4836 = vmatpush1.xpose.msra.mxu0 0.0
      %4837 = vmatprep.subr.mxu0 0.0
      %4838 = vmatpush1.xpose.msra.mxu0 0.0
      %4839 = vmatprep.subr.mxu0 0.0
      %4840 = vmatpush1.xpose.msra.mxu0 0.0
      %4841 = vmatprep.subr.mxu0 0.0
      %4842 = vmatpush1.xpose.msra.mxu0 0.0
      %4843 = vmatprep.subr.mxu0 0.0
      %4844 = vmatpush1.xpose.msra.mxu0 0.0
      %4845 = vmatprep.subr.mxu0 0.0
      %4846 = vmatpush1.xpose.msra.mxu0 0.0
      %4847 = vmatprep.subr.mxu0 0.0
      %4848 = vmatpush1.xpose.msra.mxu0 0.0
      %4849 = vmatprep.subr.mxu0 0.0
      %4850 = vmatpush1.xpose.msra.mxu0 0.0
      %4851 = vmatprep.subr.mxu0 0.0
      %4852 = vmatpush1.xpose.msra.mxu0 0.0
      %4853 = vmatprep.subr.mxu0 0.0
      %4854 = vmatpush1.xpose.msra.mxu0 0.0
      %4855 = vmatprep.subr.mxu0 0.0
      %4856 = vmatpush1.xpose.msra.mxu0 0.0
      %4857 = vmatprep.subr.mxu0 0.0
      %4858 = vmatpush1.xpose.msra.mxu0 0.0
      %4859 = vmatprep.subr.mxu0 0.0
      %4860 = vmatpush1.xpose.msra.mxu0 0.0
      %4861 = vmatprep.subr.mxu0 0.0
      %4862 = vmatpush1.xpose.msra.mxu0 0.0
      %4863 = vmatprep.subr.mxu0 0.0
      %4864 = vmatpush1.xpose.msra.mxu0 0.0
      %4865 = vmatprep.subr.mxu0 0.0
      %4866 = vmatpush1.xpose.msra.mxu0 0.0
      %4867 = vmatprep.subr.mxu0 0.0
      %4868 = vmatpush1.xpose.msra.mxu0 0.0
      %4869 = vmatprep.subr.mxu0 0.0
      %4870 = vmatpush1.xpose.msra.mxu0 0.0
      %4871 = vmatprep.subr.mxu0 0.0
      %4872 = vmatpush1.xpose.msra.mxu0 0.0
      %4873 = vmatprep.subr.mxu0 0.0
      %4874 = vmatpush1.xpose.msra.mxu0 0.0
      %4875 = vmatprep.subr.mxu0 0.0
      %4876 = vmatpush1.xpose.msra.mxu0 0.0
      %4877 = vmatprep.subr.mxu0 0.0
      %4878 = vmatpush1.xpose.msra.mxu0 0.0
      %4879 = vmatprep.subr.mxu0 0.0
      %4880 = vmatpush1.xpose.msra.mxu0 0.0
      %4881 = vmatprep.subr.mxu0 0.0
      %4882 = vmatpush1.xpose.msra.mxu0 0.0
      %4883 = vmatprep.subr.mxu0 0.0
      %4884 = vmatpush1.xpose.msra.mxu0 0.0
      %4885 = vmatprep.subr.mxu0 0.0
      %4886 = vmatpush1.xpose.msra.mxu0 0.0
      %4887 = vmatprep.subr.mxu0 0.0
      %4888 = vmatpush1.xpose.msra.mxu0 0.0
      %4889 = vmatprep.mubr.f32.mxu0 %v4682
      %4890 = vmatmul.mubr.f32.gmra.mrb[0].mxu0 %v4681
      %v4891 = vpop.f32.mrb[0].mxu0
      %v4892 = vadd.f32 %v4822, %v4891
      %v4893 = vpop.f32.mrb[0].mxu0
      %4894 = vdwg.mxu0
      %4895 = vmatprep.subr.mxu0 %v4652
      %4896 = vmatpush1.xpose.msra.mxu0 %v4651
      %4897 = vmatprep.subr.mxu0 %v4660
      %4898 = vmatpush1.xpose.msra.mxu0 %v4659
      %4899 = vmatprep.subr.mxu0 %v4668
      %4900 = vmatpush1.xpose.msra.mxu0 %v4667
      %4901 = vmatprep.subr.mxu0 %v4676
      %4902 = vmatpush1.xpose.msra.mxu0 %v4675
      %4903 = vmatprep.subr.mxu0 0.0
      %4904 = vmatpush1.xpose.msra.mxu0 0.0
      %4905 = vmatprep.subr.mxu0 0.0
      %4906 = vmatpush1.xpose.msra.mxu0 0.0
      %4907 = vmatprep.subr.mxu0 0.0
      %4908 = vmatpush1.xpose.msra.mxu0 0.0
      %4909 = vmatprep.subr.mxu0 0.0
      %4910 = vmatpush1.xpose.msra.mxu0 0.0
      %4911 = vmatprep.subr.mxu0 0.0
      %4912 = vmatpush1.xpose.msra.mxu0 0.0
      %4913 = vmatprep.subr.mxu0 0.0
      %4914 = vmatpush1.xpose.msra.mxu0 0.0
      %4915 = vmatprep.subr.mxu0 0.0
      %4916 = vmatpush1.xpose.msra.mxu0 0.0
      %4917 = vmatprep.subr.mxu0 0.0
      %4918 = vmatpush1.xpose.msra.mxu0 0.0
      %4919 = vmatprep.subr.mxu0 0.0
      %4920 = vmatpush1.xpose.msra.mxu0 0.0
      %4921 = vmatprep.subr.mxu0 0.0
      %4922 = vmatpush1.xpose.msra.mxu0 0.0
      %4923 = vmatprep.subr.mxu0 0.0
      %4924 = vmatpush1.xpose.msra.mxu0 0.0
      %4925 = vmatprep.subr.mxu0 0.0
      %4926 = vmatpush1.xpose.msra.mxu0 0.0
      %4927 = vmatprep.subr.mxu0 0.0
      %4928 = vmatpush1.xpose.msra.mxu0 0.0
      %4929 = vmatprep.subr.mxu0 0.0
      %4930 = vmatpush1.xpose.msra.mxu0 0.0
      %4931 = vmatprep.subr.mxu0 0.0
      %4932 = vmatpush1.xpose.msra.mxu0 0.0
      %4933 = vmatprep.subr.mxu0 0.0
      %4934 = vmatpush1.xpose.msra.mxu0 0.0
      %4935 = vmatprep.subr.mxu0 0.0
      %4936 = vmatpush1.xpose.msra.mxu0 0.0
      %4937 = vmatprep.subr.mxu0 0.0
      %4938 = vmatpush1.xpose.msra.mxu0 0.0
      %4939 = vmatprep.subr.mxu0 0.0
      %4940 = vmatpush1.xpose.msra.mxu0 0.0
      %4941 = vmatprep.subr.mxu0 0.0
      %4942 = vmatpush1.xpose.msra.mxu0 0.0
      %4943 = vmatprep.subr.mxu0 0.0
      %4944 = vmatpush1.xpose.msra.mxu0 0.0
      %4945 = vmatprep.subr.mxu0 0.0
      %4946 = vmatpush1.xpose.msra.mxu0 0.0
      %4947 = vmatprep.subr.mxu0 0.0
      %4948 = vmatpush1.xpose.msra.mxu0 0.0
      %4949 = vmatprep.subr.mxu0 0.0
      %4950 = vmatpush1.xpose.msra.mxu0 0.0
      %4951 = vmatprep.subr.mxu0 0.0
      %4952 = vmatpush1.xpose.msra.mxu0 0.0
      %4953 = vmatprep.subr.mxu0 0.0
      %4954 = vmatpush1.xpose.msra.mxu0 0.0
      %4955 = vmatprep.subr.mxu0 0.0
      %4956 = vmatpush1.xpose.msra.mxu0 0.0
      %4957 = vmatprep.subr.mxu0 0.0
      %4958 = vmatpush1.xpose.msra.mxu0 0.0
      %4959 = vmatprep.mubr.f32.mxu0 %v4684
      %4960 = vmatmul.mubr.f32.gmra.mrb[0].mxu0 %v4683
      %v4961 = vpop.f32.mrb[0].mxu0
      %v4962 = vadd.f32 %v4892, %v4961
      %v4963 = vpop.f32.mrb[0].mxu0
      %4964 = vdwg.mxu0
      %v4965 = vld [vmem:[%s13] sm:$0xff]
      %v4966 = vld [vmem:[%s13 + $0x8] sm:$0xff]
      %v4967 = vld [vmem:[%s13 + $0x10] sm:$0xff]
      %v4968 = vld [vmem:[%s13 + $0x18] sm:$0xff]
      %v4969 = vld [vmem:[%s14] sm:$0x1]
      %v4971 = vlaneseq
      %v4972 = vshrl.u32 %v4971, 7
      %v4973 = vsub.s32 0, %v4972
      %v4974 = vrot.slane %v4969, %v4973
      %v4977 = vsel %vm1777, %v4962, 0
      %4979 = vmatprep.subr.mxu0 0.0
      %4980 = vmatpush1.msra.mxu0 %v4965
      %4981 = vmatprep.subr.mxu0 0.0
      %4982 = vmatpush1.msra.mxu0 %v4966
      %4983 = vmatprep.subr.mxu0 0.0
      %4984 = vmatpush1.msra.mxu0 %v4967
      %4985 = vmatprep.subr.mxu0 0.0
      %4986 = vmatpush1.msra.mxu0 %v4968
      %4987 = vmatprep.subr.mxu0 0.0
      %4988 = vmatpush1.msra.mxu0 0.0
      %4989 = vmatprep.subr.mxu0 0.0
      %4990 = vmatpush1.msra.mxu0 0.0
      %4991 = vmatprep.subr.mxu0 0.0
      %4992 = vmatpush1.msra.mxu0 0.0
      %4993 = vmatprep.subr.mxu0 0.0
      %4994 = vmatpush1.msra.mxu0 0.0
      %4995 = vmatprep.subr.mxu0 0.0
      %4996 = vmatpush1.msra.mxu0 0.0
      %4997 = vmatprep.subr.mxu0 0.0
      %4998 = vmatpush1.msra.mxu0 0.0
      %4999 = vmatprep.subr.mxu0 0.0
      %5000 = vmatpush1.msra.mxu0 0.0
      %5001 = vmatprep.subr.mxu0 0.0
      %5002 = vmatpush1.msra.mxu0 0.0
      %5003 = vmatprep.subr.mxu0 0.0
      %5004 = vmatpush1.msra.mxu0 0.0
      %5005 = vmatprep.subr.mxu0 0.0
      %5006 = vmatpush1.msra.mxu0 0.0
      %5007 = vmatprep.subr.mxu0 0.0
      %5008 = vmatpush1.msra.mxu0 0.0
      %5009 = vmatprep.subr.mxu0 0.0
      %5010 = vmatpush1.msra.mxu0 0.0
      %5011 = vmatprep.subr.mxu0 0.0
      %5012 = vmatpush1.msra.mxu0 0.0
      %5013 = vmatprep.subr.mxu0 0.0
      %5014 = vmatpush1.msra.mxu0 0.0
      %5015 = vmatprep.subr.mxu0 0.0
      %5016 = vmatpush1.msra.mxu0 0.0
      %5017 = vmatprep.subr.mxu0 0.0
      %5018 = vmatpush1.msra.mxu0 0.0
      %5019 = vmatprep.subr.mxu0 0.0
      %5020 = vmatpush1.msra.mxu0 0.0
      %5021 = vmatprep.subr.mxu0 0.0
      %5022 = vmatpush1.msra.mxu0 0.0
      %5023 = vmatprep.subr.mxu0 0.0
      %5024 = vmatpush1.msra.mxu0 0.0
      %5025 = vmatprep.subr.mxu0 0.0
      %5026 = vmatpush1.msra.mxu0 0.0
      %5027 = vmatprep.subr.mxu0 0.0
      %5028 = vmatpush1.msra.mxu0 0.0
      %5029 = vmatprep.subr.mxu0 0.0
      %5030 = vmatpush1.msra.mxu0 0.0
      %5031 = vmatprep.subr.mxu0 0.0
      %5032 = vmatpush1.msra.mxu0 0.0
      %5033 = vmatprep.subr.mxu0 0.0
      %5034 = vmatpush1.msra.mxu0 0.0
      %5035 = vmatprep.subr.mxu0 0.0
      %5036 = vmatpush1.msra.mxu0 0.0
      %5037 = vmatprep.subr.mxu0 0.0
      %5038 = vmatpush1.msra.mxu0 0.0
      %5039 = vmatprep.subr.mxu0 0.0
      %5040 = vmatpush1.msra.mxu0 0.0
      %5041 = vmatprep.subr.mxu0 0.0
      %5042 = vmatpush1.msra.mxu0 0.0
      %5043 = vmatprep.mubr.f32.mxu0 0.0
      %5044 = vmatmul.mubr.f32.gmra.mrb[0].mxu0 %v4977
      %v5045 = vpop.f32.mrb[0].mxu0
      %v5046 = vadd.f32 %v4974, %v5045
      %v5047 = vpop.f32.mrb[0].mxu0
      %5048 = vdwg.mxu0
      %5049 = vst [vmem:[%s492] sm:$0xff] %v5046
      %p5050 = scmp.lt.s32.totalorder %s26, 1
      %s5051 = scalar_select %p5050, %s26, 1
      %s5052 = smul.addr %s5051, 8
      %s5053 = scalar_lea.vmem %s15, %s5052
      // Predicated region
      $region81: #{forward.1} parent=79 // pred_check
        %p5054 = pneg %p364
      $region82: #{forward.1} parent=79 // pred_check_branch
        %5056 = sbr.rel (%p5054) target = $region84
      $region83: #{forward.1} parent=79 // pred_region
        _
      $region84: #{forward.1} parent=79 // pred_fallthru
        _
    $region80: #{forward.1} parent=5 // pred_fallthru
      _
    %p5057 = scmp.le.s32.totalorder 2, %s21
    // Predicated region
    $region85: #{forward.1} parent=5 // pred_check
      %p5058 = pneg %p5057
    $region86: #{forward.1} parent=5 // pred_check_branch
      %5060 = sbr.rel (%p5058) target = $region88
    $region87: #{forward.1} parent=5 // pred_region
      %s5061 = ssub.s32 %s21, 2
      // Predicated region
      $region89: #{forward.1} parent=87 // pred_check
        %p5062 = pneg %p370
      $region90: #{forward.1} parent=87 // pred_check_branch
        %5064 = sbr.rel (%p5062) target = $region92
      $region91: #{forward.1} parent=87 // pred_region
        %p5065 = scmp.lt.s32.totalorder %s27, 1
        %s5066 = scalar_select %p5065, %s27, 1
        %s5067 = smul.addr %s5066, 8
        %s5068 = scalar_lea.vmem %s15, %s5067
      $region92: #{forward.1} parent=87 // pred_fallthru
        _
    $region88: #{forward.1} parent=5 // pred_fallthru
      _
  $region6: #{forward.1} parent=0 // loop_footer
    %s25 = sadd.s32 1, %s21
  $region7: #{forward.1} parent=0 // loop_footer_branch
    %20 = sbr.rel target = $region3
  $region8: #{forward.1} parent=0 // loop_exit
    _

</llo_original>
